<compile_context>
chip_gen: v6e
topology: v6e:2x2x1
jax: 0.10.0
libtpu: 0.0.40
codegen_flags: <defaults>
</compile_context>

<pallas_src>
import numpy as np
import jax
import jax.numpy as jnp
from jax.experimental import pallas as pl
from jax.experimental.pallas import tpu as pltpu

EPS = 1e-5
HIGH = jax.lax.Precision.HIGHEST   # pure-JAX reference / tiny XLA glue only
HEAD_PAD = 128                     # lane-dense padded width of the cls|reg output


# ----------------------------------------------------------------------------
# Kernel A: LightROIGather body for ONE feature level (one grid step).
#   (attention already folded into w1) 1x1 conv -> BN -> ReLU -> 1x1 conv -> BN
#   -> 3x3 group conv as a single K=9C im2col matmul.  Output stored transposed
#   (C, N) so the HBM store is lane-dense (N = 128 lanes).
# ----------------------------------------------------------------------------
def roi_gather_kernel(x_ref, w1_ref, v1_ref, w2_ref, v2_ref, wg_ref, bg_ref,
                      out_ref, slab_ref):
    B, H, W, C = x_ref.shape
    N = B * H * W

    x = x_ref[...].reshape(N, C)                                   # bf16 input

    # 1x1 conv #1 (attention scale pre-folded into w1) + BN (train stats) + ReLU
    y1 = jnp.dot(x, w1_ref[...], preferred_element_type=jnp.float32) + v1_ref[0:1, :]
    mu1 = jnp.mean(y1, axis=0, keepdims=True)
    var1 = jnp.mean((y1 - mu1) ** 2, axis=0, keepdims=True)
    z1 = jnp.maximum(
        (y1 - mu1) * jax.lax.rsqrt(var1 + EPS) * v1_ref[1:2, :] + v1_ref[2:3, :], 0.0)

    # 1x1 conv #2 + BN (no trailing ReLU in the Sequential)
    y2 = jnp.dot(z1.astype(jnp.bfloat16), w2_ref[...],
                 preferred_element_type=jnp.float32) + v2_ref[0:1, :]
    mu2 = jnp.mean(y2, axis=0, keepdims=True)
    var2 = jnp.mean((y2 - mu2) ** 2, axis=0, keepdims=True)
    z2 = (y2 - mu2) * jax.lax.rsqrt(var2 + EPS) * v2_ref[1:2, :] + v2_ref[2:3, :]

    # 3x3 group conv (padding=1) as ONE im2col matmul with K = 9*C.
    # Taps are written straight from the z2 value into a VMEM slab; only the
    # halo ring actually needs the zero fill.
    z4 = z2.reshape(B, H, W, C)
    slab_ref[...] = jnp.zeros(slab_ref.shape, slab_ref.dtype)
    for kh in range(3):
        for kw in range(3):
            dh, dw = kh - 1, kw - 1
            oh0, oh1 = max(0, -dh), min(H, H - dh)
            ow0, ow1 = max(0, -dw), min(W, W - dw)
            t = kh * 3 + kw
            slab_ref[:, oh0:oh1, ow0:ow1, t * C:(t + 1) * C] = \
                z4[:, oh0 + dh:oh1 + dh, ow0 + dw:ow1 + dw, :]

    slab = slab_ref[...].reshape(N, 9 * C).astype(jnp.bfloat16)    # (N, 9C)
    y = jnp.dot(slab, wg_ref[...], preferred_element_type=jnp.float32) + bg_ref[...]
    out_ref[...] = y.T                                             # (C, N): 128-lane dense store


# ----------------------------------------------------------------------------
# Kernel B: shared_fcs -> fused (cls|reg) head for ALL levels in one step
# (head weights are level-invariant, so M = L*N rows in one matmul chain).
# Output padded to HEAD_PAD lanes; sliced back to num_classes+4 in XLA.
# ----------------------------------------------------------------------------
def head_kernel(x_ref, ws1_ref, ws2_ref, wcr1_ref, wcr2_ref, hb_ref, bcr2_ref,
                out_ref):
    x = x_ref[...]                                                       # (LN, C) bf16
    h = jnp.maximum(jnp.dot(x, ws1_ref[...],
                            preferred_element_type=jnp.float32) + hb_ref[0:1, :], 0.0)
    h = jnp.dot(h.astype(jnp.bfloat16), ws2_ref[...],
                preferred_element_type=jnp.float32) + hb_ref[1:2, :]     # no ReLU
    cr = jnp.maximum(jnp.dot(h.astype(jnp.bfloat16), wcr1_ref[...],
                             preferred_element_type=jnp.float32) + hb_ref[2:3, :], 0.0)
    out_ref[...] = jnp.dot(cr.astype(jnp.bfloat16), wcr2_ref[...],
                           preferred_element_type=jnp.float32) + bcr2_ref[...]


# ----------------------------------------------------------------------------
# One-time parameter creation / packing (hoisted out of forward / jit).
# ----------------------------------------------------------------------------
def init_params(key, C, num_classes):
    keys = jax.random.split(key, 26)

    def rn(k, shape, scale=0.1):
        return jax.random.normal(k, shape, jnp.float32) * scale

    p = {}
    # LightROIGather.light_attention
    p['wa1'] = rn(keys[0], (C // 4, C)); p['ba1'] = rn(keys[1], (C // 4,))
    p['wa2'] = rn(keys[2], (C, C // 4)); p['ba2'] = rn(keys[3], (C,))
    # LightROIGather.shared_fusion (conv1x1 + BN + ReLU + conv1x1 + BN)
    p['w1'] = rn(keys[4], (C // 2, C));  p['b1'] = rn(keys[5], (C // 2,))
    p['g1'] = 1.0 + rn(keys[6], (C // 2,)); p['bt1'] = rn(keys[7], (C // 2,))
    p['w2'] = rn(keys[8], (C, C // 2));  p['b2'] = rn(keys[9], (C,))
    p['g2'] = 1.0 + rn(keys[10], (C,));  p['bt2'] = rn(keys[11], (C,))
    # LightROIGather.group_conv: Conv2d(C, C, 3, padding=1, groups=8)
    p['wg'] = rn(keys[12], (C, C // 8, 3, 3)); p['bg'] = rn(keys[13], (C,))
    # shared_fcs
    p['ws1'] = rn(keys[14], (C // 2, C));      p['bs1'] = rn(keys[15], (C // 2,))
    p['ws2'] = rn(keys[16], (C // 2, C // 2)); p['bs2'] = rn(keys[17], (C // 2,))
    # cls_fcs
    p['wc1'] = rn(keys[18], (C // 4, C // 2)); p['bc1'] = rn(keys[19], (C // 4,))
    p['wc2'] = rn(keys[20], (num_classes, C // 4)); p['bc2'] = rn(keys[21], (num_classes,))
    # reg_fcs
    p['wr1'] = rn(keys[22], (C // 4, C // 2)); p['br1'] = rn(keys[23], (C // 4,))
    p['wr2'] = rn(keys[24], (4, C // 4));      p['br2'] = rn(keys[25], (4,))
    return p


def expand_group_conv_taps(wg, groups):
    """(Cout, Cin/groups, 3, 3) grouped weight -> (9, Cin, Cout) dense per-tap weights."""
    wg = np.asarray(wg)
    c_out, cpg, kh, kw = wg.shape
    c_in = cpg * groups
    dense = np.zeros((kh * kw, c_in, c_out), np.float32)
    for g in range(groups):
        blk = wg[g * cpg:(g + 1) * cpg]                       # (cpg_out, cpg_in, 3, 3)
        dense[:, g * cpg:(g + 1) * cpg, g * cpg:(g + 1) * cpg] = \
            np.transpose(blk, (2, 3, 1, 0)).reshape(kh * kw, cpg, cpg)
    return jnp.asarray(dense)


def _block_diag2(a, b):
    a = np.asarray(a); b = np.asarray(b)
    out = np.zeros((a.shape[0] + b.shape[0], a.shape[1] + b.shape[1]), np.float32)
    out[:a.shape[0], :a.shape[1]] = a
    out[a.shape[0]:, a.shape[1]:] = b
    return jnp.asarray(out)


def prepare_params(p, groups=8):
    C = p['w2'].shape[0]
    nc = p['wc2'].shape[0]
    NO = nc + 4
    assert NO <= HEAD_PAD

    wg9 = expand_group_conv_taps(p['wg'], groups)                      # (9, C, C)
    wcr2 = _block_diag2(p['wc2'].T, p['wr2'].T)                        # (C//2, NO)
    wcr2p = jnp.zeros((C // 2, HEAD_PAD), jnp.float32).at[:, :NO].set(wcr2)
    bcr2p = jnp.zeros((1, HEAD_PAD), jnp.float32).at[0, :NO].set(
        jnp.concatenate([p['bc2'], p['br2']]))

    return dict(
        # attention MLP (computed once per forward, in XLA)
        wa1T=p['wa1'].T, ba1=p['ba1'], wa2T=p['wa2'].T, ba2=p['ba2'],
        # shared_fusion: w1 kept f32 (attention folded + bf16 cast per forward)
        w1T=p['w1'].T,
        v1=jnp.stack([p['b1'], p['g1'], p['bt1']], axis=0),            # (3, C//2) f32
        w2T=p['w2'].T.astype(jnp.bfloat16),
        v2=jnp.stack([p['b2'], p['g2'], p['bt2']], axis=0),            # (3, C) f32
        # group conv: im2col weight (9C, C) bf16 + f32 bias row
        wg_im2col=wg9.reshape(9 * C, C).astype(jnp.bfloat16),
        bg=p['bg'].reshape(1, C),
        # head: shared_fcs + fused cls|reg branches (second layer padded to 128 lanes)
        ws1T=p['ws1'].T.astype(jnp.bfloat16),
        ws2T=p['ws2'].T.astype(jnp.bfloat16),
        wcr1=jnp.concatenate([p['wc1'].T, p['wr1'].T], axis=1).astype(jnp.bfloat16),
        wcr2p=wcr2p.astype(jnp.bfloat16),
        hb=jnp.stack([p['bs1'], p['bs2'],
                      jnp.concatenate([p['bc1'], p['br1']])], axis=0),  # (3, C//2) f32
        bcr2p=bcr2p,                                                    # (1, 128) f32
    )


# ----------------------------------------------------------------------------
# Fused, jitted forward.
# ----------------------------------------------------------------------------
def make_forward(L, B, C, H, W, num_classes):
    N = B * H * W
    NO = num_classes + 4
    NOP = HEAD_PAD

    roi_flops = int(L * (2 * N * C * (C // 2) + 2 * N * (C // 2) * C + 2 * N * 9 * C * C))
    roi_trans = int(L * (C // 2 + C))
    roi_bytes = int(L * N * C * 2 + (C * (C // 2) + (C // 2) * C + 9 * C * C) * 2
                    + (3 * (C // 2) + 3 * C + C) * 4 + L * C * N * 4)
    head_flops = int(2 * L * N * (C * (C // 2) + 2 * (C // 2) * (C // 2) + (C // 2) * NOP))
    head_bytes = int(L * N * C * 2
                     + (C * (C // 2) + 2 * (C // 2) * (C // 2) + (C // 2) * NOP) * 2
                     + (3 * (C // 2) + NOP) * 4 + L * N * NOP * 4)

    roi_call = pl.pallas_call(
        roi_gather_kernel,
        out_shape=jax.ShapeDtypeStruct((L, C, N), jnp.float32),
        grid_spec=pltpu.PrefetchScalarGridSpec(
            num_scalar_prefetch=0,
            grid=(L,),
            in_specs=[
                pl.BlockSpec((None, B, H, W, C), lambda l: (l, 0, 0, 0, 0)),  # feats (bf16)
                pl.BlockSpec((C, C // 2), lambda l: (0, 0)),                  # w1 (att folded)
                pl.BlockSpec((3, C // 2), lambda l: (0, 0)),                  # b1/g1/bt1
                pl.BlockSpec((C // 2, C), lambda l: (0, 0)),                  # w2T
                pl.BlockSpec((3, C), lambda l: (0, 0)),                       # b2/g2/bt2
                pl.BlockSpec((9 * C, C), lambda l: (0, 0)),                   # im2col weight
                pl.BlockSpec((1, C), lambda l: (0, 0)),                       # bg
            ],
            out_specs=pl.BlockSpec((None, C, N), lambda l: (l, 0, 0)),
            scratch_shapes=[pltpu.VMEM((B, H, W, 9 * C), jnp.float32)],       # im2col slab
        ),
        compiler_params=pltpu.CompilerParams(
            dimension_semantics=("parallel",),
            vmem_limit_bytes=32 * 1024 * 1024),
        cost_estimate=pl.CostEstimate(flops=roi_flops, transcendentals=roi_trans,
                                      bytes_accessed=roi_bytes),
    )

    head_call = pl.pallas_call(
        head_kernel,
        out_shape=jax.ShapeDtypeStruct((L * N, NOP), jnp.float32),
        compiler_params=pltpu.CompilerParams(vmem_limit_bytes=32 * 1024 * 1024),
        cost_estimate=pl.CostEstimate(flops=head_flops, transcendentals=0,
                                      bytes_accessed=head_bytes),
    )

    @jax.jit
    def forward(feats_nchw, gc, prep):
        # Attention MLP hoisted out of the kernels; its diagonal scale is folded
        # into the first 1x1-conv weight (commutes with the per-channel multiply).
        h = jnp.maximum(jnp.dot(gc, prep['wa1T'], precision=HIGH) + prep['ba1'], 0.0)
        att = jax.nn.sigmoid(jnp.dot(h, prep['wa2T'], precision=HIGH) + prep['ba2'])
        w1e = (att[:, None] * prep['w1T']).astype(jnp.bfloat16)              # (C, C//2)

        x_bhwc = jnp.transpose(feats_nchw, (0, 1, 3, 4, 2)).astype(jnp.bfloat16)
        roi_cn = roi_call(x_bhwc, w1e, prep['v1'], prep['w2T'], prep['v2'],
                          prep['wg_im2col'], prep['bg'])                     # (L, C, N)

        # LightROIGather output in NCHW; the same reshape also realizes the exact
        # PyTorch `roi_feat.view(B*num_priors, -1)` raw-NCHW view for the FC head.
        roi_nchw = jnp.transpose(roi_cn.reshape(L, C, B, H, W), (0, 2, 1, 3, 4))
        x_fc = roi_nchw.reshape(L * N, C).astype(jnp.bfloat16)

        out = head_call(x_fc, prep['ws1T'], prep['ws2T'], prep['wcr1'],
                        prep['wcr2p'], prep['hb'], prep['bcr2p'])            # (L*N, 128)
        out = out.reshape(L, N, NOP)
        cls = out[:, :, :num_classes].reshape(L, B, H * W, num_classes)
        reg = out[:, :, num_classes:NO].reshape(L, B, H * W, 4)
        return cls, reg, roi_nchw

    return forward


# ----------------------------------------------------------------------------
# Pure-JAX reference (mirrors PyTorch semantics in NCHW, f32 HIGHEST precision).
# ----------------------------------------------------------------------------
def reference_forward(feats, gc, p, groups=8):
    relu = lambda v: jnp.maximum(v, 0.0)
    att = jax.nn.sigmoid(
        jnp.dot(relu(jnp.dot(gc, p['wa1'].T, precision=HIGH) + p['ba1']),
                p['wa2'].T, precision=HIGH) + p['ba2'])                      # (C,)
    cls_scores, bbox_preds, rois = [], [], []
    for feat in feats:
        B, C, H, W = feat.shape
        xs = feat * att[None, :, None, None]
        y1 = jnp.einsum('oc,bchw->bohw', p['w1'], xs, precision=HIGH) + p['b1'][None, :, None, None]
        mu, var = y1.mean(axis=(0, 2, 3), keepdims=True), y1.var(axis=(0, 2, 3), keepdims=True)
        z1 = relu((y1 - mu) / jnp.sqrt(var + EPS) * p['g1'][None, :, None, None] + p['bt1'][None, :, None, None])
        y2 = jnp.einsum('oc,bchw->bohw', p['w2'], z1, precision=HIGH) + p['b2'][None, :, None, None]
        mu2, var2 = y2.mean(axis=(0, 2, 3), keepdims=True), y2.var(axis=(0, 2, 3), keepdims=True)
        z2 = (y2 - mu2) / jnp.sqrt(var2 + EPS) * p['g2'][None, :, None, None] + p['bt2'][None, :, None, None]
        roi = jax.lax.conv_general_dilated(
            z2, p['wg'], (1, 1), ((1, 1), (1, 1)),
            dimension_numbers=('NCHW', 'OIHW', 'NCHW'),
            feature_group_count=groups, precision=HIGH) + p['bg'][None, :, None, None]
        x = roi.reshape(B * H * W, C)
        h = relu(jnp.dot(x, p['ws1'].T, precision=HIGH) + p['bs1'])
        h = jnp.dot(h, p['ws2'].T, precision=HIGH) + p['bs2']
        c = relu(jnp.dot(h, p['wc1'].T, precision=HIGH) + p['bc1'])
        c = jnp.dot(c, p['wc2'].T, precision=HIGH) + p['bc2']
        rg = relu(jnp.dot(h, p['wr1'].T, precision=HIGH) + p['br1'])
        rg = jnp.dot(rg, p['wr2'].T, precision=HIGH) + p['br2']
        cls_scores.append(c.reshape(B, H * W, -1))
        bbox_preds.append(rg.reshape(B, H * W, -1))
        rois.append(roi)
    return cls_scores, bbox_preds, rois


if __name__ == "__main__":
    B, C, H, W = 2, 32, 8, 8          # in_channels=32, num_priors = H*W = 64
    num_classes = 2
    refine_layers = 3

    key = jax.random.PRNGKey(0)
    k_feats, k_gc, k_params = jax.random.split(key, 3)
    feats = jax.random.normal(k_feats, (refine_layers, B, C, H, W), jnp.float32)
    # TODO(synk): anchor_generator.grid_anchors is an external prior generator; a
    # deterministic synthetic global-context vector of shape (C,) stands in for it.
    gc = jax.random.normal(k_gc, (C,), jnp.float32)

    params = init_params(k_params, C, num_classes)
    prep = prepare_params(params)            # one-time host-side weight packing
    fwd = make_forward(refine_layers, B, C, H, W, num_classes)

    cls_s, reg_s, roi_s = fwd(feats, gc, prep)
    jax.block_until_ready((cls_s, reg_s, roi_s))

    # Tolerance 2e-2: kernels run bf16 inputs/weights with f32 MXU accumulation and
    # f32 BatchNorm math; the reference runs f32 HIGHEST precision end-to-end.
    ref_cls, ref_reg, ref_roi = reference_forward(
        [feats[l] for l in range(refine_layers)], gc, params)
    for l in range(refine_layers):
        np.testing.assert_allclose(np.asarray(roi_s[l]), np.asarray(ref_roi[l]), rtol=2e-2, atol=2e-2)
        np.testing.assert_allclose(np.asarray(cls_s[l]), np.asarray(ref_cls[l]), rtol=2e-2, atol=2e-2)
        np.testing.assert_allclose(np.asarray(reg_s[l]), np.asarray(ref_reg[l]), rtol=2e-2, atol=2e-2)

    assert cls_s.shape == (refine_layers, B, H * W, num_classes)
    assert reg_s.shape == (refine_layers, B, H * W, 4)
    assert roi_s.shape == (refine_layers, B, C, H, W)
    print("KERNEL_OK")
</pallas_src>

<mosaic_0001>
module attributes {stable_mosaic.version = 11 : i64} {
  func.func @roi_gather_kernel(%arg0: i32, %arg1: memref<1x2x8x8x32xbf16, #tpu.memory_space<vmem>>, %arg2: memref<32x16xbf16, #tpu.memory_space<vmem>>, %arg3: memref<3x16xf32, #tpu.memory_space<vmem>>, %arg4: memref<16x32xbf16, #tpu.memory_space<vmem>>, %arg5: memref<3x32xf32, #tpu.memory_space<vmem>>, %arg6: memref<288x32xbf16, #tpu.memory_space<vmem>>, %arg7: memref<1x32xf32, #tpu.memory_space<vmem>>, %arg8: memref<1x32x128xf32, #tpu.memory_space<vmem>>, %arg9: memref<2x8x8x288xf32, #tpu.memory_space<vmem>>) attributes {dimension_semantics = [#tpu.dimension_semantics<parallel>], iteration_bounds = array<i64: 3>, scalar_prefetch = 0 : i64, scratch_operands = 1 : i64, tpu.core_type = #tpu.core_type<tc>, window_params = [{transform_indices = @transform_0, window_bounds = array<i64: 1, 2, 8, 8, 32>}, {pipeline_mode = #tpu.pipeline_mode<synchronous>, transform_indices = @transform_1, window_bounds = array<i64: 32, 16>}, {pipeline_mode = #tpu.pipeline_mode<synchronous>, transform_indices = @transform_2, window_bounds = array<i64: 3, 16>}, {pipeline_mode = #tpu.pipeline_mode<synchronous>, transform_indices = @transform_3, window_bounds = array<i64: 16, 32>}, {pipeline_mode = #tpu.pipeline_mode<synchronous>, transform_indices = @transform_4, window_bounds = array<i64: 3, 32>}, {pipeline_mode = #tpu.pipeline_mode<synchronous>, transform_indices = @transform_5, window_bounds = array<i64: 288, 32>}, {pipeline_mode = #tpu.pipeline_mode<synchronous>, transform_indices = @transform_6, window_bounds = array<i64: 1, 32>}, {transform_indices = @transform_7, window_bounds = array<i64: 1, 32, 128>}]} {
    %c0 = arith.constant 0 : index
    %c0_0 = arith.constant 0 : index
    %c0_1 = arith.constant 0 : index
    %c0_2 = arith.constant 0 : index
    %c0_3 = arith.constant 0 : index
    %0 = vector.load %arg1[%c0, %c0_0, %c0_1, %c0_2, %c0_3] : memref<1x2x8x8x32xbf16, #tpu.memory_space<vmem>>, vector<1x2x8x8x32xbf16>
    %1 = vector.shape_cast %0 : vector<1x2x8x8x32xbf16> to vector<2x8x8x32xbf16>
    %2 = vector.shape_cast %1 : vector<2x8x8x32xbf16> to vector<128x32xbf16>
    %c0_4 = arith.constant 0 : index
    %c0_5 = arith.constant 0 : index
    %3 = vector.load %arg2[%c0_4, %c0_5] : memref<32x16xbf16, #tpu.memory_space<vmem>>, vector<32x16xbf16>
    %cst = arith.constant dense<0.000000e+00> : vector<128x16xf32>
    %4 = tpu.matmul %2, %3, %cst {dimension_numbers = #tpu.dot_dimension_numbers<[1], [0], [0], [1], [0, 0, 1, 1], [], []>} : vector<128x32xbf16>, vector<32x16xbf16>, vector<128x16xf32> -> vector<128x16xf32>
    %c0_6 = arith.constant 0 : index
    %c0_7 = arith.constant 0 : index
    %5 = vector.load %arg3[%c0_6, %c0_7] : memref<3x16xf32, #tpu.memory_space<vmem>>, vector<1x16xf32>
    %6 = vector.broadcast %5 : vector<1x16xf32> to vector<128x16xf32>
    %7 = arith.addf %4, %6 : vector<128x16xf32>
    %cst_8 = arith.constant dense<0.000000e+00> : vector<16xf32>
    %8 = vector.multi_reduction <add>, %7, %cst_8 [0] : vector<128x16xf32> to vector<16xf32>
    %9 = vector.shape_cast %8 : vector<16xf32> to vector<1x16xf32>
    %cst_9 = arith.constant 1.280000e+02 : f32
    %10 = vector.broadcast %cst_9 : f32 to vector<1x16xf32>
    %11 = arith.divf %9, %10 : vector<1x16xf32>
    %12 = vector.broadcast %11 : vector<1x16xf32> to vector<128x16xf32>
    %13 = arith.subf %7, %12 : vector<128x16xf32>
    %14 = arith.mulf %13, %13 : vector<128x16xf32>
    %cst_10 = arith.constant dense<0.000000e+00> : vector<16xf32>
    %15 = vector.multi_reduction <add>, %14, %cst_10 [0] : vector<128x16xf32> to vector<16xf32>
    %16 = vector.shape_cast %15 : vector<16xf32> to vector<1x16xf32>
    %cst_11 = arith.constant 1.280000e+02 : f32
    %17 = vector.broadcast %cst_11 : f32 to vector<1x16xf32>
    %18 = arith.divf %16, %17 : vector<1x16xf32>
    %19 = vector.broadcast %11 : vector<1x16xf32> to vector<128x16xf32>
    %20 = arith.subf %7, %19 : vector<128x16xf32>
    %cst_12 = arith.constant 9.99999974E-6 : f32
    %21 = vector.broadcast %cst_12 : f32 to vector<1x16xf32>
    %22 = arith.addf %18, %21 : vector<1x16xf32>
    %23 = math.rsqrt %22 : vector<1x16xf32>
    %24 = vector.broadcast %23 : vector<1x16xf32> to vector<128x16xf32>
    %25 = arith.mulf %20, %24 : vector<128x16xf32>
    %c1 = arith.constant 1 : index
    %c0_13 = arith.constant 0 : index
    %26 = vector.load %arg3[%c1, %c0_13] : memref<3x16xf32, #tpu.memory_space<vmem>>, vector<1x16xf32>
    %27 = vector.broadcast %26 : vector<1x16xf32> to vector<128x16xf32>
    %28 = arith.mulf %25, %27 : vector<128x16xf32>
    %c2 = arith.constant 2 : index
    %c0_14 = arith.constant 0 : index
    %29 = vector.load %arg3[%c2, %c0_14] : memref<3x16xf32, #tpu.memory_space<vmem>>, vector<1x16xf32>
    %30 = vector.broadcast %29 : vector<1x16xf32> to vector<128x16xf32>
    %31 = arith.addf %28, %30 : vector<128x16xf32>
    %cst_15 = arith.constant 0.000000e+00 : f32
    %32 = vector.broadcast %cst_15 : f32 to vector<128x16xf32>
    %33 = arith.maximumf %31, %32 : vector<128x16xf32>
    %34 = arith.truncf %33 : vector<128x16xf32> to vector<128x16xbf16>
    %c0_16 = arith.constant 0 : index
    %c0_17 = arith.constant 0 : index
    %35 = vector.load %arg4[%c0_16, %c0_17] : memref<16x32xbf16, #tpu.memory_space<vmem>>, vector<16x32xbf16>
    %cst_18 = arith.constant dense<0.000000e+00> : vector<128x32xf32>
    %36 = tpu.matmul %34, %35, %cst_18 {dimension_numbers = #tpu.dot_dimension_numbers<[1], [0], [0], [1], [0, 0, 1, 1], [], []>} : vector<128x16xbf16>, vector<16x32xbf16>, vector<128x32xf32> -> vector<128x32xf32>
    %c0_19 = arith.constant 0 : index
    %c0_20 = arith.constant 0 : index
    %37 = vector.load %arg5[%c0_19, %c0_20] : memref<3x32xf32, #tpu.memory_space<vmem>>, vector<1x32xf32>
    %38 = vector.broadcast %37 : vector<1x32xf32> to vector<128x32xf32>
    %39 = arith.addf %36, %38 : vector<128x32xf32>
    %cst_21 = arith.constant dense<0.000000e+00> : vector<32xf32>
    %40 = vector.multi_reduction <add>, %39, %cst_21 [0] : vector<128x32xf32> to vector<32xf32>
    %41 = vector.shape_cast %40 : vector<32xf32> to vector<1x32xf32>
    %cst_22 = arith.constant 1.280000e+02 : f32
    %42 = vector.broadcast %cst_22 : f32 to vector<1x32xf32>
    %43 = arith.divf %41, %42 : vector<1x32xf32>
    %44 = vector.broadcast %43 : vector<1x32xf32> to vector<128x32xf32>
    %45 = arith.subf %39, %44 : vector<128x32xf32>
    %46 = arith.mulf %45, %45 : vector<128x32xf32>
    %cst_23 = arith.constant dense<0.000000e+00> : vector<32xf32>
    %47 = vector.multi_reduction <add>, %46, %cst_23 [0] : vector<128x32xf32> to vector<32xf32>
    %48 = vector.shape_cast %47 : vector<32xf32> to vector<1x32xf32>
    %cst_24 = arith.constant 1.280000e+02 : f32
    %49 = vector.broadcast %cst_24 : f32 to vector<1x32xf32>
    %50 = arith.divf %48, %49 : vector<1x32xf32>
    %51 = vector.broadcast %43 : vector<1x32xf32> to vector<128x32xf32>
    %52 = arith.subf %39, %51 : vector<128x32xf32>
    %cst_25 = arith.constant 9.99999974E-6 : f32
    %53 = vector.broadcast %cst_25 : f32 to vector<1x32xf32>
    %54 = arith.addf %50, %53 : vector<1x32xf32>
    %55 = math.rsqrt %54 : vector<1x32xf32>
    %56 = vector.broadcast %55 : vector<1x32xf32> to vector<128x32xf32>
    %57 = arith.mulf %52, %56 : vector<128x32xf32>
    %c1_26 = arith.constant 1 : index
    %c0_27 = arith.constant 0 : index
    %58 = vector.load %arg5[%c1_26, %c0_27] : memref<3x32xf32, #tpu.memory_space<vmem>>, vector<1x32xf32>
    %59 = vector.broadcast %58 : vector<1x32xf32> to vector<128x32xf32>
    %60 = arith.mulf %57, %59 : vector<128x32xf32>
    %c2_28 = arith.constant 2 : index
    %c0_29 = arith.constant 0 : index
    %61 = vector.load %arg5[%c2_28, %c0_29] : memref<3x32xf32, #tpu.memory_space<vmem>>, vector<1x32xf32>
    %62 = vector.broadcast %61 : vector<1x32xf32> to vector<128x32xf32>
    %63 = arith.addf %60, %62 : vector<128x32xf32>
    %64 = vector.shape_cast %63 : vector<128x32xf32> to vector<2x8x8x32xf32>
    %cst_30 = arith.constant 0.000000e+00 : f32
    %65 = vector.broadcast %cst_30 : f32 to vector<2x8x8x288xf32>
    %c0_31 = arith.constant 0 : index
    %c0_32 = arith.constant 0 : index
    %c0_33 = arith.constant 0 : index
    %c0_34 = arith.constant 0 : index
    %66 = vector.load %arg9[%c0_31, %c0_32, %c0_33, %c0_34] : memref<2x8x8x288xf32, #tpu.memory_space<vmem>>, vector<2x8x8x288xf32>
    tpu.vector_store %arg9[%c0_31, %c0_32, %c0_33, %c0_34], %65 {strides = array<i32>} : memref<2x8x8x288xf32, #tpu.memory_space<vmem>>, vector<2x8x8x288xf32>,
    %67 = vector.extract_strided_slice %64 {offsets = [0, 0, 0, 0], sizes = [2, 7, 7, 32], strides = [1, 1, 1, 1]} : vector<2x8x8x32xf32> to vector<2x7x7x32xf32>
    %c0_35 = arith.constant 0 : index
    %c1_36 = arith.constant 1 : index
    %c1_37 = arith.constant 1 : index
    %c0_38 = arith.constant 0 : index
    %68 = vector.load %arg9[%c0_35, %c1_36, %c1_37, %c0_38] : memref<2x8x8x288xf32, #tpu.memory_space<vmem>>, vector<2x7x7x32xf32>
    tpu.vector_store %arg9[%c0_35, %c1_36, %c1_37, %c0_38], %67 {strides = array<i32>} : memref<2x8x8x288xf32, #tpu.memory_space<vmem>>, vector<2x7x7x32xf32>,
    %69 = vector.extract_strided_slice %64 {offsets = [0, 0, 0, 0], sizes = [2, 7, 8, 32], strides = [1, 1, 1, 1]} : vector<2x8x8x32xf32> to vector<2x7x8x32xf32>
    %c0_39 = arith.constant 0 : index
    %c1_40 = arith.constant 1 : index
    %c0_41 = arith.constant 0 : index
    %c32 = arith.constant 32 : index
    %70 = vector.load %arg9[%c0_39, %c1_40, %c0_41, %c32] : memref<2x8x8x288xf32, #tpu.memory_space<vmem>>, vector<2x7x8x32xf32>
    tpu.vector_store %arg9[%c0_39, %c1_40, %c0_41, %c32], %69 {strides = array<i32>} : memref<2x8x8x288xf32, #tpu.memory_space<vmem>>, vector<2x7x8x32xf32>,
    %71 = vector.extract_strided_slice %64 {offsets = [0, 0, 1, 0], sizes = [2, 7, 7, 32], strides = [1, 1, 1, 1]} : vector<2x8x8x32xf32> to vector<2x7x7x32xf32>
    %c0_42 = arith.constant 0 : index
    %c1_43 = arith.constant 1 : index
    %c0_44 = arith.constant 0 : index
    %c64 = arith.constant 64 : index
    %72 = vector.load %arg9[%c0_42, %c1_43, %c0_44, %c64] : memref<2x8x8x288xf32, #tpu.memory_space<vmem>>, vector<2x7x7x32xf32>
    tpu.vector_store %arg9[%c0_42, %c1_43, %c0_44, %c64], %71 {strides = array<i32>} : memref<2x8x8x288xf32, #tpu.memory_space<vmem>>, vector<2x7x7x32xf32>,
    %73 = vector.extract_strided_slice %64 {offsets = [0, 0, 0, 0], sizes = [2, 8, 7, 32], strides = [1, 1, 1, 1]} : vector<2x8x8x32xf32> to vector<2x8x7x32xf32>
    %c0_45 = arith.constant 0 : index
    %c0_46 = arith.constant 0 : index
    %c1_47 = arith.constant 1 : index
    %c96 = arith.constant 96 : index
    %74 = vector.load %arg9[%c0_45, %c0_46, %c1_47, %c96] : memref<2x8x8x288xf32, #tpu.memory_space<vmem>>, vector<2x8x7x32xf32>
    tpu.vector_store %arg9[%c0_45, %c0_46, %c1_47, %c96], %73 {strides = array<i32>} : memref<2x8x8x288xf32, #tpu.memory_space<vmem>>, vector<2x8x7x32xf32>,
    %c0_48 = arith.constant 0 : index
    %c0_49 = arith.constant 0 : index
    %c0_50 = arith.constant 0 : index
    %c128 = arith.constant 128 : index
    %75 = vector.load %arg9[%c0_48, %c0_49, %c0_50, %c128] : memref<2x8x8x288xf32, #tpu.memory_space<vmem>>, vector<2x8x8x32xf32>
    tpu.vector_store %arg9[%c0_48, %c0_49, %c0_50, %c128], %64 {strides = array<i32>} : memref<2x8x8x288xf32, #tpu.memory_space<vmem>>, vector<2x8x8x32xf32>,
    %76 = vector.extract_strided_slice %64 {offsets = [0, 0, 1, 0], sizes = [2, 8, 7, 32], strides = [1, 1, 1, 1]} : vector<2x8x8x32xf32> to vector<2x8x7x32xf32>
    %c0_51 = arith.constant 0 : index
    %c0_52 = arith.constant 0 : index
    %c0_53 = arith.constant 0 : index
    %c160 = arith.constant 160 : index
    %77 = vector.load %arg9[%c0_51, %c0_52, %c0_53, %c160] : memref<2x8x8x288xf32, #tpu.memory_space<vmem>>, vector<2x8x7x32xf32>
    tpu.vector_store %arg9[%c0_51, %c0_52, %c0_53, %c160], %76 {strides = array<i32>} : memref<2x8x8x288xf32, #tpu.memory_space<vmem>>, vector<2x8x7x32xf32>,
    %78 = vector.extract_strided_slice %64 {offsets = [0, 1, 0, 0], sizes = [2, 7, 7, 32], strides = [1, 1, 1, 1]} : vector<2x8x8x32xf32> to vector<2x7x7x32xf32>
    %c0_54 = arith.constant 0 : index
    %c0_55 = arith.constant 0 : index
    %c1_56 = arith.constant 1 : index
    %c192 = arith.constant 192 : index
    %79 = vector.load %arg9[%c0_54, %c0_55, %c1_56, %c192] : memref<2x8x8x288xf32, #tpu.memory_space<vmem>>, vector<2x7x7x32xf32>
    tpu.vector_store %arg9[%c0_54, %c0_55, %c1_56, %c192], %78 {strides = array<i32>} : memref<2x8x8x288xf32, #tpu.memory_space<vmem>>, vector<2x7x7x32xf32>,
    %80 = vector.extract_strided_slice %64 {offsets = [0, 1, 0, 0], sizes = [2, 7, 8, 32], strides = [1, 1, 1, 1]} : vector<2x8x8x32xf32> to vector<2x7x8x32xf32>
    %c0_57 = arith.constant 0 : index
    %c0_58 = arith.constant 0 : index
    %c0_59 = arith.constant 0 : index
    %c224 = arith.constant 224 : index
    %81 = vector.load %arg9[%c0_57, %c0_58, %c0_59, %c224] : memref<2x8x8x288xf32, #tpu.memory_space<vmem>>, vector<2x7x8x32xf32>
    tpu.vector_store %arg9[%c0_57, %c0_58, %c0_59, %c224], %80 {strides = array<i32>} : memref<2x8x8x288xf32, #tpu.memory_space<vmem>>, vector<2x7x8x32xf32>,
    %82 = vector.extract_strided_slice %64 {offsets = [0, 1, 1, 0], sizes = [2, 7, 7, 32], strides = [1, 1, 1, 1]} : vector<2x8x8x32xf32> to vector<2x7x7x32xf32>
    %c0_60 = arith.constant 0 : index
    %c0_61 = arith.constant 0 : index
    %c0_62 = arith.constant 0 : index
    %c256 = arith.constant 256 : index
    %83 = vector.load %arg9[%c0_60, %c0_61, %c0_62, %c256] : memref<2x8x8x288xf32, #tpu.memory_space<vmem>>, vector<2x7x7x32xf32>
    tpu.vector_store %arg9[%c0_60, %c0_61, %c0_62, %c256], %82 {strides = array<i32>} : memref<2x8x8x288xf32, #tpu.memory_space<vmem>>, vector<2x7x7x32xf32>,
    %c0_63 = arith.constant 0 : index
    %c0_64 = arith.constant 0 : index
    %c0_65 = arith.constant 0 : index
    %c0_66 = arith.constant 0 : index
    %84 = vector.load %arg9[%c0_63, %c0_64, %c0_65, %c0_66] : memref<2x8x8x288xf32, #tpu.memory_space<vmem>>, vector<2x8x8x288xf32>
    %85 = vector.shape_cast %84 : vector<2x8x8x288xf32> to vector<128x288xf32>
    %86 = arith.truncf %85 : vector<128x288xf32> to vector<128x288xbf16>
    %c0_67 = arith.constant 0 : index
    %c0_68 = arith.constant 0 : index
    %87 = vector.load %arg6[%c0_67, %c0_68] : memref<288x32xbf16, #tpu.memory_space<vmem>>, vector<288x32xbf16>
    %cst_69 = arith.constant dense<0.000000e+00> : vector<128x32xf32>
    %88 = tpu.matmul %86, %87, %cst_69 {dimension_numbers = #tpu.dot_dimension_numbers<[1], [0], [0], [1], [0, 0, 1, 1], [], []>} : vector<128x288xbf16>, vector<288x32xbf16>, vector<128x32xf32> -> vector<128x32xf32>
    %c0_70 = arith.constant 0 : index
    %c0_71 = arith.constant 0 : index
    %89 = vector.load %arg7[%c0_70, %c0_71] : memref<1x32xf32, #tpu.memory_space<vmem>>, vector<1x32xf32>
    %90 = vector.broadcast %89 : vector<1x32xf32> to vector<128x32xf32>
    %91 = arith.addf %88, %90 : vector<128x32xf32>
    %92 = tpu.transpose %91, [1, 0] : vector<128x32xf32> -> vector<32x128xf32>
    %c0_72 = arith.constant 0 : index
    %c0_73 = arith.constant 0 : index
    %c0_74 = arith.constant 0 : index
    %93 = vector.load %arg8[%c0_72, %c0_73, %c0_74] : memref<1x32x128xf32, #tpu.memory_space<vmem>>, vector<1x32x128xf32>
    %94 = vector.shape_cast %93 : vector<1x32x128xf32> to vector<32x128xf32>
    %95 = vector.shape_cast %92 : vector<32x128xf32> to vector<1x32x128xf32>
    tpu.vector_store %arg8[%c0_72, %c0_73, %c0_74], %95 {strides = array<i32>} : memref<1x32x128xf32, #tpu.memory_space<vmem>>, vector<1x32x128xf32>,
    return
  }
  func.func @transform_0(%arg0: i32) -> (i32, i32, i32, i32, i32) {
    %c0_i32 = arith.constant 0 : i32
    %c0_i32_0 = arith.constant 0 : i32
    %c0_i32_1 = arith.constant 0 : i32
    %c0_i32_2 = arith.constant 0 : i32
    %c0_i32_3 = arith.constant 0 : i32
    return %arg0, %c0_i32, %c0_i32_0, %c0_i32_1, %c0_i32_2 : i32, i32, i32, i32, i32
  }
  func.func @transform_1(%arg0: i32) -> (i32, i32) {
    %c0_i32 = arith.constant 0 : i32
    %c0_i32_0 = arith.constant 0 : i32
    %c0_i32_1 = arith.constant 0 : i32
    return %c0_i32, %c0_i32_0 : i32, i32
  }
  func.func @transform_2(%arg0: i32) -> (i32, i32) {
    %c0_i32 = arith.constant 0 : i32
    %c0_i32_0 = arith.constant 0 : i32
    %c0_i32_1 = arith.constant 0 : i32
    return %c0_i32, %c0_i32_0 : i32, i32
  }
  func.func @transform_3(%arg0: i32) -> (i32, i32) {
    %c0_i32 = arith.constant 0 : i32
    %c0_i32_0 = arith.constant 0 : i32
    %c0_i32_1 = arith.constant 0 : i32
    return %c0_i32, %c0_i32_0 : i32, i32
  }
  func.func @transform_4(%arg0: i32) -> (i32, i32) {
    %c0_i32 = arith.constant 0 : i32
    %c0_i32_0 = arith.constant 0 : i32
    %c0_i32_1 = arith.constant 0 : i32
    return %c0_i32, %c0_i32_0 : i32, i32
  }
  func.func @transform_5(%arg0: i32) -> (i32, i32) {
    %c0_i32 = arith.constant 0 : i32
    %c0_i32_0 = arith.constant 0 : i32
    %c0_i32_1 = arith.constant 0 : i32
    return %c0_i32, %c0_i32_0 : i32, i32
  }
  func.func @transform_6(%arg0: i32) -> (i32, i32) {
    %c0_i32 = arith.constant 0 : i32
    %c0_i32_0 = arith.constant 0 : i32
    %c0_i32_1 = arith.constant 0 : i32
    return %c0_i32, %c0_i32_0 : i32, i32
  }
  func.func @transform_7(%arg0: i32) -> (i32, i32, i32) {
    %c0_i32 = arith.constant 0 : i32
    %c0_i32_0 = arith.constant 0 : i32
    %c0_i32_1 = arith.constant 0 : i32
    return %arg0, %c0_i32, %c0_i32_0 : i32, i32, i32
  }
}

module attributes {stable_mosaic.version = 11 : i64} {
  func.func @head_kernel(%arg0: memref<384x32xbf16, #tpu.memory_space<vmem>>, %arg1: memref<32x16xbf16, #tpu.memory_space<vmem>>, %arg2: memref<16x16xbf16, #tpu.memory_space<vmem>>, %arg3: memref<16x16xbf16, #tpu.memory_space<vmem>>, %arg4: memref<16x128xbf16, #tpu.memory_space<vmem>>, %arg5: memref<3x16xf32, #tpu.memory_space<vmem>>, %arg6: memref<1x128xf32, #tpu.memory_space<vmem>>, %arg7: memref<384x128xf32, #tpu.memory_space<vmem>>) attributes {dimension_semantics = [], scalar_prefetch = 0 : i64, scratch_operands = 0 : i64, tpu.core_type = #tpu.core_type<tc>} {
    %c0 = arith.constant 0 : index
    %c0_0 = arith.constant 0 : index
    %0 = vector.load %arg0[%c0, %c0_0] : memref<384x32xbf16, #tpu.memory_space<vmem>>, vector<384x32xbf16>
    %c0_1 = arith.constant 0 : index
    %c0_2 = arith.constant 0 : index
    %1 = vector.load %arg1[%c0_1, %c0_2] : memref<32x16xbf16, #tpu.memory_space<vmem>>, vector<32x16xbf16>
    %cst = arith.constant dense<0.000000e+00> : vector<384x16xf32>
    %2 = tpu.matmul %0, %1, %cst {dimension_numbers = #tpu.dot_dimension_numbers<[1], [0], [0], [1], [0, 0, 1, 1], [], []>} : vector<384x32xbf16>, vector<32x16xbf16>, vector<384x16xf32> -> vector<384x16xf32>
    %c0_3 = arith.constant 0 : index
    %c0_4 = arith.constant 0 : index
    %3 = vector.load %arg5[%c0_3, %c0_4] : memref<3x16xf32, #tpu.memory_space<vmem>>, vector<1x16xf32>
    %4 = vector.broadcast %3 : vector<1x16xf32> to vector<384x16xf32>
    %5 = arith.addf %2, %4 : vector<384x16xf32>
    %cst_5 = arith.constant 0.000000e+00 : f32
    %6 = vector.broadcast %cst_5 : f32 to vector<384x16xf32>
    %7 = arith.maximumf %5, %6 : vector<384x16xf32>
    %8 = arith.truncf %7 : vector<384x16xf32> to vector<384x16xbf16>
    %c0_6 = arith.constant 0 : index
    %c0_7 = arith.constant 0 : index
    %9 = vector.load %arg2[%c0_6, %c0_7] : memref<16x16xbf16, #tpu.memory_space<vmem>>, vector<16x16xbf16>
    %cst_8 = arith.constant dense<0.000000e+00> : vector<384x16xf32>
    %10 = tpu.matmul %8, %9, %cst_8 {dimension_numbers = #tpu.dot_dimension_numbers<[1], [0], [0], [1], [0, 0, 1, 1], [], []>} : vector<384x16xbf16>, vector<16x16xbf16>, vector<384x16xf32> -> vector<384x16xf32>
    %c1 = arith.constant 1 : index
    %c0_9 = arith.constant 0 : index
    %11 = vector.load %arg5[%c1, %c0_9] : memref<3x16xf32, #tpu.memory_space<vmem>>, vector<1x16xf32>
    %12 = vector.broadcast %11 : vector<1x16xf32> to vector<384x16xf32>
    %13 = arith.addf %10, %12 : vector<384x16xf32>
    %14 = arith.truncf %13 : vector<384x16xf32> to vector<384x16xbf16>
    %c0_10 = arith.constant 0 : index
    %c0_11 = arith.constant 0 : index
    %15 = vector.load %arg3[%c0_10, %c0_11] : memref<16x16xbf16, #tpu.memory_space<vmem>>, vector<16x16xbf16>
    %cst_12 = arith.constant dense<0.000000e+00> : vector<384x16xf32>
    %16 = tpu.matmul %14, %15, %cst_12 {dimension_numbers = #tpu.dot_dimension_numbers<[1], [0], [0], [1], [0, 0, 1, 1], [], []>} : vector<384x16xbf16>, vector<16x16xbf16>, vector<384x16xf32> -> vector<384x16xf32>
    %c2 = arith.constant 2 : index
    %c0_13 = arith.constant 0 : index
    %17 = vector.load %arg5[%c2, %c0_13] : memref<3x16xf32, #tpu.memory_space<vmem>>, vector<1x16xf32>
    %18 = vector.broadcast %17 : vector<1x16xf32> to vector<384x16xf32>
    %19 = arith.addf %16, %18 : vector<384x16xf32>
    %cst_14 = arith.constant 0.000000e+00 : f32
    %20 = vector.broadcast %cst_14 : f32 to vector<384x16xf32>
    %21 = arith.maximumf %19, %20 : vector<384x16xf32>
    %22 = arith.truncf %21 : vector<384x16xf32> to vector<384x16xbf16>
    %c0_15 = arith.constant 0 : index
    %c0_16 = arith.constant 0 : index
    %23 = vector.load %arg4[%c0_15, %c0_16] : memref<16x128xbf16, #tpu.memory_space<vmem>>, vector<16x128xbf16>
    %cst_17 = arith.constant dense<0.000000e+00> : vector<384x128xf32>
    %24 = tpu.matmul %22, %23, %cst_17 {dimension_numbers = #tpu.dot_dimension_numbers<[1], [0], [0], [1], [0, 0, 1, 1], [], []>} : vector<384x16xbf16>, vector<16x128xbf16>, vector<384x128xf32> -> vector<384x128xf32>
    %c0_18 = arith.constant 0 : index
    %c0_19 = arith.constant 0 : index
    %25 = vector.load %arg6[%c0_18, %c0_19] : memref<1x128xf32, #tpu.memory_space<vmem>>, vector<1x128xf32>
    %26 = vector.broadcast %25 : vector<1x128xf32> to vector<384x128xf32>
    %27 = arith.addf %24, %26 : vector<384x128xf32>
    %c0_20 = arith.constant 0 : index
    %c0_21 = arith.constant 0 : index
    %28 = vector.load %arg7[%c0_20, %c0_21] : memref<384x128xf32, #tpu.memory_space<vmem>>, vector<384x128xf32>
    tpu.vector_store %arg7[%c0_20, %c0_21], %27 {strides = array<i32>} : memref<384x128xf32, #tpu.memory_space<vmem>>, vector<384x128xf32>,
    return
  }
}

</mosaic_0001>

<llo_original>
// kernel: forward.3
$region0: #{forward.3}
  #allocation0 [shape = 'u32[]', space=smem, size = 0x4, offset = 0x4, fixed_abs, tag = 'smem constant byte address 0x4 - core index']
  #allocation1 [shape = 'u32[144,128]{1,0:T(1,128)}', space=vmem, size = 0x12000, scoped, tag = 'internal scratch']
  %s0 = inlined_call_operand.vmem [shape: bf16[384,32], index: 0, kind: input, shape index: {}]
  %s1 = inlined_call_operand.vmem [shape: bf16[32,16], index: 1, kind: input, shape index: {}]
  %s2 = inlined_call_operand.vmem [shape: bf16[16,16], index: 2, kind: input, shape index: {}]
  %s3 = inlined_call_operand.vmem [shape: bf16[16,16], index: 3, kind: input, shape index: {}]
  %s4 = inlined_call_operand.vmem [shape: bf16[16,128], index: 4, kind: input, shape index: {}]
  %s5 = inlined_call_operand.vmem [shape: f32[3,16], index: 5, kind: input, shape index: {}]
  %s6 = inlined_call_operand.vmem [shape: f32[1,128], index: 6, kind: input, shape index: {}]
  %s7 = inlined_call_operand.vmem [shape: f32[384,128], index: 7, kind: output, shape index: {}]
  %s8 = sld [smem:[#allocation0]]
  $region38: #{forward.3} parent=0
    _
  %s10 = ssub.s32 1, %s8
  %s11 = scalar_select 0, %s10, %s8
  // Predicated region
  $region2: #{forward.3} parent=0 // pred_check
    _
  $region3: #{forward.3} parent=0 // pred_check_branch
    %13 = sbr.rel (0) target = $region5
  $region4: #{forward.3} parent=0 // pred_region
    _
  $region5: #{forward.3} parent=0 // pred_fallthru
    _
  // Predicated region
  $region6: #{forward.3} parent=0 // pred_check
    _
  $region7: #{forward.3} parent=0 // pred_check_branch
    %15 = sbr.rel (0) target = $region9
  $region8: #{forward.3} parent=0 // pred_region
    _
  $region9: #{forward.3} parent=0 // pred_fallthru
    _
  // Predicated region
  $region10: #{forward.3} parent=0 // pred_check
    _
  $region11: #{forward.3} parent=0 // pred_check_branch
    %17 = sbr.rel (0) target = $region13
  $region12: #{forward.3} parent=0 // pred_region
    _
  $region13: #{forward.3} parent=0 // pred_fallthru
    _
  // Predicated region
  $region14: #{forward.3} parent=0 // pred_check
    _
  $region15: #{forward.3} parent=0 // pred_check_branch
    %19 = sbr.rel (0) target = $region17
  $region16: #{forward.3} parent=0 // pred_region
    _
  $region17: #{forward.3} parent=0 // pred_fallthru
    _
  // Predicated region
  $region18: #{forward.3} parent=0 // pred_check
    _
  $region19: #{forward.3} parent=0 // pred_check_branch
    %21 = sbr.rel (0) target = $region21
  $region20: #{forward.3} parent=0 // pred_region
    _
  $region21: #{forward.3} parent=0 // pred_fallthru
    _
  // Predicated region
  $region22: #{forward.3} parent=0 // pred_check
    _
  $region23: #{forward.3} parent=0 // pred_check_branch
    %23 = sbr.rel (0) target = $region25
  $region24: #{forward.3} parent=0 // pred_region
    _
  $region25: #{forward.3} parent=0 // pred_fallthru
    _
  // Predicated region
  $region26: #{forward.3} parent=0 // pred_check
    _
  $region27: #{forward.3} parent=0 // pred_check_branch
    %25 = sbr.rel (0) target = $region29
  $region28: #{forward.3} parent=0 // pred_region
    _
  $region29: #{forward.3} parent=0 // pred_fallthru
    _
  %v27 = vld [vmem:[%s0] sm:$0xf]
  %v28 = vld [vmem:[%s0 + $0x4] sm:$0xf]
  %v29 = vld [vmem:[%s0 + $0x8] sm:$0xf]
  %v30 = vld [vmem:[%s0 + $0xc] sm:$0xf]
  %v31 = vld [vmem:[%s0 + $0x10] sm:$0xf]
  %v32 = vld [vmem:[%s0 + $0x14] sm:$0xf]
  %v33 = vld [vmem:[%s0 + $0x18] sm:$0xf]
  %v34 = vld [vmem:[%s0 + $0x1c] sm:$0xf]
  %v35 = vld [vmem:[%s0 + $0x20] sm:$0xf]
  %v36 = vld [vmem:[%s0 + $0x24] sm:$0xf]
  %v37 = vld [vmem:[%s0 + $0x28] sm:$0xf]
  %v38 = vld [vmem:[%s0 + $0x2c] sm:$0xf]
  %v39 = vld [vmem:[%s0 + $0x30] sm:$0xf]
  %v40 = vld [vmem:[%s0 + $0x34] sm:$0xf]
  %v41 = vld [vmem:[%s0 + $0x38] sm:$0xf]
  %v42 = vld [vmem:[%s0 + $0x3c] sm:$0xf]
  %v43 = vld [vmem:[%s0 + $0x40] sm:$0xf]
  %v44 = vld [vmem:[%s0 + $0x44] sm:$0xf]
  %v45 = vld [vmem:[%s0 + $0x48] sm:$0xf]
  %v46 = vld [vmem:[%s0 + $0x4c] sm:$0xf]
  %v47 = vld [vmem:[%s0 + $0x50] sm:$0xf]
  %v48 = vld [vmem:[%s0 + $0x54] sm:$0xf]
  %v49 = vld [vmem:[%s0 + $0x58] sm:$0xf]
  %v50 = vld [vmem:[%s0 + $0x5c] sm:$0xf]
  %v51 = vld [vmem:[%s0 + $0x60] sm:$0xf]
  %v52 = vld [vmem:[%s0 + $0x64] sm:$0xf]
  %v53 = vld [vmem:[%s0 + $0x68] sm:$0xf]
  %v54 = vld [vmem:[%s0 + $0x6c] sm:$0xf]
  %v55 = vld [vmem:[%s0 + $0x70] sm:$0xf]
  %v56 = vld [vmem:[%s0 + $0x74] sm:$0xf]
  %v57 = vld [vmem:[%s0 + $0x78] sm:$0xf]
  %v58 = vld [vmem:[%s0 + $0x7c] sm:$0xf]
  %v59 = vld [vmem:[%s0 + $0x80] sm:$0xf]
  %v60 = vld [vmem:[%s0 + $0x84] sm:$0xf]
  %v61 = vld [vmem:[%s0 + $0x88] sm:$0xf]
  %v62 = vld [vmem:[%s0 + $0x8c] sm:$0xf]
  %v63 = vld [vmem:[%s0 + $0x90] sm:$0xf]
  %v64 = vld [vmem:[%s0 + $0x94] sm:$0xf]
  %v65 = vld [vmem:[%s0 + $0x98] sm:$0xf]
  %v66 = vld [vmem:[%s0 + $0x9c] sm:$0xf]
  %v67 = vld [vmem:[%s0 + $0xa0] sm:$0xf]
  %v68 = vld [vmem:[%s0 + $0xa4] sm:$0xf]
  %v69 = vld [vmem:[%s0 + $0xa8] sm:$0xf]
  %v70 = vld [vmem:[%s0 + $0xac] sm:$0xf]
  %v71 = vld [vmem:[%s0 + $0xb0] sm:$0xf]
  %v72 = vld [vmem:[%s0 + $0xb4] sm:$0xf]
  %v73 = vld [vmem:[%s0 + $0xb8] sm:$0xf]
  %v74 = vld [vmem:[%s0 + $0xbc] sm:$0xf]
  %v75 = vld [vmem:[%s1] sm:$0xf]
  %v76 = vld [vmem:[%s1 + $0x4] sm:$0xf]
  %v77 = vld [vmem:[%s1 + $0x8] sm:$0xf]
  %v78 = vld [vmem:[%s1 + $0xc] sm:$0xf]
  %v79 = vld [vmem:[%s5] sm:$0x1]
  %v80 = vlaneseq
  %v81 = vshrl.u32 %v80, 7
  %v82 = vsub.s32 0, %v81
  %v83 = vrot.slane %v79, %v82
  %v132 = vunpack.c.l.b16 %v27
  %v133 = vunpack.c.l.b16 %v28
  %v134 = vunpack.c.l.b16 %v29
  %v135 = vunpack.c.l.b16 %v30
  %v136 = vunpack.c.l.b16 %v31
  %v137 = vunpack.c.l.b16 %v32
  %v138 = vunpack.c.l.b16 %v33
  %v139 = vunpack.c.l.b16 %v34
  %v140 = vunpack.c.l.b16 %v35
  %v141 = vunpack.c.l.b16 %v36
  %v142 = vunpack.c.l.b16 %v37
  %v143 = vunpack.c.l.b16 %v38
  %v144 = vunpack.c.l.b16 %v39
  %v145 = vunpack.c.l.b16 %v40
  %v146 = vunpack.c.l.b16 %v41
  %v147 = vunpack.c.l.b16 %v42
  %v148 = vunpack.c.l.b16 %v43
  %v149 = vunpack.c.l.b16 %v44
  %v150 = vunpack.c.l.b16 %v45
  %v151 = vunpack.c.l.b16 %v46
  %v152 = vunpack.c.l.b16 %v47
  %v153 = vunpack.c.l.b16 %v48
  %v154 = vunpack.c.l.b16 %v49
  %v155 = vunpack.c.l.b16 %v50
  %v156 = vunpack.c.l.b16 %v51
  %v157 = vunpack.c.l.b16 %v52
  %v158 = vunpack.c.l.b16 %v53
  %v159 = vunpack.c.l.b16 %v54
  %v160 = vunpack.c.l.b16 %v55
  %v161 = vunpack.c.l.b16 %v56
  %v162 = vunpack.c.l.b16 %v57
  %v163 = vunpack.c.l.b16 %v58
  %v164 = vunpack.c.l.b16 %v59
  %v165 = vunpack.c.l.b16 %v60
  %v166 = vunpack.c.l.b16 %v61
  %v167 = vunpack.c.l.b16 %v62
  %v168 = vunpack.c.l.b16 %v63
  %v169 = vunpack.c.l.b16 %v64
  %v170 = vunpack.c.l.b16 %v65
  %v171 = vunpack.c.l.b16 %v66
  %v172 = vunpack.c.l.b16 %v67
  %v173 = vunpack.c.l.b16 %v68
  %v174 = vunpack.c.l.b16 %v69
  %v175 = vunpack.c.l.b16 %v70
  %v176 = vunpack.c.l.b16 %v71
  %v177 = vunpack.c.l.b16 %v72
  %v178 = vunpack.c.l.b16 %v73
  %v179 = vunpack.c.l.b16 %v74
  %v180 = vpack.c.b16 %v133, %v132
  %v181 = vpack.c.b16 %v135, %v134
  %v182 = vpack.c.b16 %v137, %v136
  %v183 = vpack.c.b16 %v139, %v138
  %v184 = vpack.c.b16 %v141, %v140
  %v185 = vpack.c.b16 %v143, %v142
  %v186 = vpack.c.b16 %v145, %v144
  %v187 = vpack.c.b16 %v147, %v146
  %v188 = vpack.c.b16 %v149, %v148
  %v189 = vpack.c.b16 %v151, %v150
  %v190 = vpack.c.b16 %v153, %v152
  %v191 = vpack.c.b16 %v155, %v154
  %v192 = vpack.c.b16 %v157, %v156
  %v193 = vpack.c.b16 %v159, %v158
  %v194 = vpack.c.b16 %v161, %v160
  %v195 = vpack.c.b16 %v163, %v162
  %v196 = vpack.c.b16 %v165, %v164
  %v197 = vpack.c.b16 %v167, %v166
  %v198 = vpack.c.b16 %v169, %v168
  %v199 = vpack.c.b16 %v171, %v170
  %v200 = vpack.c.b16 %v173, %v172
  %v201 = vpack.c.b16 %v175, %v174
  %v202 = vpack.c.b16 %v177, %v176
  %v203 = vpack.c.b16 %v179, %v178
  %v208 = vunpack.c.l.b16 %v75
  %v209 = vunpack.c.l.b16 %v76
  %v210 = vunpack.c.l.b16 %v77
  %v211 = vunpack.c.l.b16 %v78
  %v212 = vpack.c.b16 %v209, %v208
  %v213 = vpack.c.b16 %v211, %v210
  %vm216 = vcmask 261120
  %v218 = vsel %vm216, %v180, 0
  %v221 = vsel %vm216, %v181, 0
  %v224 = vsel %vm216, %v182, 0
  %v227 = vsel %vm216, %v183, 0
  %v230 = vsel %vm216, %v184, 0
  %v233 = vsel %vm216, %v185, 0
  %v236 = vsel %vm216, %v186, 0
  %v239 = vsel %vm216, %v187, 0
  %v242 = vsel %vm216, %v188, 0
  %v245 = vsel %vm216, %v189, 0
  %v248 = vsel %vm216, %v190, 0
  %v251 = vsel %vm216, %v191, 0
  %v254 = vsel %vm216, %v192, 0
  %v257 = vsel %vm216, %v193, 0
  %v260 = vsel %vm216, %v194, 0
  %v263 = vsel %vm216, %v195, 0
  %v266 = vsel %vm216, %v196, 0
  %v269 = vsel %vm216, %v197, 0
  %v272 = vsel %vm216, %v198, 0
  %v275 = vsel %vm216, %v199, 0
  %v278 = vsel %vm216, %v200, 0
  %v281 = vsel %vm216, %v201, 0
  %v284 = vsel %vm216, %v202, 0
  %v287 = vsel %vm216, %v203, 0
  %289 = vmatprep.subr.bf16.mxu0 0
  %290 = vmatpush1.bf16.msra.mxu0 0
  %291 = vmatprep.subr.bf16.mxu0 0
  %292 = vmatpush1.bf16.msra.mxu0 0
  %293 = vmatprep.subr.bf16.mxu0 0
  %294 = vmatpush1.bf16.msra.mxu0 0
  %295 = vmatprep.subr.bf16.mxu0 0
  %296 = vmatpush1.bf16.msra.mxu0 0
  %297 = vmatprep.subr.bf16.mxu0 0
  %298 = vmatpush1.bf16.msra.mxu0 0
  %299 = vmatprep.subr.bf16.mxu0 0
  %300 = vmatpush1.bf16.msra.mxu0 0
  %301 = vmatprep.subr.bf16.mxu0 0
  %302 = vmatpush1.bf16.msra.mxu0 %v213
  %303 = vmatprep.subr.bf16.mxu0 0
  %304 = vmatpush1.bf16.msra.mxu0 %v212
  %305 = vmatprep.subr.bf16.mxu0 0
  %306 = vmatpush2.bf16.msra.mxu0 0
  %307 = vmatprep.subr.bf16.mxu0 0
  %308 = vmatpush2.bf16.msra.mxu0 0
  %309 = vmatprep.subr.bf16.mxu0 0
  %310 = vmatpush2.bf16.msra.mxu0 0
  %311 = vmatprep.subr.bf16.mxu0 0
  %312 = vmatpush2.bf16.msra.mxu0 0
  %313 = vmatprep.subr.bf16.mxu0 0
  %314 = vmatpush2.bf16.msra.mxu0 0
  %315 = vmatprep.subr.bf16.mxu0 0
  %316 = vmatpush2.bf16.msra.mxu0 0
  %317 = vmatprep.subr.bf16.mxu0 0
  %318 = vmatpush2.bf16.msra.mxu0 0
  %319 = vmatprep.subr.bf16.mxu0 0
  %320 = vmatpush2.bf16.msra.mxu0 0
  %321 = vmatprep.mubr.bf16.mxu0 0
  %322 = vmatmul.mubr.bf16.gmra.mxu0 %v218
  %v323 = vpop.f32.mrf.mxu0
  %v324 = vadd.f32 %v83, %v323
  %v325 = vpop.f32.mrf.mxu0
  %v326 = vpop.f32.mrf.mxu0
  %v327 = vadd.f32 %v83, %v326
  %v328 = vpop.f32.mrf.mxu0
  %329 = vmatprep.mubr.bf16.mxu0 0
  %330 = vmatmul.mubr.bf16.gmra.mxu0 %v221
  %v331 = vpop.f32.mrf.mxu0
  %v332 = vadd.f32 %v83, %v331
  %v333 = vpop.f32.mrf.mxu0
  %v334 = vpop.f32.mrf.mxu0
  %v335 = vadd.f32 %v83, %v334
  %v336 = vpop.f32.mrf.mxu0
  %337 = vmatprep.mubr.bf16.mxu0 0
  %338 = vmatmul.mubr.bf16.gmra.mxu0 %v224
  %v339 = vpop.f32.mrf.mxu0
  %v340 = vadd.f32 %v83, %v339
  %v341 = vpop.f32.mrf.mxu0
  %v342 = vpop.f32.mrf.mxu0
  %v343 = vadd.f32 %v83, %v342
  %v344 = vpop.f32.mrf.mxu0
  %345 = vmatprep.mubr.bf16.mxu0 0
  %346 = vmatmul.mubr.bf16.gmra.mxu0 %v227
  %v347 = vpop.f32.mrf.mxu0
  %v348 = vadd.f32 %v83, %v347
  %v349 = vpop.f32.mrf.mxu0
  %v350 = vpop.f32.mrf.mxu0
  %v351 = vadd.f32 %v83, %v350
  %v352 = vpop.f32.mrf.mxu0
  %353 = vmatprep.mubr.bf16.mxu0 0
  %354 = vmatmul.mubr.bf16.gmra.mxu0 %v230
  %v355 = vpop.f32.mrf.mxu0
  %v356 = vadd.f32 %v83, %v355
  %v357 = vpop.f32.mrf.mxu0
  %v358 = vpop.f32.mrf.mxu0
  %v359 = vadd.f32 %v83, %v358
  %v360 = vpop.f32.mrf.mxu0
  %361 = vmatprep.mubr.bf16.mxu0 0
  %362 = vmatmul.mubr.bf16.gmra.mxu0 %v233
  %v363 = vpop.f32.mrf.mxu0
  %v364 = vadd.f32 %v83, %v363
  %v365 = vpop.f32.mrf.mxu0
  %v366 = vpop.f32.mrf.mxu0
  %v367 = vadd.f32 %v83, %v366
  %v368 = vpop.f32.mrf.mxu0
  %369 = vmatprep.mubr.bf16.mxu0 0
  %370 = vmatmul.mubr.bf16.gmra.mxu0 %v236
  %v371 = vpop.f32.mrf.mxu0
  %v372 = vadd.f32 %v83, %v371
  %v373 = vpop.f32.mrf.mxu0
  %v374 = vpop.f32.mrf.mxu0
  %v375 = vadd.f32 %v83, %v374
  %v376 = vpop.f32.mrf.mxu0
  %377 = vmatprep.mubr.bf16.mxu0 0
  %378 = vmatmul.mubr.bf16.gmra.mxu0 %v239
  %v379 = vpop.f32.mrf.mxu0
  %v380 = vadd.f32 %v83, %v379
  %v381 = vpop.f32.mrf.mxu0
  %v382 = vpop.f32.mrf.mxu0
  %v383 = vadd.f32 %v83, %v382
  %v384 = vpop.f32.mrf.mxu0
  %385 = vmatprep.mubr.bf16.mxu0 0
  %386 = vmatmul.mubr.bf16.gmra.mxu0 %v242
  %v387 = vpop.f32.mrf.mxu0
  %v388 = vadd.f32 %v83, %v387
  %v389 = vpop.f32.mrf.mxu0
  %v390 = vpop.f32.mrf.mxu0
  %v391 = vadd.f32 %v83, %v390
  %v392 = vpop.f32.mrf.mxu0
  %393 = vmatprep.mubr.bf16.mxu0 0
  %394 = vmatmul.mubr.bf16.gmra.mxu0 %v245
  %v395 = vpop.f32.mrf.mxu0
  %v396 = vadd.f32 %v83, %v395
  %v397 = vpop.f32.mrf.mxu0
  %v398 = vpop.f32.mrf.mxu0
  %v399 = vadd.f32 %v83, %v398
  %v400 = vpop.f32.mrf.mxu0
  %401 = vmatprep.mubr.bf16.mxu0 0
  %402 = vmatmul.mubr.bf16.gmra.mxu0 %v248
  %v403 = vpop.f32.mrf.mxu0
  %v404 = vadd.f32 %v83, %v403
  %v405 = vpop.f32.mrf.mxu0
  %v406 = vpop.f32.mrf.mxu0
  %v407 = vadd.f32 %v83, %v406
  %v408 = vpop.f32.mrf.mxu0
  %409 = vmatprep.mubr.bf16.mxu0 0
  %410 = vmatmul.mubr.bf16.gmra.mxu0 %v251
  %v411 = vpop.f32.mrf.mxu0
  %v412 = vadd.f32 %v83, %v411
  %v413 = vpop.f32.mrf.mxu0
  %v414 = vpop.f32.mrf.mxu0
  %v415 = vadd.f32 %v83, %v414
  %v416 = vpop.f32.mrf.mxu0
  %417 = vmatprep.mubr.bf16.mxu0 0
  %418 = vmatmul.mubr.bf16.gmra.mxu0 %v254
  %v419 = vpop.f32.mrf.mxu0
  %v420 = vadd.f32 %v83, %v419
  %v421 = vpop.f32.mrf.mxu0
  %v422 = vpop.f32.mrf.mxu0
  %v423 = vadd.f32 %v83, %v422
  %v424 = vpop.f32.mrf.mxu0
  %425 = vmatprep.mubr.bf16.mxu0 0
  %426 = vmatmul.mubr.bf16.gmra.mxu0 %v257
  %v427 = vpop.f32.mrf.mxu0
  %v428 = vadd.f32 %v83, %v427
  %v429 = vpop.f32.mrf.mxu0
  %v430 = vpop.f32.mrf.mxu0
  %v431 = vadd.f32 %v83, %v430
  %v432 = vpop.f32.mrf.mxu0
  %433 = vmatprep.mubr.bf16.mxu0 0
  %434 = vmatmul.mubr.bf16.gmra.mxu0 %v260
  %v435 = vpop.f32.mrf.mxu0
  %v436 = vadd.f32 %v83, %v435
  %v437 = vpop.f32.mrf.mxu0
  %v438 = vpop.f32.mrf.mxu0
  %v439 = vadd.f32 %v83, %v438
  %v440 = vpop.f32.mrf.mxu0
  %441 = vmatprep.mubr.bf16.mxu0 0
  %442 = vmatmul.mubr.bf16.gmra.mxu0 %v263
  %v443 = vpop.f32.mrf.mxu0
  %v444 = vadd.f32 %v83, %v443
  %v445 = vpop.f32.mrf.mxu0
  %v446 = vpop.f32.mrf.mxu0
  %v447 = vadd.f32 %v83, %v446
  %v448 = vpop.f32.mrf.mxu0
  %449 = vmatprep.mubr.bf16.mxu0 0
  %450 = vmatmul.mubr.bf16.gmra.mxu0 %v266
  %v451 = vpop.f32.mrf.mxu0
  %v452 = vadd.f32 %v83, %v451
  %v453 = vpop.f32.mrf.mxu0
  %v454 = vpop.f32.mrf.mxu0
  %v455 = vadd.f32 %v83, %v454
  %v456 = vpop.f32.mrf.mxu0
  %457 = vmatprep.mubr.bf16.mxu0 0
  %458 = vmatmul.mubr.bf16.gmra.mxu0 %v269
  %v459 = vpop.f32.mrf.mxu0
  %v460 = vadd.f32 %v83, %v459
  %v461 = vpop.f32.mrf.mxu0
  %v462 = vpop.f32.mrf.mxu0
  %v463 = vadd.f32 %v83, %v462
  %v464 = vpop.f32.mrf.mxu0
  %465 = vmatprep.mubr.bf16.mxu0 0
  %466 = vmatmul.mubr.bf16.gmra.mxu0 %v272
  %v467 = vpop.f32.mrf.mxu0
  %v468 = vadd.f32 %v83, %v467
  %v469 = vpop.f32.mrf.mxu0
  %v470 = vpop.f32.mrf.mxu0
  %v471 = vadd.f32 %v83, %v470
  %v472 = vpop.f32.mrf.mxu0
  %473 = vmatprep.mubr.bf16.mxu0 0
  %474 = vmatmul.mubr.bf16.gmra.mxu0 %v275
  %v475 = vpop.f32.mrf.mxu0
  %v476 = vadd.f32 %v83, %v475
  %v477 = vpop.f32.mrf.mxu0
  %v478 = vpop.f32.mrf.mxu0
  %v479 = vadd.f32 %v83, %v478
  %v480 = vpop.f32.mrf.mxu0
  %481 = vmatprep.mubr.bf16.mxu0 0
  %482 = vmatmul.mubr.bf16.gmra.mxu0 %v278
  %v483 = vpop.f32.mrf.mxu0
  %v484 = vadd.f32 %v83, %v483
  %v485 = vpop.f32.mrf.mxu0
  %v486 = vpop.f32.mrf.mxu0
  %v487 = vadd.f32 %v83, %v486
  %v488 = vpop.f32.mrf.mxu0
  %489 = vmatprep.mubr.bf16.mxu0 0
  %490 = vmatmul.mubr.bf16.gmra.mxu0 %v281
  %v491 = vpop.f32.mrf.mxu0
  %v492 = vadd.f32 %v83, %v491
  %v493 = vpop.f32.mrf.mxu0
  %v494 = vpop.f32.mrf.mxu0
  %v495 = vadd.f32 %v83, %v494
  %v496 = vpop.f32.mrf.mxu0
  %497 = vmatprep.mubr.bf16.mxu0 0
  %498 = vmatmul.mubr.bf16.gmra.mxu0 %v284
  %v499 = vpop.f32.mrf.mxu0
  %v500 = vadd.f32 %v83, %v499
  %v501 = vpop.f32.mrf.mxu0
  %v502 = vpop.f32.mrf.mxu0
  %v503 = vadd.f32 %v83, %v502
  %v504 = vpop.f32.mrf.mxu0
  %505 = vmatprep.mubr.bf16.mxu0 0
  %506 = vmatmul.mubr.bf16.gmra.mxu0 %v287
  %v507 = vpop.f32.mrf.mxu0
  %v508 = vadd.f32 %v83, %v507
  %v509 = vpop.f32.mrf.mxu0
  %v510 = vpop.f32.mrf.mxu0
  %v511 = vadd.f32 %v83, %v510
  %v512 = vpop.f32.mrf.mxu0
  %513 = vdwg.mxu0
  %v514 = vmax.f32 %v324, 0.0
  %v515 = vmax.f32 %v327, 0.0
  %v516 = vmax.f32 %v332, 0.0
  %v517 = vmax.f32 %v335, 0.0
  %v518 = vmax.f32 %v340, 0.0
  %v519 = vmax.f32 %v343, 0.0
  %v520 = vmax.f32 %v348, 0.0
  %v521 = vmax.f32 %v351, 0.0
  %v522 = vmax.f32 %v356, 0.0
  %v523 = vmax.f32 %v359, 0.0
  %v524 = vmax.f32 %v364, 0.0
  %v525 = vmax.f32 %v367, 0.0
  %v526 = vmax.f32 %v372, 0.0
  %v527 = vmax.f32 %v375, 0.0
  %v528 = vmax.f32 %v380, 0.0
  %v529 = vmax.f32 %v383, 0.0
  %v530 = vmax.f32 %v388, 0.0
  %v531 = vmax.f32 %v391, 0.0
  %v532 = vmax.f32 %v396, 0.0
  %v533 = vmax.f32 %v399, 0.0
  %v534 = vmax.f32 %v404, 0.0
  %v535 = vmax.f32 %v407, 0.0
  %v536 = vmax.f32 %v412, 0.0
  %v537 = vmax.f32 %v415, 0.0
  %v538 = vmax.f32 %v420, 0.0
  %v539 = vmax.f32 %v423, 0.0
  %v540 = vmax.f32 %v428, 0.0
  %v541 = vmax.f32 %v431, 0.0
  %v542 = vmax.f32 %v436, 0.0
  %v543 = vmax.f32 %v439, 0.0
  %v544 = vmax.f32 %v444, 0.0
  %v545 = vmax.f32 %v447, 0.0
  %v546 = vmax.f32 %v452, 0.0
  %v547 = vmax.f32 %v455, 0.0
  %v548 = vmax.f32 %v460, 0.0
  %v549 = vmax.f32 %v463, 0.0
  %v550 = vmax.f32 %v468, 0.0
  %v551 = vmax.f32 %v471, 0.0
  %v552 = vmax.f32 %v476, 0.0
  %v553 = vmax.f32 %v479, 0.0
  %v554 = vmax.f32 %v484, 0.0
  %v555 = vmax.f32 %v487, 0.0
  %v556 = vmax.f32 %v492, 0.0
  %v557 = vmax.f32 %v495, 0.0
  %v558 = vmax.f32 %v500, 0.0
  %v559 = vmax.f32 %v503, 0.0
  %v560 = vmax.f32 %v508, 0.0
  %v561 = vmax.f32 %v511, 0.0
  %v562 = vpack.c.bf16 %v515, %v514
  %v563 = vpack.c.bf16 %v517, %v516
  %v564 = vpack.c.bf16 %v519, %v518
  %v565 = vpack.c.bf16 %v521, %v520
  %v566 = vpack.c.bf16 %v523, %v522
  %v567 = vpack.c.bf16 %v525, %v524
  %v568 = vpack.c.bf16 %v527, %v526
  %v569 = vpack.c.bf16 %v529, %v528
  %v570 = vpack.c.bf16 %v531, %v530
  %v571 = vpack.c.bf16 %v533, %v532
  %v572 = vpack.c.bf16 %v535, %v534
  %v573 = vpack.c.bf16 %v537, %v536
  %v574 = vpack.c.bf16 %v539, %v538
  %v575 = vpack.c.bf16 %v541, %v540
  %v576 = vpack.c.bf16 %v543, %v542
  %v577 = vpack.c.bf16 %v545, %v544
  %v578 = vpack.c.bf16 %v547, %v546
  %v579 = vpack.c.bf16 %v549, %v548
  %v580 = vpack.c.bf16 %v551, %v550
  %v581 = vpack.c.bf16 %v553, %v552
  %v582 = vpack.c.bf16 %v555, %v554
  %v583 = vpack.c.bf16 %v557, %v556
  %v584 = vpack.c.bf16 %v559, %v558
  %v585 = vpack.c.bf16 %v561, %v560
  %v586 = vld [vmem:[%s2] sm:$0xf]
  %v587 = vld [vmem:[%s2 + $0x4] sm:$0xf]
  %v588 = vld [vmem:[%s5 + $0x1] sm:$0x1]
  %v589 = vlaneseq
  %v590 = vshrl.u32 %v589, 7
  %v591 = vsub.s32 0, %v590
  %v592 = vrot.slane %v588, %v591
  %v595 = vunpack.c.l.b16 %v586
  %v596 = vunpack.c.l.b16 %v587
  %v597 = vpack.c.b16 %v596, %v595
  %vm599 = vcmask 130048
  %v601 = vsel %vm599, %v562, 0
  %v604 = vsel %vm599, %v563, 0
  %v607 = vsel %vm599, %v564, 0
  %v610 = vsel %vm599, %v565, 0
  %v613 = vsel %vm599, %v566, 0
  %v616 = vsel %vm599, %v567, 0
  %v619 = vsel %vm599, %v568, 0
  %v622 = vsel %vm599, %v569, 0
  %v625 = vsel %vm599, %v570, 0
  %v628 = vsel %vm599, %v571, 0
  %v631 = vsel %vm599, %v572, 0
  %v634 = vsel %vm599, %v573, 0
  %v637 = vsel %vm599, %v574, 0
  %v640 = vsel %vm599, %v575, 0
  %v643 = vsel %vm599, %v576, 0
  %v646 = vsel %vm599, %v577, 0
  %v649 = vsel %vm599, %v578, 0
  %v652 = vsel %vm599, %v579, 0
  %v655 = vsel %vm599, %v580, 0
  %v658 = vsel %vm599, %v581, 0
  %v661 = vsel %vm599, %v582, 0
  %v664 = vsel %vm599, %v583, 0
  %v667 = vsel %vm599, %v584, 0
  %v670 = vsel %vm599, %v585, 0
  %672 = vmatprep.subr.bf16.mxu0 0
  %673 = vmatpush1.bf16.msra.mxu0 0
  %674 = vmatprep.subr.bf16.mxu0 0
  %675 = vmatpush1.bf16.msra.mxu0 0
  %676 = vmatprep.subr.bf16.mxu0 0
  %677 = vmatpush1.bf16.msra.mxu0 0
  %678 = vmatprep.subr.bf16.mxu0 0
  %679 = vmatpush1.bf16.msra.mxu0 0
  %680 = vmatprep.subr.bf16.mxu0 0
  %681 = vmatpush1.bf16.msra.mxu0 0
  %682 = vmatprep.subr.bf16.mxu0 0
  %683 = vmatpush1.bf16.msra.mxu0 0
  %684 = vmatprep.subr.bf16.mxu0 0
  %685 = vmatpush1.bf16.msra.mxu0 0
  %686 = vmatprep.subr.bf16.mxu0 0
  %687 = vmatpush1.bf16.msra.mxu0 %v597
  %688 = vmatprep.subr.bf16.mxu0 0
  %689 = vmatpush2.bf16.msra.mxu0 0
  %690 = vmatprep.subr.bf16.mxu0 0
  %691 = vmatpush2.bf16.msra.mxu0 0
  %692 = vmatprep.subr.bf16.mxu0 0
  %693 = vmatpush2.bf16.msra.mxu0 0
  %694 = vmatprep.subr.bf16.mxu0 0
  %695 = vmatpush2.bf16.msra.mxu0 0
  %696 = vmatprep.subr.bf16.mxu0 0
  %697 = vmatpush2.bf16.msra.mxu0 0
  %698 = vmatprep.subr.bf16.mxu0 0
  %699 = vmatpush2.bf16.msra.mxu0 0
  %700 = vmatprep.subr.bf16.mxu0 0
  %701 = vmatpush2.bf16.msra.mxu0 0
  %702 = vmatprep.subr.bf16.mxu0 0
  %703 = vmatpush2.bf16.msra.mxu0 0
  %704 = vmatprep.mubr.bf16.mxu0 0
  %705 = vmatmul.mubr.bf16.gmra.mxu0 %v601
  %v706 = vpop.f32.mrf.mxu0
  %v707 = vadd.f32 %v592, %v706
  %v708 = vpop.f32.mrf.mxu0
  %v709 = vpop.f32.mrf.mxu0
  %v710 = vadd.f32 %v592, %v709
  %v711 = vpop.f32.mrf.mxu0
  %712 = vmatprep.mubr.bf16.mxu0 0
  %713 = vmatmul.mubr.bf16.gmra.mxu0 %v604
  %v714 = vpop.f32.mrf.mxu0
  %v715 = vadd.f32 %v592, %v714
  %v716 = vpop.f32.mrf.mxu0
  %v717 = vpop.f32.mrf.mxu0
  %v718 = vadd.f32 %v592, %v717
  %v719 = vpop.f32.mrf.mxu0
  %720 = vmatprep.mubr.bf16.mxu0 0
  %721 = vmatmul.mubr.bf16.gmra.mxu0 %v607
  %v722 = vpop.f32.mrf.mxu0
  %v723 = vadd.f32 %v592, %v722
  %v724 = vpop.f32.mrf.mxu0
  %v725 = vpop.f32.mrf.mxu0
  %v726 = vadd.f32 %v592, %v725
  %v727 = vpop.f32.mrf.mxu0
  %728 = vmatprep.mubr.bf16.mxu0 0
  %729 = vmatmul.mubr.bf16.gmra.mxu0 %v610
  %v730 = vpop.f32.mrf.mxu0
  %v731 = vadd.f32 %v592, %v730
  %v732 = vpop.f32.mrf.mxu0
  %v733 = vpop.f32.mrf.mxu0
  %v734 = vadd.f32 %v592, %v733
  %v735 = vpop.f32.mrf.mxu0
  %736 = vmatprep.mubr.bf16.mxu0 0
  %737 = vmatmul.mubr.bf16.gmra.mxu0 %v613
  %v738 = vpop.f32.mrf.mxu0
  %v739 = vadd.f32 %v592, %v738
  %v740 = vpop.f32.mrf.mxu0
  %v741 = vpop.f32.mrf.mxu0
  %v742 = vadd.f32 %v592, %v741
  %v743 = vpop.f32.mrf.mxu0
  %744 = vmatprep.mubr.bf16.mxu0 0
  %745 = vmatmul.mubr.bf16.gmra.mxu0 %v616
  %v746 = vpop.f32.mrf.mxu0
  %v747 = vadd.f32 %v592, %v746
  %v748 = vpop.f32.mrf.mxu0
  %v749 = vpop.f32.mrf.mxu0
  %v750 = vadd.f32 %v592, %v749
  %v751 = vpop.f32.mrf.mxu0
  %752 = vmatprep.mubr.bf16.mxu0 0
  %753 = vmatmul.mubr.bf16.gmra.mxu0 %v619
  %v754 = vpop.f32.mrf.mxu0
  %v755 = vadd.f32 %v592, %v754
  %v756 = vpop.f32.mrf.mxu0
  %v757 = vpop.f32.mrf.mxu0
  %v758 = vadd.f32 %v592, %v757
  %v759 = vpop.f32.mrf.mxu0
  %760 = vmatprep.mubr.bf16.mxu0 0
  %761 = vmatmul.mubr.bf16.gmra.mxu0 %v622
  %v762 = vpop.f32.mrf.mxu0
  %v763 = vadd.f32 %v592, %v762
  %v764 = vpop.f32.mrf.mxu0
  %v765 = vpop.f32.mrf.mxu0
  %v766 = vadd.f32 %v592, %v765
  %v767 = vpop.f32.mrf.mxu0
  %768 = vmatprep.mubr.bf16.mxu0 0
  %769 = vmatmul.mubr.bf16.gmra.mxu0 %v625
  %v770 = vpop.f32.mrf.mxu0
  %v771 = vadd.f32 %v592, %v770
  %v772 = vpop.f32.mrf.mxu0
  %v773 = vpop.f32.mrf.mxu0
  %v774 = vadd.f32 %v592, %v773
  %v775 = vpop.f32.mrf.mxu0
  %776 = vmatprep.mubr.bf16.mxu0 0
  %777 = vmatmul.mubr.bf16.gmra.mxu0 %v628
  %v778 = vpop.f32.mrf.mxu0
  %v779 = vadd.f32 %v592, %v778
  %v780 = vpop.f32.mrf.mxu0
  %v781 = vpop.f32.mrf.mxu0
  %v782 = vadd.f32 %v592, %v781
  %v783 = vpop.f32.mrf.mxu0
  %784 = vmatprep.mubr.bf16.mxu0 0
  %785 = vmatmul.mubr.bf16.gmra.mxu0 %v631
  %v786 = vpop.f32.mrf.mxu0
  %v787 = vadd.f32 %v592, %v786
  %v788 = vpop.f32.mrf.mxu0
  %v789 = vpop.f32.mrf.mxu0
  %v790 = vadd.f32 %v592, %v789
  %v791 = vpop.f32.mrf.mxu0
  %792 = vmatprep.mubr.bf16.mxu0 0
  %793 = vmatmul.mubr.bf16.gmra.mxu0 %v634
  %v794 = vpop.f32.mrf.mxu0
  %v795 = vadd.f32 %v592, %v794
  %v796 = vpop.f32.mrf.mxu0
  %v797 = vpop.f32.mrf.mxu0
  %v798 = vadd.f32 %v592, %v797
  %v799 = vpop.f32.mrf.mxu0
  %800 = vmatprep.mubr.bf16.mxu0 0
  %801 = vmatmul.mubr.bf16.gmra.mxu0 %v637
  %v802 = vpop.f32.mrf.mxu0
  %v803 = vadd.f32 %v592, %v802
  %v804 = vpop.f32.mrf.mxu0
  %v805 = vpop.f32.mrf.mxu0
  %v806 = vadd.f32 %v592, %v805
  %v807 = vpop.f32.mrf.mxu0
  %808 = vmatprep.mubr.bf16.mxu0 0
  %809 = vmatmul.mubr.bf16.gmra.mxu0 %v640
  %v810 = vpop.f32.mrf.mxu0
  %v811 = vadd.f32 %v592, %v810
  %v812 = vpop.f32.mrf.mxu0
  %v813 = vpop.f32.mrf.mxu0
  %v814 = vadd.f32 %v592, %v813
  %v815 = vpop.f32.mrf.mxu0
  %816 = vmatprep.mubr.bf16.mxu0 0
  %817 = vmatmul.mubr.bf16.gmra.mxu0 %v643
  %v818 = vpop.f32.mrf.mxu0
  %v819 = vadd.f32 %v592, %v818
  %v820 = vpop.f32.mrf.mxu0
  %v821 = vpop.f32.mrf.mxu0
  %v822 = vadd.f32 %v592, %v821
  %v823 = vpop.f32.mrf.mxu0
  %824 = vmatprep.mubr.bf16.mxu0 0
  %825 = vmatmul.mubr.bf16.gmra.mxu0 %v646
  %v826 = vpop.f32.mrf.mxu0
  %v827 = vadd.f32 %v592, %v826
  %v828 = vpop.f32.mrf.mxu0
  %v829 = vpop.f32.mrf.mxu0
  %v830 = vadd.f32 %v592, %v829
  %v831 = vpop.f32.mrf.mxu0
  %832 = vmatprep.mubr.bf16.mxu0 0
  %833 = vmatmul.mubr.bf16.gmra.mxu0 %v649
  %v834 = vpop.f32.mrf.mxu0
  %v835 = vadd.f32 %v592, %v834
  %v836 = vpop.f32.mrf.mxu0
  %v837 = vpop.f32.mrf.mxu0
  %v838 = vadd.f32 %v592, %v837
  %v839 = vpop.f32.mrf.mxu0
  %840 = vmatprep.mubr.bf16.mxu0 0
  %841 = vmatmul.mubr.bf16.gmra.mxu0 %v652
  %v842 = vpop.f32.mrf.mxu0
  %v843 = vadd.f32 %v592, %v842
  %v844 = vpop.f32.mrf.mxu0
  %v845 = vpop.f32.mrf.mxu0
  %v846 = vadd.f32 %v592, %v845
  %v847 = vpop.f32.mrf.mxu0
  %848 = vmatprep.mubr.bf16.mxu0 0
  %849 = vmatmul.mubr.bf16.gmra.mxu0 %v655
  %v850 = vpop.f32.mrf.mxu0
  %v851 = vadd.f32 %v592, %v850
  %v852 = vpop.f32.mrf.mxu0
  %v853 = vpop.f32.mrf.mxu0
  %v854 = vadd.f32 %v592, %v853
  %v855 = vpop.f32.mrf.mxu0
  %856 = vmatprep.mubr.bf16.mxu0 0
  %857 = vmatmul.mubr.bf16.gmra.mxu0 %v658
  %v858 = vpop.f32.mrf.mxu0
  %v859 = vadd.f32 %v592, %v858
  %v860 = vpop.f32.mrf.mxu0
  %v861 = vpop.f32.mrf.mxu0
  %v862 = vadd.f32 %v592, %v861
  %v863 = vpop.f32.mrf.mxu0
  %864 = vmatprep.mubr.bf16.mxu0 0
  %865 = vmatmul.mubr.bf16.gmra.mxu0 %v661
  %v866 = vpop.f32.mrf.mxu0
  %v867 = vadd.f32 %v592, %v866
  %v868 = vpop.f32.mrf.mxu0
  %v869 = vpop.f32.mrf.mxu0
  %v870 = vadd.f32 %v592, %v869
  %v871 = vpop.f32.mrf.mxu0
  %872 = vmatprep.mubr.bf16.mxu0 0
  %873 = vmatmul.mubr.bf16.gmra.mxu0 %v664
  %v874 = vpop.f32.mrf.mxu0
  %v875 = vadd.f32 %v592, %v874
  %v876 = vpop.f32.mrf.mxu0
  %v877 = vpop.f32.mrf.mxu0
  %v878 = vadd.f32 %v592, %v877
  %v879 = vpop.f32.mrf.mxu0
  %880 = vmatprep.mubr.bf16.mxu0 0
  %881 = vmatmul.mubr.bf16.gmra.mxu0 %v667
  %v882 = vpop.f32.mrf.mxu0
  %v883 = vadd.f32 %v592, %v882
  %v884 = vpop.f32.mrf.mxu0
  %v885 = vpop.f32.mrf.mxu0
  %v886 = vadd.f32 %v592, %v885
  %v887 = vpop.f32.mrf.mxu0
  %888 = vmatprep.mubr.bf16.mxu0 0
  %889 = vmatmul.mubr.bf16.gmra.mxu0 %v670
  %v890 = vpop.f32.mrf.mxu0
  %v891 = vadd.f32 %v592, %v890
  %v892 = vpop.f32.mrf.mxu0
  %v893 = vpop.f32.mrf.mxu0
  %v894 = vadd.f32 %v592, %v893
  %v895 = vpop.f32.mrf.mxu0
  %896 = vdwg.mxu0
  %v897 = vpack.c.bf16 %v710, %v707
  %v898 = vpack.c.bf16 %v718, %v715
  %v899 = vpack.c.bf16 %v726, %v723
  %v900 = vpack.c.bf16 %v734, %v731
  %v901 = vpack.c.bf16 %v742, %v739
  %v902 = vpack.c.bf16 %v750, %v747
  %v903 = vpack.c.bf16 %v758, %v755
  %v904 = vpack.c.bf16 %v766, %v763
  %v905 = vpack.c.bf16 %v774, %v771
  %v906 = vpack.c.bf16 %v782, %v779
  %v907 = vpack.c.bf16 %v790, %v787
  %v908 = vpack.c.bf16 %v798, %v795
  %v909 = vpack.c.bf16 %v806, %v803
  %v910 = vpack.c.bf16 %v814, %v811
  %v911 = vpack.c.bf16 %v822, %v819
  %v912 = vpack.c.bf16 %v830, %v827
  %v913 = vpack.c.bf16 %v838, %v835
  %v914 = vpack.c.bf16 %v846, %v843
  %v915 = vpack.c.bf16 %v854, %v851
  %v916 = vpack.c.bf16 %v862, %v859
  %v917 = vpack.c.bf16 %v870, %v867
  %v918 = vpack.c.bf16 %v878, %v875
  %v919 = vpack.c.bf16 %v886, %v883
  %v920 = vpack.c.bf16 %v894, %v891
  %v921 = vld [vmem:[%s3] sm:$0xf]
  %v922 = vld [vmem:[%s3 + $0x4] sm:$0xf]
  %v923 = vld [vmem:[%s5 + $0x2] sm:$0x1]
  %v924 = vlaneseq
  %v925 = vshrl.u32 %v924, 7
  %v926 = vsub.s32 0, %v925
  %v927 = vrot.slane %v923, %v926
  %v930 = vunpack.c.l.b16 %v921
  %v931 = vunpack.c.l.b16 %v922
  %v932 = vpack.c.b16 %v931, %v930
  %v935 = vsel %vm599, %v897, 0
  %v938 = vsel %vm599, %v898, 0
  %v941 = vsel %vm599, %v899, 0
  %v944 = vsel %vm599, %v900, 0
  %v947 = vsel %vm599, %v901, 0
  %v950 = vsel %vm599, %v902, 0
  %v953 = vsel %vm599, %v903, 0
  %v956 = vsel %vm599, %v904, 0
  %v959 = vsel %vm599, %v905, 0
  %v962 = vsel %vm599, %v906, 0
  %v965 = vsel %vm599, %v907, 0
  %v968 = vsel %vm599, %v908, 0
  %v971 = vsel %vm599, %v909, 0
  %v974 = vsel %vm599, %v910, 0
  %v977 = vsel %vm599, %v911, 0
  %v980 = vsel %vm599, %v912, 0
  %v983 = vsel %vm599, %v913, 0
  %v986 = vsel %vm599, %v914, 0
  %v989 = vsel %vm599, %v915, 0
  %v992 = vsel %vm599, %v916, 0
  %v995 = vsel %vm599, %v917, 0
  %v998 = vsel %vm599, %v918, 0
  %v1001 = vsel %vm599, %v919, 0
  %v1004 = vsel %vm599, %v920, 0
  %1006 = vmatprep.subr.bf16.mxu0 0
  %1007 = vmatpush1.bf16.msra.mxu0 0
  %1008 = vmatprep.subr.bf16.mxu0 0
  %1009 = vmatpush1.bf16.msra.mxu0 0
  %1010 = vmatprep.subr.bf16.mxu0 0
  %1011 = vmatpush1.bf16.msra.mxu0 0
  %1012 = vmatprep.subr.bf16.mxu0 0
  %1013 = vmatpush1.bf16.msra.mxu0 0
  %1014 = vmatprep.subr.bf16.mxu0 0
  %1015 = vmatpush1.bf16.msra.mxu0 0
  %1016 = vmatprep.subr.bf16.mxu0 0
  %1017 = vmatpush1.bf16.msra.mxu0 0
  %1018 = vmatprep.subr.bf16.mxu0 0
  %1019 = vmatpush1.bf16.msra.mxu0 0
  %1020 = vmatprep.subr.bf16.mxu0 0
  %1021 = vmatpush1.bf16.msra.mxu0 %v932
  %1022 = vmatprep.subr.bf16.mxu0 0
  %1023 = vmatpush2.bf16.msra.mxu0 0
  %1024 = vmatprep.subr.bf16.mxu0 0
  %1025 = vmatpush2.bf16.msra.mxu0 0
  %1026 = vmatprep.subr.bf16.mxu0 0
  %1027 = vmatpush2.bf16.msra.mxu0 0
  %1028 = vmatprep.subr.bf16.mxu0 0
  %1029 = vmatpush2.bf16.msra.mxu0 0
  %1030 = vmatprep.subr.bf16.mxu0 0
  %1031 = vmatpush2.bf16.msra.mxu0 0
  %1032 = vmatprep.subr.bf16.mxu0 0
  %1033 = vmatpush2.bf16.msra.mxu0 0
  %1034 = vmatprep.subr.bf16.mxu0 0
  %1035 = vmatpush2.bf16.msra.mxu0 0
  %1036 = vmatprep.subr.bf16.mxu0 0
  %1037 = vmatpush2.bf16.msra.mxu0 0
  %1038 = vmatprep.mubr.bf16.mxu0 0
  %1039 = vmatmul.mubr.bf16.gmra.mxu0 %v935
  %v1040 = vpop.f32.mrf.mxu0
  %v1041 = vadd.f32 %v927, %v1040
  %v1042 = vpop.f32.mrf.mxu0
  %v1043 = vpop.f32.mrf.mxu0
  %v1044 = vadd.f32 %v927, %v1043
  %v1045 = vpop.f32.mrf.mxu0
  %1046 = vmatprep.mubr.bf16.mxu0 0
  %1047 = vmatmul.mubr.bf16.gmra.mxu0 %v938
  %v1048 = vpop.f32.mrf.mxu0
  %v1049 = vadd.f32 %v927, %v1048
  %v1050 = vpop.f32.mrf.mxu0
  %v1051 = vpop.f32.mrf.mxu0
  %v1052 = vadd.f32 %v927, %v1051
  %v1053 = vpop.f32.mrf.mxu0
  %1054 = vmatprep.mubr.bf16.mxu0 0
  %1055 = vmatmul.mubr.bf16.gmra.mxu0 %v941
  %v1056 = vpop.f32.mrf.mxu0
  %v1057 = vadd.f32 %v927, %v1056
  %v1058 = vpop.f32.mrf.mxu0
  %v1059 = vpop.f32.mrf.mxu0
  %v1060 = vadd.f32 %v927, %v1059
  %v1061 = vpop.f32.mrf.mxu0
  %1062 = vmatprep.mubr.bf16.mxu0 0
  %1063 = vmatmul.mubr.bf16.gmra.mxu0 %v944
  %v1064 = vpop.f32.mrf.mxu0
  %v1065 = vadd.f32 %v927, %v1064
  %v1066 = vpop.f32.mrf.mxu0
  %v1067 = vpop.f32.mrf.mxu0
  %v1068 = vadd.f32 %v927, %v1067
  %v1069 = vpop.f32.mrf.mxu0
  %1070 = vmatprep.mubr.bf16.mxu0 0
  %1071 = vmatmul.mubr.bf16.gmra.mxu0 %v947
  %v1072 = vpop.f32.mrf.mxu0
  %v1073 = vadd.f32 %v927, %v1072
  %v1074 = vpop.f32.mrf.mxu0
  %v1075 = vpop.f32.mrf.mxu0
  %v1076 = vadd.f32 %v927, %v1075
  %v1077 = vpop.f32.mrf.mxu0
  %1078 = vmatprep.mubr.bf16.mxu0 0
  %1079 = vmatmul.mubr.bf16.gmra.mxu0 %v950
  %v1080 = vpop.f32.mrf.mxu0
  %v1081 = vadd.f32 %v927, %v1080
  %v1082 = vpop.f32.mrf.mxu0
  %v1083 = vpop.f32.mrf.mxu0
  %v1084 = vadd.f32 %v927, %v1083
  %v1085 = vpop.f32.mrf.mxu0
  %1086 = vmatprep.mubr.bf16.mxu0 0
  %1087 = vmatmul.mubr.bf16.gmra.mxu0 %v953
  %v1088 = vpop.f32.mrf.mxu0
  %v1089 = vadd.f32 %v927, %v1088
  %v1090 = vpop.f32.mrf.mxu0
  %v1091 = vpop.f32.mrf.mxu0
  %v1092 = vadd.f32 %v927, %v1091
  %v1093 = vpop.f32.mrf.mxu0
  %1094 = vmatprep.mubr.bf16.mxu0 0
  %1095 = vmatmul.mubr.bf16.gmra.mxu0 %v956
  %v1096 = vpop.f32.mrf.mxu0
  %v1097 = vadd.f32 %v927, %v1096
  %v1098 = vpop.f32.mrf.mxu0
  %v1099 = vpop.f32.mrf.mxu0
  %v1100 = vadd.f32 %v927, %v1099
  %v1101 = vpop.f32.mrf.mxu0
  %1102 = vmatprep.mubr.bf16.mxu0 0
  %1103 = vmatmul.mubr.bf16.gmra.mxu0 %v959
  %v1104 = vpop.f32.mrf.mxu0
  %v1105 = vadd.f32 %v927, %v1104
  %v1106 = vpop.f32.mrf.mxu0
  %v1107 = vpop.f32.mrf.mxu0
  %v1108 = vadd.f32 %v927, %v1107
  %v1109 = vpop.f32.mrf.mxu0
  %1110 = vmatprep.mubr.bf16.mxu0 0
  %1111 = vmatmul.mubr.bf16.gmra.mxu0 %v962
  %v1112 = vpop.f32.mrf.mxu0
  %v1113 = vadd.f32 %v927, %v1112
  %v1114 = vpop.f32.mrf.mxu0
  %v1115 = vpop.f32.mrf.mxu0
  %v1116 = vadd.f32 %v927, %v1115
  %v1117 = vpop.f32.mrf.mxu0
  %1118 = vmatprep.mubr.bf16.mxu0 0
  %1119 = vmatmul.mubr.bf16.gmra.mxu0 %v965
  %v1120 = vpop.f32.mrf.mxu0
  %v1121 = vadd.f32 %v927, %v1120
  %v1122 = vpop.f32.mrf.mxu0
  %v1123 = vpop.f32.mrf.mxu0
  %v1124 = vadd.f32 %v927, %v1123
  %v1125 = vpop.f32.mrf.mxu0
  %1126 = vmatprep.mubr.bf16.mxu0 0
  %1127 = vmatmul.mubr.bf16.gmra.mxu0 %v968
  %v1128 = vpop.f32.mrf.mxu0
  %v1129 = vadd.f32 %v927, %v1128
  %v1130 = vpop.f32.mrf.mxu0
  %v1131 = vpop.f32.mrf.mxu0
  %v1132 = vadd.f32 %v927, %v1131
  %v1133 = vpop.f32.mrf.mxu0
  %1134 = vmatprep.mubr.bf16.mxu0 0
  %1135 = vmatmul.mubr.bf16.gmra.mxu0 %v971
  %v1136 = vpop.f32.mrf.mxu0
  %v1137 = vadd.f32 %v927, %v1136
  %v1138 = vpop.f32.mrf.mxu0
  %v1139 = vpop.f32.mrf.mxu0
  %v1140 = vadd.f32 %v927, %v1139
  %v1141 = vpop.f32.mrf.mxu0
  %1142 = vmatprep.mubr.bf16.mxu0 0
  %1143 = vmatmul.mubr.bf16.gmra.mxu0 %v974
  %v1144 = vpop.f32.mrf.mxu0
  %v1145 = vadd.f32 %v927, %v1144
  %v1146 = vpop.f32.mrf.mxu0
  %v1147 = vpop.f32.mrf.mxu0
  %v1148 = vadd.f32 %v927, %v1147
  %v1149 = vpop.f32.mrf.mxu0
  %1150 = vmatprep.mubr.bf16.mxu0 0
  %1151 = vmatmul.mubr.bf16.gmra.mxu0 %v977
  %v1152 = vpop.f32.mrf.mxu0
  %v1153 = vadd.f32 %v927, %v1152
  %v1154 = vpop.f32.mrf.mxu0
  %v1155 = vpop.f32.mrf.mxu0
  %v1156 = vadd.f32 %v927, %v1155
  %v1157 = vpop.f32.mrf.mxu0
  %1158 = vmatprep.mubr.bf16.mxu0 0
  %1159 = vmatmul.mubr.bf16.gmra.mxu0 %v980
  %v1160 = vpop.f32.mrf.mxu0
  %v1161 = vadd.f32 %v927, %v1160
  %v1162 = vpop.f32.mrf.mxu0
  %v1163 = vpop.f32.mrf.mxu0
  %v1164 = vadd.f32 %v927, %v1163
  %v1165 = vpop.f32.mrf.mxu0
  %1166 = vmatprep.mubr.bf16.mxu0 0
  %1167 = vmatmul.mubr.bf16.gmra.mxu0 %v983
  %v1168 = vpop.f32.mrf.mxu0
  %v1169 = vadd.f32 %v927, %v1168
  %v1170 = vpop.f32.mrf.mxu0
  %v1171 = vpop.f32.mrf.mxu0
  %v1172 = vadd.f32 %v927, %v1171
  %v1173 = vpop.f32.mrf.mxu0
  %1174 = vmatprep.mubr.bf16.mxu0 0
  %1175 = vmatmul.mubr.bf16.gmra.mxu0 %v986
  %v1176 = vpop.f32.mrf.mxu0
  %v1177 = vadd.f32 %v927, %v1176
  %v1178 = vpop.f32.mrf.mxu0
  %v1179 = vpop.f32.mrf.mxu0
  %v1180 = vadd.f32 %v927, %v1179
  %v1181 = vpop.f32.mrf.mxu0
  %1182 = vmatprep.mubr.bf16.mxu0 0
  %1183 = vmatmul.mubr.bf16.gmra.mxu0 %v989
  %v1184 = vpop.f32.mrf.mxu0
  %v1185 = vadd.f32 %v927, %v1184
  %v1186 = vpop.f32.mrf.mxu0
  %v1187 = vpop.f32.mrf.mxu0
  %v1188 = vadd.f32 %v927, %v1187
  %v1189 = vpop.f32.mrf.mxu0
  %1190 = vmatprep.mubr.bf16.mxu0 0
  %1191 = vmatmul.mubr.bf16.gmra.mxu0 %v992
  %v1192 = vpop.f32.mrf.mxu0
  %v1193 = vadd.f32 %v927, %v1192
  %v1194 = vpop.f32.mrf.mxu0
  %v1195 = vpop.f32.mrf.mxu0
  %v1196 = vadd.f32 %v927, %v1195
  %v1197 = vpop.f32.mrf.mxu0
  %1198 = vmatprep.mubr.bf16.mxu0 0
  %1199 = vmatmul.mubr.bf16.gmra.mxu0 %v995
  %v1200 = vpop.f32.mrf.mxu0
  %v1201 = vadd.f32 %v927, %v1200
  %v1202 = vpop.f32.mrf.mxu0
  %v1203 = vpop.f32.mrf.mxu0
  %v1204 = vadd.f32 %v927, %v1203
  %v1205 = vpop.f32.mrf.mxu0
  %1206 = vmatprep.mubr.bf16.mxu0 0
  %1207 = vmatmul.mubr.bf16.gmra.mxu0 %v998
  %v1208 = vpop.f32.mrf.mxu0
  %v1209 = vadd.f32 %v927, %v1208
  %v1210 = vpop.f32.mrf.mxu0
  %v1211 = vpop.f32.mrf.mxu0
  %v1212 = vadd.f32 %v927, %v1211
  %v1213 = vpop.f32.mrf.mxu0
  %1214 = vmatprep.mubr.bf16.mxu0 0
  %1215 = vmatmul.mubr.bf16.gmra.mxu0 %v1001
  %v1216 = vpop.f32.mrf.mxu0
  %v1217 = vadd.f32 %v927, %v1216
  %v1218 = vpop.f32.mrf.mxu0
  %v1219 = vpop.f32.mrf.mxu0
  %v1220 = vadd.f32 %v927, %v1219
  %v1221 = vpop.f32.mrf.mxu0
  %1222 = vmatprep.mubr.bf16.mxu0 0
  %1223 = vmatmul.mubr.bf16.gmra.mxu0 %v1004
  %v1224 = vpop.f32.mrf.mxu0
  %v1225 = vadd.f32 %v927, %v1224
  %v1226 = vpop.f32.mrf.mxu0
  %v1227 = vpop.f32.mrf.mxu0
  %v1228 = vadd.f32 %v927, %v1227
  %v1229 = vpop.f32.mrf.mxu0
  %1230 = vdwg.mxu0
  %v1231 = vmax.f32 %v1041, 0.0
  %v1232 = vmax.f32 %v1044, 0.0
  %v1233 = vmax.f32 %v1049, 0.0
  %v1234 = vmax.f32 %v1052, 0.0
  %v1235 = vmax.f32 %v1057, 0.0
  %v1236 = vmax.f32 %v1060, 0.0
  %v1237 = vmax.f32 %v1065, 0.0
  %v1238 = vmax.f32 %v1068, 0.0
  %v1239 = vmax.f32 %v1073, 0.0
  %v1240 = vmax.f32 %v1076, 0.0
  %v1241 = vmax.f32 %v1081, 0.0
  %v1242 = vmax.f32 %v1084, 0.0
  %v1243 = vmax.f32 %v1089, 0.0
  %v1244 = vmax.f32 %v1092, 0.0
  %v1245 = vmax.f32 %v1097, 0.0
  %v1246 = vmax.f32 %v1100, 0.0
  %v1247 = vmax.f32 %v1105, 0.0
  %v1248 = vmax.f32 %v1108, 0.0
  %v1249 = vmax.f32 %v1113, 0.0
  %v1250 = vmax.f32 %v1116, 0.0
  %v1251 = vmax.f32 %v1121, 0.0
  %v1252 = vmax.f32 %v1124, 0.0
  %v1253 = vmax.f32 %v1129, 0.0
  %v1254 = vmax.f32 %v1132, 0.0
  %v1255 = vmax.f32 %v1137, 0.0
  %v1256 = vmax.f32 %v1140, 0.0
  %v1257 = vmax.f32 %v1145, 0.0
  %v1258 = vmax.f32 %v1148, 0.0
  %v1259 = vmax.f32 %v1153, 0.0
  %v1260 = vmax.f32 %v1156, 0.0
  %v1261 = vmax.f32 %v1161, 0.0
  %v1262 = vmax.f32 %v1164, 0.0
  %v1263 = vmax.f32 %v1169, 0.0
  %v1264 = vmax.f32 %v1172, 0.0
  %v1265 = vmax.f32 %v1177, 0.0
  %v1266 = vmax.f32 %v1180, 0.0
  %v1267 = vmax.f32 %v1185, 0.0
  %v1268 = vmax.f32 %v1188, 0.0
  %v1269 = vmax.f32 %v1193, 0.0
  %v1270 = vmax.f32 %v1196, 0.0
  %v1271 = vmax.f32 %v1201, 0.0
  %v1272 = vmax.f32 %v1204, 0.0
  %v1273 = vmax.f32 %v1209, 0.0
  %v1274 = vmax.f32 %v1212, 0.0
  %v1275 = vmax.f32 %v1217, 0.0
  %v1276 = vmax.f32 %v1220, 0.0
  %v1277 = vmax.f32 %v1225, 0.0
  %v1278 = vmax.f32 %v1228, 0.0
  %v1279 = vpack.c.bf16 %v1232, %v1231
  %v1280 = vpack.c.bf16 %v1234, %v1233
  %v1281 = vpack.c.bf16 %v1236, %v1235
  %v1282 = vpack.c.bf16 %v1238, %v1237
  %v1283 = vpack.c.bf16 %v1240, %v1239
  %v1284 = vpack.c.bf16 %v1242, %v1241
  %v1285 = vpack.c.bf16 %v1244, %v1243
  %v1286 = vpack.c.bf16 %v1246, %v1245
  %v1287 = vpack.c.bf16 %v1248, %v1247
  %v1288 = vpack.c.bf16 %v1250, %v1249
  %v1289 = vpack.c.bf16 %v1252, %v1251
  %v1290 = vpack.c.bf16 %v1254, %v1253
  %v1291 = vpack.c.bf16 %v1256, %v1255
  %v1292 = vpack.c.bf16 %v1258, %v1257
  %v1293 = vpack.c.bf16 %v1260, %v1259
  %v1294 = vpack.c.bf16 %v1262, %v1261
  %v1295 = vpack.c.bf16 %v1264, %v1263
  %v1296 = vpack.c.bf16 %v1266, %v1265
  %v1297 = vpack.c.bf16 %v1268, %v1267
  %v1298 = vpack.c.bf16 %v1270, %v1269
  %v1299 = vpack.c.bf16 %v1272, %v1271
  %v1300 = vpack.c.bf16 %v1274, %v1273
  %v1301 = vpack.c.bf16 %v1276, %v1275
  %v1302 = vpack.c.bf16 %v1278, %v1277
  %v1303 = vld [vmem:[%s4] sm:$0xf]
  %v1304 = vld [vmem:[%s4 + $0x4] sm:$0xf]
  %v1305 = vld [vmem:[%s6] sm:$0x1]
  %v1307 = vlaneseq
  %v1308 = vshrl.u32 %v1307, 7
  %v1309 = vsub.s32 0, %v1308
  %v1310 = vrot.slane %v1305, %v1309
  %v1314 = vunpack.c.l.b16 %v1303
  %v1315 = vunpack.c.l.b16 %v1304
  %v1316 = vpack.c.b16 %v1315, %v1314
  %v1319 = vsel %vm599, %v1279, 0
  %v1322 = vsel %vm599, %v1280, 0
  %v1325 = vsel %vm599, %v1281, 0
  %v1328 = vsel %vm599, %v1282, 0
  %v1331 = vsel %vm599, %v1283, 0
  %v1334 = vsel %vm599, %v1284, 0
  %v1337 = vsel %vm599, %v1285, 0
  %v1340 = vsel %vm599, %v1286, 0
  %v1343 = vsel %vm599, %v1287, 0
  %v1346 = vsel %vm599, %v1288, 0
  %v1349 = vsel %vm599, %v1289, 0
  %v1352 = vsel %vm599, %v1290, 0
  %v1355 = vsel %vm599, %v1291, 0
  %v1358 = vsel %vm599, %v1292, 0
  %v1361 = vsel %vm599, %v1293, 0
  %v1364 = vsel %vm599, %v1294, 0
  %v1367 = vsel %vm599, %v1295, 0
  %v1370 = vsel %vm599, %v1296, 0
  %v1373 = vsel %vm599, %v1297, 0
  %v1376 = vsel %vm599, %v1298, 0
  %v1379 = vsel %vm599, %v1299, 0
  %v1382 = vsel %vm599, %v1300, 0
  %v1385 = vsel %vm599, %v1301, 0
  %v1388 = vsel %vm599, %v1302, 0
  %1390 = vmatprep.subr.bf16.mxu0 0
  %1391 = vmatpush1.bf16.msra.mxu0 0
  %1392 = vmatprep.subr.bf16.mxu0 0
  %1393 = vmatpush1.bf16.msra.mxu0 0
  %1394 = vmatprep.subr.bf16.mxu0 0
  %1395 = vmatpush1.bf16.msra.mxu0 0
  %1396 = vmatprep.subr.bf16.mxu0 0
  %1397 = vmatpush1.bf16.msra.mxu0 0
  %1398 = vmatprep.subr.bf16.mxu0 0
  %1399 = vmatpush1.bf16.msra.mxu0 0
  %1400 = vmatprep.subr.bf16.mxu0 0
  %1401 = vmatpush1.bf16.msra.mxu0 0
  %1402 = vmatprep.subr.bf16.mxu0 0
  %1403 = vmatpush1.bf16.msra.mxu0 0
  %1404 = vmatprep.subr.bf16.mxu0 0
  %1405 = vmatpush1.bf16.msra.mxu0 %v1316
  %1406 = vmatprep.subr.bf16.mxu0 0
  %1407 = vmatpush2.bf16.msra.mxu0 0
  %1408 = vmatprep.subr.bf16.mxu0 0
  %1409 = vmatpush2.bf16.msra.mxu0 0
  %1410 = vmatprep.subr.bf16.mxu0 0
  %1411 = vmatpush2.bf16.msra.mxu0 0
  %1412 = vmatprep.subr.bf16.mxu0 0
  %1413 = vmatpush2.bf16.msra.mxu0 0
  %1414 = vmatprep.subr.bf16.mxu0 0
  %1415 = vmatpush2.bf16.msra.mxu0 0
  %1416 = vmatprep.subr.bf16.mxu0 0
  %1417 = vmatpush2.bf16.msra.mxu0 0
  %1418 = vmatprep.subr.bf16.mxu0 0
  %1419 = vmatpush2.bf16.msra.mxu0 0
  %1420 = vmatprep.subr.bf16.mxu0 0
  %1421 = vmatpush2.bf16.msra.mxu0 0
  %1422 = vmatprep.mubr.bf16.mxu0 0
  %1423 = vmatmul.mubr.bf16.gmra.mxu0 %v1319
  %v1424 = vpop.f32.mrf.mxu0
  %v1425 = vadd.f32 %v1310, %v1424
  %v1426 = vpop.f32.mrf.mxu0
  %v1427 = vpop.f32.mrf.mxu0
  %v1428 = vadd.f32 %v1310, %v1427
  %v1429 = vpop.f32.mrf.mxu0
  %1430 = vmatprep.mubr.bf16.mxu0 0
  %1431 = vmatmul.mubr.bf16.gmra.mxu0 %v1322
  %v1432 = vpop.f32.mrf.mxu0
  %v1433 = vadd.f32 %v1310, %v1432
  %v1434 = vpop.f32.mrf.mxu0
  %v1435 = vpop.f32.mrf.mxu0
  %v1436 = vadd.f32 %v1310, %v1435
  %v1437 = vpop.f32.mrf.mxu0
  %1438 = vmatprep.mubr.bf16.mxu0 0
  %1439 = vmatmul.mubr.bf16.gmra.mxu0 %v1325
  %v1440 = vpop.f32.mrf.mxu0
  %v1441 = vadd.f32 %v1310, %v1440
  %v1442 = vpop.f32.mrf.mxu0
  %v1443 = vpop.f32.mrf.mxu0
  %v1444 = vadd.f32 %v1310, %v1443
  %v1445 = vpop.f32.mrf.mxu0
  %1446 = vmatprep.mubr.bf16.mxu0 0
  %1447 = vmatmul.mubr.bf16.gmra.mxu0 %v1328
  %v1448 = vpop.f32.mrf.mxu0
  %v1449 = vadd.f32 %v1310, %v1448
  %v1450 = vpop.f32.mrf.mxu0
  %v1451 = vpop.f32.mrf.mxu0
  %v1452 = vadd.f32 %v1310, %v1451
  %v1453 = vpop.f32.mrf.mxu0
  %1454 = vmatprep.mubr.bf16.mxu0 0
  %1455 = vmatmul.mubr.bf16.gmra.mxu0 %v1331
  %v1456 = vpop.f32.mrf.mxu0
  %v1457 = vadd.f32 %v1310, %v1456
  %v1458 = vpop.f32.mrf.mxu0
  %v1459 = vpop.f32.mrf.mxu0
  %v1460 = vadd.f32 %v1310, %v1459
  %v1461 = vpop.f32.mrf.mxu0
  %1462 = vmatprep.mubr.bf16.mxu0 0
  %1463 = vmatmul.mubr.bf16.gmra.mxu0 %v1334
  %v1464 = vpop.f32.mrf.mxu0
  %v1465 = vadd.f32 %v1310, %v1464
  %v1466 = vpop.f32.mrf.mxu0
  %v1467 = vpop.f32.mrf.mxu0
  %v1468 = vadd.f32 %v1310, %v1467
  %v1469 = vpop.f32.mrf.mxu0
  %1470 = vmatprep.mubr.bf16.mxu0 0
  %1471 = vmatmul.mubr.bf16.gmra.mxu0 %v1337
  %v1472 = vpop.f32.mrf.mxu0
  %v1473 = vadd.f32 %v1310, %v1472
  %v1474 = vpop.f32.mrf.mxu0
  %v1475 = vpop.f32.mrf.mxu0
  %v1476 = vadd.f32 %v1310, %v1475
  %v1477 = vpop.f32.mrf.mxu0
  %1478 = vmatprep.mubr.bf16.mxu0 0
  %1479 = vmatmul.mubr.bf16.gmra.mxu0 %v1340
  %v1480 = vpop.f32.mrf.mxu0
  %v1481 = vadd.f32 %v1310, %v1480
  %v1482 = vpop.f32.mrf.mxu0
  %v1483 = vpop.f32.mrf.mxu0
  %v1484 = vadd.f32 %v1310, %v1483
  %v1485 = vpop.f32.mrf.mxu0
  %1486 = vmatprep.mubr.bf16.mxu0 0
  %1487 = vmatmul.mubr.bf16.gmra.mxu0 %v1343
  %v1488 = vpop.f32.mrf.mxu0
  %v1489 = vadd.f32 %v1310, %v1488
  %v1490 = vpop.f32.mrf.mxu0
  %v1491 = vpop.f32.mrf.mxu0
  %v1492 = vadd.f32 %v1310, %v1491
  %v1493 = vpop.f32.mrf.mxu0
  %1494 = vmatprep.mubr.bf16.mxu0 0
  %1495 = vmatmul.mubr.bf16.gmra.mxu0 %v1346
  %v1496 = vpop.f32.mrf.mxu0
  %v1497 = vadd.f32 %v1310, %v1496
  %v1498 = vpop.f32.mrf.mxu0
  %v1499 = vpop.f32.mrf.mxu0
  %v1500 = vadd.f32 %v1310, %v1499
  %v1501 = vpop.f32.mrf.mxu0
  %1502 = vmatprep.mubr.bf16.mxu0 0
  %1503 = vmatmul.mubr.bf16.gmra.mxu0 %v1349
  %v1504 = vpop.f32.mrf.mxu0
  %v1505 = vadd.f32 %v1310, %v1504
  %v1506 = vpop.f32.mrf.mxu0
  %v1507 = vpop.f32.mrf.mxu0
  %v1508 = vadd.f32 %v1310, %v1507
  %v1509 = vpop.f32.mrf.mxu0
  %1510 = vmatprep.mubr.bf16.mxu0 0
  %1511 = vmatmul.mubr.bf16.gmra.mxu0 %v1352
  %v1512 = vpop.f32.mrf.mxu0
  %v1513 = vadd.f32 %v1310, %v1512
  %v1514 = vpop.f32.mrf.mxu0
  %v1515 = vpop.f32.mrf.mxu0
  %v1516 = vadd.f32 %v1310, %v1515
  %v1517 = vpop.f32.mrf.mxu0
  %1518 = vmatprep.mubr.bf16.mxu0 0
  %1519 = vmatmul.mubr.bf16.gmra.mxu0 %v1355
  %v1520 = vpop.f32.mrf.mxu0
  %v1521 = vadd.f32 %v1310, %v1520
  %v1522 = vpop.f32.mrf.mxu0
  %v1523 = vpop.f32.mrf.mxu0
  %v1524 = vadd.f32 %v1310, %v1523
  %v1525 = vpop.f32.mrf.mxu0
  %1526 = vmatprep.mubr.bf16.mxu0 0
  %1527 = vmatmul.mubr.bf16.gmra.mxu0 %v1358
  %v1528 = vpop.f32.mrf.mxu0
  %v1529 = vadd.f32 %v1310, %v1528
  %v1530 = vpop.f32.mrf.mxu0
  %v1531 = vpop.f32.mrf.mxu0
  %v1532 = vadd.f32 %v1310, %v1531
  %v1533 = vpop.f32.mrf.mxu0
  %1534 = vmatprep.mubr.bf16.mxu0 0
  %1535 = vmatmul.mubr.bf16.gmra.mxu0 %v1361
  %v1536 = vpop.f32.mrf.mxu0
  %v1537 = vadd.f32 %v1310, %v1536
  %v1538 = vpop.f32.mrf.mxu0
  %v1539 = vpop.f32.mrf.mxu0
  %v1540 = vadd.f32 %v1310, %v1539
  %v1541 = vpop.f32.mrf.mxu0
  %1542 = vmatprep.mubr.bf16.mxu0 0
  %1543 = vmatmul.mubr.bf16.gmra.mxu0 %v1364
  %v1544 = vpop.f32.mrf.mxu0
  %v1545 = vadd.f32 %v1310, %v1544
  %v1546 = vpop.f32.mrf.mxu0
  %v1547 = vpop.f32.mrf.mxu0
  %v1548 = vadd.f32 %v1310, %v1547
  %v1549 = vpop.f32.mrf.mxu0
  %1550 = vmatprep.mubr.bf16.mxu0 0
  %1551 = vmatmul.mubr.bf16.gmra.mxu0 %v1367
  %v1552 = vpop.f32.mrf.mxu0
  %v1553 = vadd.f32 %v1310, %v1552
  %v1554 = vpop.f32.mrf.mxu0
  %v1555 = vpop.f32.mrf.mxu0
  %v1556 = vadd.f32 %v1310, %v1555
  %v1557 = vpop.f32.mrf.mxu0
  %1558 = vmatprep.mubr.bf16.mxu0 0
  %1559 = vmatmul.mubr.bf16.gmra.mxu0 %v1370
  %v1560 = vpop.f32.mrf.mxu0
  %v1561 = vadd.f32 %v1310, %v1560
  %v1562 = vpop.f32.mrf.mxu0
  %v1563 = vpop.f32.mrf.mxu0
  %v1564 = vadd.f32 %v1310, %v1563
  %v1565 = vpop.f32.mrf.mxu0
  %1566 = vmatprep.mubr.bf16.mxu0 0
  %1567 = vmatmul.mubr.bf16.gmra.mxu0 %v1373
  %v1568 = vpop.f32.mrf.mxu0
  %v1569 = vadd.f32 %v1310, %v1568
  %v1570 = vpop.f32.mrf.mxu0
  %v1571 = vpop.f32.mrf.mxu0
  %v1572 = vadd.f32 %v1310, %v1571
  %v1573 = vpop.f32.mrf.mxu0
  %1574 = vmatprep.mubr.bf16.mxu0 0
  %1575 = vmatmul.mubr.bf16.gmra.mxu0 %v1376
  %v1576 = vpop.f32.mrf.mxu0
  %v1577 = vadd.f32 %v1310, %v1576
  %v1578 = vpop.f32.mrf.mxu0
  %v1579 = vpop.f32.mrf.mxu0
  %v1580 = vadd.f32 %v1310, %v1579
  %v1581 = vpop.f32.mrf.mxu0
  %1582 = vmatprep.mubr.bf16.mxu0 0
  %1583 = vmatmul.mubr.bf16.gmra.mxu0 %v1379
  %v1584 = vpop.f32.mrf.mxu0
  %v1585 = vadd.f32 %v1310, %v1584
  %v1586 = vpop.f32.mrf.mxu0
  %v1587 = vpop.f32.mrf.mxu0
  %v1588 = vadd.f32 %v1310, %v1587
  %v1589 = vpop.f32.mrf.mxu0
  %1590 = vmatprep.mubr.bf16.mxu0 0
  %1591 = vmatmul.mubr.bf16.gmra.mxu0 %v1382
  %v1592 = vpop.f32.mrf.mxu0
  %v1593 = vadd.f32 %v1310, %v1592
  %v1594 = vpop.f32.mrf.mxu0
  %v1595 = vpop.f32.mrf.mxu0
  %v1596 = vadd.f32 %v1310, %v1595
  %v1597 = vpop.f32.mrf.mxu0
  %1598 = vmatprep.mubr.bf16.mxu0 0
  %1599 = vmatmul.mubr.bf16.gmra.mxu0 %v1385
  %v1600 = vpop.f32.mrf.mxu0
  %v1601 = vadd.f32 %v1310, %v1600
  %v1602 = vpop.f32.mrf.mxu0
  %v1603 = vpop.f32.mrf.mxu0
  %v1604 = vadd.f32 %v1310, %v1603
  %v1605 = vpop.f32.mrf.mxu0
  %1606 = vmatprep.mubr.bf16.mxu0 0
  %1607 = vmatmul.mubr.bf16.gmra.mxu0 %v1388
  %v1608 = vpop.f32.mrf.mxu0
  %v1609 = vadd.f32 %v1310, %v1608
  %v1610 = vpop.f32.mrf.mxu0
  %v1611 = vpop.f32.mrf.mxu0
  %v1612 = vadd.f32 %v1310, %v1611
  %v1613 = vpop.f32.mrf.mxu0
  %1614 = vdwg.mxu0
  %1615 = vst [vmem:[%s7] sm:$0xff] %v1425
  %1616 = vst [vmem:[%s7 + $0x8] sm:$0xff] %v1428
  %1617 = vst [vmem:[%s7 + $0x10] sm:$0xff] %v1433
  %1618 = vst [vmem:[%s7 + $0x18] sm:$0xff] %v1436
  %1619 = vst [vmem:[%s7 + $0x20] sm:$0xff] %v1441
  %1620 = vst [vmem:[%s7 + $0x28] sm:$0xff] %v1444
  %1621 = vst [vmem:[%s7 + $0x30] sm:$0xff] %v1449
  %1622 = vst [vmem:[%s7 + $0x38] sm:$0xff] %v1452
  %1623 = vst [vmem:[%s7 + $0x40] sm:$0xff] %v1457
  %1624 = vst [vmem:[%s7 + $0x48] sm:$0xff] %v1460
  %1625 = vst [vmem:[%s7 + $0x50] sm:$0xff] %v1465
  %1626 = vst [vmem:[%s7 + $0x58] sm:$0xff] %v1468
  %1627 = vst [vmem:[%s7 + $0x60] sm:$0xff] %v1473
  %1628 = vst [vmem:[%s7 + $0x68] sm:$0xff] %v1476
  %1629 = vst [vmem:[%s7 + $0x70] sm:$0xff] %v1481
  %1630 = vst [vmem:[%s7 + $0x78] sm:$0xff] %v1484
  %1631 = vst [vmem:[%s7 + $0x80] sm:$0xff] %v1489
  %1632 = vst [vmem:[%s7 + $0x88] sm:$0xff] %v1492
  %1633 = vst [vmem:[%s7 + $0x90] sm:$0xff] %v1497
  %1634 = vst [vmem:[%s7 + $0x98] sm:$0xff] %v1500
  %1635 = vst [vmem:[%s7 + $0xa0] sm:$0xff] %v1505
  %1636 = vst [vmem:[%s7 + $0xa8] sm:$0xff] %v1508
  %1637 = vst [vmem:[%s7 + $0xb0] sm:$0xff] %v1513
  %1638 = vst [vmem:[%s7 + $0xb8] sm:$0xff] %v1516
  %1639 = vst [vmem:[%s7 + $0xc0] sm:$0xff] %v1521
  %1640 = vst [vmem:[%s7 + $0xc8] sm:$0xff] %v1524
  %1641 = vst [vmem:[%s7 + $0xd0] sm:$0xff] %v1529
  %1642 = vst [vmem:[%s7 + $0xd8] sm:$0xff] %v1532
  %1643 = vst [vmem:[%s7 + $0xe0] sm:$0xff] %v1537
  %1644 = vst [vmem:[%s7 + $0xe8] sm:$0xff] %v1540
  %1645 = vst [vmem:[%s7 + $0xf0] sm:$0xff] %v1545
  %1646 = vst [vmem:[%s7 + $0xf8] sm:$0xff] %v1548
  %1647 = vst [vmem:[%s7 + $0x100] sm:$0xff] %v1553
  %1648 = vst [vmem:[%s7 + $0x108] sm:$0xff] %v1556
  %1649 = vst [vmem:[%s7 + $0x110] sm:$0xff] %v1561
  %1650 = vst [vmem:[%s7 + $0x118] sm:$0xff] %v1564
  %1651 = vst [vmem:[%s7 + $0x120] sm:$0xff] %v1569
  %1652 = vst [vmem:[%s7 + $0x128] sm:$0xff] %v1572
  %1653 = vst [vmem:[%s7 + $0x130] sm:$0xff] %v1577
  %1654 = vst [vmem:[%s7 + $0x138] sm:$0xff] %v1580
  %1655 = vst [vmem:[%s7 + $0x140] sm:$0xff] %v1585
  %1656 = vst [vmem:[%s7 + $0x148] sm:$0xff] %v1588
  %1657 = vst [vmem:[%s7 + $0x150] sm:$0xff] %v1593
  %1658 = vst [vmem:[%s7 + $0x158] sm:$0xff] %v1596
  %1659 = vst [vmem:[%s7 + $0x160] sm:$0xff] %v1601
  %1660 = vst [vmem:[%s7 + $0x168] sm:$0xff] %v1604
  %1661 = vst [vmem:[%s7 + $0x170] sm:$0xff] %v1609
  %1662 = vst [vmem:[%s7 + $0x178] sm:$0xff] %v1612
  // Predicated region
  $region30: #{forward.3} parent=0 // pred_check
    _
  $region31: #{forward.3} parent=0 // pred_check_branch
    %1664 = sbr.rel (0) target = $region33
  $region32: #{forward.3} parent=0 // pred_region
    _
  $region33: #{forward.3} parent=0 // pred_fallthru
    _
  // Predicated region
  $region34: #{forward.3} parent=0 // pred_check
    _
  $region35: #{forward.3} parent=0 // pred_check_branch
    %1666 = sbr.rel (0) target = $region37
  $region36: #{forward.3} parent=0 // pred_region
    _
  $region37: #{forward.3} parent=0 // pred_fallthru
    _

// kernel: forward.2
$region0: #{forward.2}
  #allocation0 [shape = 'u32[]', space=smem, size = 0x4, offset = 0x4, fixed_abs, tag = 'smem constant byte address 0x4 - core index']
  #allocation1 [shape = 'u32[144,128]{1,0:T(1,128)}', space=vmem, size = 0x12000, scoped, tag = 'internal scratch']
  #allocation2 [shape = 'f32[2,8,8,288]{3,2,1,0:T(8,128)}', space=vmem, size = 0x30000, scoped, tag = 'scratch operand']
  %s0 = inlined_call_operand.vmem [shape: bf16[3,2,8,8,32], index: 0, kind: input, shape index: {}]
  %s1 = inlined_call_operand.vmem [shape: bf16[32,16], index: 1, kind: input, shape index: {}]
  %s2 = inlined_call_operand.vmem [shape: f32[3,16], index: 2, kind: input, shape index: {}]
  %s3 = inlined_call_operand.vmem [shape: bf16[16,32], index: 3, kind: input, shape index: {}]
  %s4 = inlined_call_operand.vmem [shape: f32[3,32], index: 4, kind: input, shape index: {}]
  %s5 = inlined_call_operand.vmem [shape: bf16[288,32], index: 5, kind: input, shape index: {}]
  %s6 = inlined_call_operand.vmem [shape: f32[1,32], index: 6, kind: input, shape index: {}]
  %s7 = inlined_call_operand.vmem [shape: f32[3,32,128], index: 7, kind: output, shape index: {}]
  %s8 = sld [smem:[#allocation0]]
  $region61: #{forward.2} parent=0
    _
  %s10 = ssub.s32 1, %s8
  %s11 = scalar_select 0, %s10, %s8
  loop: start=0, step=1, limit=5
  $region2: #{forward.2} parent=0 // loop_pre_header
    _
  $region3: #{forward.2} parent=0 // loop_header
    %s13 = sphi 0, %s17
    %p14 = scmp.ge.s32.totalorder %s13, 5
    %s23 = sphi 0, %s25
    %s26 = sphi 0, %s23
    %s27 = sphi 0, %s26
    %s43 = sphi 0, %s27
    %s47 = sphi 0, %s47
    %s49 = sphi 0, %s47
    %s50 = sphi 0, %s49
    %s64 = sphi 0, %s50
    %s68 = sphi 0, %s68
    %s70 = sphi 0, %s68
    %s71 = sphi 0, %s70
    %s85 = sphi 0, %s71
    %s89 = sphi 0, %s89
    %s91 = sphi 0, %s89
    %s92 = sphi 0, %s91
    %s106 = sphi 0, %s92
    %s110 = sphi 0, %s110
    %s112 = sphi 0, %s110
    %s113 = sphi 0, %s112
    %s127 = sphi 0, %s113
    %s131 = sphi 0, %s131
    %s133 = sphi 0, %s131
    %s134 = sphi 0, %s133
    %s148 = sphi 0, %s134
    %s152 = sphi 0, %s152
    %s154 = sphi 0, %s152
    %s155 = sphi 0, %s154
    %s169 = sphi 0, %s155
    %s175 = sphi 0, %s177
    %s178 = sphi 0, %s175
    %s179 = sphi 0, %s178
    %s195 = sphi 0, %s179
  $region4: #{forward.2} parent=0 // loop_header_branch
    %16 = sbr.rel (%p14) target = $region8
  $region5: #{forward.2} parent=0 // loop_body
    %s18 = ssub.s32 %s13, 1
    %s19 = ssub.s32 %s13, 2
    %s20 = sadd.s32 %s13, 1
    %s21 = ssub.s32 %s13, %s20
    %p22 = scmp.eq.s32.totalorder %s21, 0
    %s24 = sadd.s32 %s23, 1
    %s25 = scalar_select %p22, %s23, %s24
    %p28 = pneg %p22
    %p29 = scmp.eq.s32.totalorder %s13, 2
    %p30 = por %p28, %p29
    %p31 = scmp.ne.s32.totalorder %s23, %s26
    %p32 = scmp.eq.s32.totalorder %s13, 0
    %p33 = por %p31, %p32
    %p34 = scmp.ne.s32.totalorder %s23, %s26
    %p35 = scmp.eq.s32.totalorder %s18, 2
    %p36 = por %p34, %p35
    %p37 = scmp.ne.s32.totalorder %s26, %s27
    %p38 = scmp.eq.s32.totalorder %s18, 0
    %p39 = por %p37, %p38
    %p40 = scmp.ne.s32.totalorder %s26, %s27
    %p41 = scmp.eq.s32.totalorder %s19, 2
    %p42 = por %p40, %p41
    %p44 = scmp.ne.s32.totalorder %s27, %s43
    %p45 = scmp.eq.s32.totalorder %s19, 0
    %p46 = por %p44, %p45
    %s48 = sadd.s32 %s47, 1
    %p51 = scmp.eq.s32.totalorder %s13, 2
    %p52 = scmp.ne.s32.totalorder %s47, %s49
    %p53 = scmp.eq.s32.totalorder %s13, 0
    %p54 = por %p52, %p53
    %p55 = scmp.ne.s32.totalorder %s47, %s49
    %p56 = scmp.eq.s32.totalorder %s18, 2
    %p57 = por %p55, %p56
    %p58 = scmp.ne.s32.totalorder %s49, %s50
    %p59 = scmp.eq.s32.totalorder %s18, 0
    %p60 = por %p58, %p59
    %p61 = scmp.ne.s32.totalorder %s49, %s50
    %p62 = scmp.eq.s32.totalorder %s19, 2
    %p63 = por %p61, %p62
    %p65 = scmp.ne.s32.totalorder %s50, %s64
    %p66 = scmp.eq.s32.totalorder %s19, 0
    %p67 = por %p65, %p66
    %s69 = sadd.s32 %s68, 1
    %p72 = scmp.eq.s32.totalorder %s13, 2
    %p73 = scmp.ne.s32.totalorder %s68, %s70
    %p74 = scmp.eq.s32.totalorder %s13, 0
    %p75 = por %p73, %p74
    %p76 = scmp.ne.s32.totalorder %s68, %s70
    %p77 = scmp.eq.s32.totalorder %s18, 2
    %p78 = por %p76, %p77
    %p79 = scmp.ne.s32.totalorder %s70, %s71
    %p80 = scmp.eq.s32.totalorder %s18, 0
    %p81 = por %p79, %p80
    %p82 = scmp.ne.s32.totalorder %s70, %s71
    %p83 = scmp.eq.s32.totalorder %s19, 2
    %p84 = por %p82, %p83
    %p86 = scmp.ne.s32.totalorder %s71, %s85
    %p87 = scmp.eq.s32.totalorder %s19, 0
    %p88 = por %p86, %p87
    %s90 = sadd.s32 %s89, 1
    %p93 = scmp.eq.s32.totalorder %s13, 2
    %p94 = scmp.ne.s32.totalorder %s89, %s91
    %p95 = scmp.eq.s32.totalorder %s13, 0
    %p96 = por %p94, %p95
    %p97 = scmp.ne.s32.totalorder %s89, %s91
    %p98 = scmp.eq.s32.totalorder %s18, 2
    %p99 = por %p97, %p98
    %p100 = scmp.ne.s32.totalorder %s91, %s92
    %p101 = scmp.eq.s32.totalorder %s18, 0
    %p102 = por %p100, %p101
    %p103 = scmp.ne.s32.totalorder %s91, %s92
    %p104 = scmp.eq.s32.totalorder %s19, 2
    %p105 = por %p103, %p104
    %p107 = scmp.ne.s32.totalorder %s92, %s106
    %p108 = scmp.eq.s32.totalorder %s19, 0
    %p109 = por %p107, %p108
    %s111 = sadd.s32 %s110, 1
    %p114 = scmp.eq.s32.totalorder %s13, 2
    %p115 = scmp.ne.s32.totalorder %s110, %s112
    %p116 = scmp.eq.s32.totalorder %s13, 0
    %p117 = por %p115, %p116
    %p118 = scmp.ne.s32.totalorder %s110, %s112
    %p119 = scmp.eq.s32.totalorder %s18, 2
    %p120 = por %p118, %p119
    %p121 = scmp.ne.s32.totalorder %s112, %s113
    %p122 = scmp.eq.s32.totalorder %s18, 0
    %p123 = por %p121, %p122
    %p124 = scmp.ne.s32.totalorder %s112, %s113
    %p125 = scmp.eq.s32.totalorder %s19, 2
    %p126 = por %p124, %p125
    %p128 = scmp.ne.s32.totalorder %s113, %s127
    %p129 = scmp.eq.s32.totalorder %s19, 0
    %p130 = por %p128, %p129
    %s132 = sadd.s32 %s131, 1
    %p135 = scmp.eq.s32.totalorder %s13, 2
    %p136 = scmp.ne.s32.totalorder %s131, %s133
    %p137 = scmp.eq.s32.totalorder %s13, 0
    %p138 = por %p136, %p137
    %p139 = scmp.ne.s32.totalorder %s131, %s133
    %p140 = scmp.eq.s32.totalorder %s18, 2
    %p141 = por %p139, %p140
    %p142 = scmp.ne.s32.totalorder %s133, %s134
    %p143 = scmp.eq.s32.totalorder %s18, 0
    %p144 = por %p142, %p143
    %p145 = scmp.ne.s32.totalorder %s133, %s134
    %p146 = scmp.eq.s32.totalorder %s19, 2
    %p147 = por %p145, %p146
    %p149 = scmp.ne.s32.totalorder %s134, %s148
    %p150 = scmp.eq.s32.totalorder %s19, 0
    %p151 = por %p149, %p150
    %s153 = sadd.s32 %s152, 1
    %p156 = scmp.eq.s32.totalorder %s13, 2
    %p157 = scmp.ne.s32.totalorder %s152, %s154
    %p158 = scmp.eq.s32.totalorder %s13, 0
    %p159 = por %p157, %p158
    %p160 = scmp.ne.s32.totalorder %s152, %s154
    %p161 = scmp.eq.s32.totalorder %s18, 2
    %p162 = por %p160, %p161
    %p163 = scmp.ne.s32.totalorder %s154, %s155
    %p164 = scmp.eq.s32.totalorder %s18, 0
    %p165 = por %p163, %p164
    %p166 = scmp.ne.s32.totalorder %s154, %s155
    %p167 = scmp.eq.s32.totalorder %s19, 2
    %p168 = por %p166, %p167
    %p170 = scmp.ne.s32.totalorder %s155, %s169
    %p171 = scmp.eq.s32.totalorder %s19, 0
    %p172 = por %p170, %p171
    %s173 = ssub.s32 %s13, %s20
    %p174 = scmp.eq.s32.totalorder %s173, 0
    %s176 = sadd.s32 %s175, 1
    %s177 = scalar_select %p174, %s175, %s176
    %p180 = pneg %p174
    %p181 = scmp.eq.s32.totalorder %s13, 2
    %p182 = por %p180, %p181
    %p183 = scmp.ne.s32.totalorder %s175, %s178
    %p184 = scmp.eq.s32.totalorder %s13, 0
    %p185 = por %p183, %p184
    %p186 = scmp.ne.s32.totalorder %s175, %s178
    %p187 = scmp.eq.s32.totalorder %s18, 2
    %p188 = por %p186, %p187
    %p189 = scmp.ne.s32.totalorder %s178, %s179
    %p190 = scmp.eq.s32.totalorder %s18, 0
    %p191 = por %p189, %p190
    %p192 = scmp.ne.s32.totalorder %s178, %s179
    %p193 = scmp.eq.s32.totalorder %s19, 2
    %p194 = por %p192, %p193
    %p196 = scmp.ne.s32.totalorder %s179, %s195
    %p197 = scmp.eq.s32.totalorder %s19, 0
    %p198 = por %p196, %p197
    %p199 = scmp.le.s32.totalorder 1, %s13
    %p200 = scmp.lt.s32.totalorder %s13, 4
    %p201 = pnand %p199, %p200
    %p202 = pneg %p201
    // Predicated region
    $region9: #{forward.2} parent=5 // pred_check
      _
    $region10: #{forward.2} parent=5 // pred_check_branch
      %204 = sbr.rel (%p201) target = $region12
    $region11: #{forward.2} parent=5 // pred_region
      %s205 = ssub.s32 %s13, 1
      // Predicated region
      $region13: #{forward.2} parent=11 // pred_check
        %p206 = pneg %p60
      $region14: #{forward.2} parent=11 // pred_check_branch
        %208 = sbr.rel (%p206) target = $region16
      $region15: #{forward.2} parent=11 // pred_region
        _
      $region16: #{forward.2} parent=11 // pred_fallthru
        _
      // Predicated region
      $region17: #{forward.2} parent=11 // pred_check
        %p209 = pneg %p81
      $region18: #{forward.2} parent=11 // pred_check_branch
        %211 = sbr.rel (%p209) target = $region20
      $region19: #{forward.2} parent=11 // pred_region
        _
      $region20: #{forward.2} parent=11 // pred_fallthru
        _
      // Predicated region
      $region21: #{forward.2} parent=11 // pred_check
        %p212 = pneg %p102
      $region22: #{forward.2} parent=11 // pred_check_branch
        %214 = sbr.rel (%p212) target = $region24
      $region23: #{forward.2} parent=11 // pred_region
        _
      $region24: #{forward.2} parent=11 // pred_fallthru
        _
      // Predicated region
      $region25: #{forward.2} parent=11 // pred_check
        %p215 = pneg %p123
      $region26: #{forward.2} parent=11 // pred_check_branch
        %217 = sbr.rel (%p215) target = $region28
      $region27: #{forward.2} parent=11 // pred_region
        _
      $region28: #{forward.2} parent=11 // pred_fallthru
        _
      // Predicated region
      $region29: #{forward.2} parent=11 // pred_check
        %p218 = pneg %p144
      $region30: #{forward.2} parent=11 // pred_check_branch
        %220 = sbr.rel (%p218) target = $region32
      $region31: #{forward.2} parent=11 // pred_region
        _
      $region32: #{forward.2} parent=11 // pred_fallthru
        _
      // Predicated region
      $region33: #{forward.2} parent=11 // pred_check
        %p221 = pneg %p165
      $region34: #{forward.2} parent=11 // pred_check_branch
        %223 = sbr.rel (%p221) target = $region36
      $region35: #{forward.2} parent=11 // pred_region
        _
      $region36: #{forward.2} parent=11 // pred_fallthru
        _
    $region12: #{forward.2} parent=5 // pred_fallthru
      _
    %p224 = scmp.lt.s32.totalorder %s13, 3
    // Predicated region
    $region37: #{forward.2} parent=5 // pred_check
      %p225 = pneg %p224
    $region38: #{forward.2} parent=5 // pred_check_branch
      %227 = sbr.rel (%p225) target = $region40
    $region39: #{forward.2} parent=5 // pred_region
      // Predicated region
      $region41: #{forward.2} parent=39 // pred_check
        %p228 = pneg %p33
      $region42: #{forward.2} parent=39 // pred_check_branch
        %230 = sbr.rel (%p228) target = $region44
      $region43: #{forward.2} parent=39 // pred_region
        %p231 = scmp.lt.s32.totalorder %s13, 2
        %s232 = scalar_select %p231, %s13, 2
        %s233 = smul.addr %s232, 16
        %s234 = smul.addr %s233, 4
        %s235 = scalar_lea.vmem %s0, %s234
      $region44: #{forward.2} parent=39 // pred_fallthru
        _
    $region40: #{forward.2} parent=5 // pred_fallthru
      _
    %p236 = scmp.le.s32.totalorder 1, %s13
    %p237 = scmp.lt.s32.totalorder %s13, 4
    %p238 = pnand %p236, %p237
    %p239 = pneg %p238
    // Predicated region
    $region45: #{forward.2} parent=5 // pred_check
      _
    $region46: #{forward.2} parent=5 // pred_check_branch
      %241 = sbr.rel (%p238) target = $region48
    $region47: #{forward.2} parent=5 // pred_region
      %s242 = ssub.s32 %s13, 1
      %p243 = scmp.lt.s32.totalorder %s18, 2
      %s244 = scalar_select %p243, %s18, 2
      %s245 = smul.addr %s244, 16
      %s246 = smul.addr %s245, 4
      %s247 = scalar_lea.vmem %s0, %s246
      %p248 = pneg %p39
      %p249 = pneg %p36
      %p250 = pneg %p60
      %p251 = pneg %p57
      %p252 = pneg %p81
      %p253 = pneg %p78
      %p254 = pneg %p102
      %p255 = pneg %p99
      %p256 = pneg %p123
      %p257 = pneg %p120
      %p258 = pneg %p144
      %p259 = pneg %p141
      %p260 = pneg %p165
      %p261 = pneg %p162
      %p262 = pneg %p191
      %p263 = pneg %p188
      %p264 = scmp.lt.s32.totalorder %s18, 2
      %s265 = scalar_select %p264, %s18, 2
      %s266 = smul.addr %s265, 4
      %s267 = smul.addr %s266, 8
      %s268 = scalar_lea.vmem %s7, %s267
      %p269 = scmp.lt.s32.totalorder %s18, 2
      %s270 = scalar_select %p269, %s18, 2
      %s271 = smul.addr %s270, 16
      %s272 = smul.addr %s271, 4
      %s273 = scalar_lea.vmem %s0, %s272
      %p274 = scmp.lt.s32.totalorder %s18, 2
      %s275 = scalar_select %p274, %s18, 2
      %s276 = smul.addr %s275, 4
      %s277 = smul.addr %s276, 8
      %s278 = scalar_lea.vmem %s7, %s277
      %v280 = vld [vmem:[%s273] sm:$0xf]
      %v281 = vld [vmem:[%s273 + $0x4] sm:$0xf]
      %v282 = vld [vmem:[%s273 + $0x8] sm:$0xf]
      %v283 = vld [vmem:[%s273 + $0xc] sm:$0xf]
      %v284 = vld [vmem:[%s273 + $0x10] sm:$0xf]
      %v285 = vld [vmem:[%s273 + $0x14] sm:$0xf]
      %v286 = vld [vmem:[%s273 + $0x18] sm:$0xf]
      %v287 = vld [vmem:[%s273 + $0x1c] sm:$0xf]
      %v288 = vld [vmem:[%s273 + $0x20] sm:$0xf]
      %v289 = vld [vmem:[%s273 + $0x24] sm:$0xf]
      %v290 = vld [vmem:[%s273 + $0x28] sm:$0xf]
      %v291 = vld [vmem:[%s273 + $0x2c] sm:$0xf]
      %v292 = vld [vmem:[%s273 + $0x30] sm:$0xf]
      %v293 = vld [vmem:[%s273 + $0x34] sm:$0xf]
      %v294 = vld [vmem:[%s273 + $0x38] sm:$0xf]
      %v295 = vld [vmem:[%s273 + $0x3c] sm:$0xf]
      %v296 = vld [vmem:[%s1] sm:$0xf]
      %v297 = vld [vmem:[%s1 + $0x4] sm:$0xf]
      %v298 = vld [vmem:[%s1 + $0x8] sm:$0xf]
      %v299 = vld [vmem:[%s1 + $0xc] sm:$0xf]
      %v300 = vld [vmem:[%s2] sm:$0x1]
      %v301 = vlaneseq
      %v302 = vshrl.u32 %v301, 7
      %v303 = vsub.s32 0, %v302
      %v304 = vrot.slane %v300, %v303
      %v321 = vunpack.c.l.b16 %v280
      %v322 = vunpack.c.l.b16 %v281
      %v323 = vunpack.c.l.b16 %v282
      %v324 = vunpack.c.l.b16 %v283
      %v325 = vunpack.c.l.b16 %v284
      %v326 = vunpack.c.l.b16 %v285
      %v327 = vunpack.c.l.b16 %v286
      %v328 = vunpack.c.l.b16 %v287
      %v329 = vunpack.c.l.b16 %v288
      %v330 = vunpack.c.l.b16 %v289
      %v331 = vunpack.c.l.b16 %v290
      %v332 = vunpack.c.l.b16 %v291
      %v333 = vunpack.c.l.b16 %v292
      %v334 = vunpack.c.l.b16 %v293
      %v335 = vunpack.c.l.b16 %v294
      %v336 = vunpack.c.l.b16 %v295
      %v337 = vpack.c.b16 %v322, %v321
      %v338 = vpack.c.b16 %v324, %v323
      %v339 = vpack.c.b16 %v326, %v325
      %v340 = vpack.c.b16 %v328, %v327
      %v341 = vpack.c.b16 %v330, %v329
      %v342 = vpack.c.b16 %v332, %v331
      %v343 = vpack.c.b16 %v334, %v333
      %v344 = vpack.c.b16 %v336, %v335
      %v349 = vunpack.c.l.b16 %v296
      %v350 = vunpack.c.l.b16 %v297
      %v351 = vunpack.c.l.b16 %v298
      %v352 = vunpack.c.l.b16 %v299
      %v353 = vpack.c.b16 %v350, %v349
      %v354 = vpack.c.b16 %v352, %v351
      %vm357 = vcmask 261120
      %v359 = vsel %vm357, %v337, 0
      %v362 = vsel %vm357, %v338, 0
      %v365 = vsel %vm357, %v339, 0
      %v368 = vsel %vm357, %v340, 0
      %v371 = vsel %vm357, %v341, 0
      %v374 = vsel %vm357, %v342, 0
      %v377 = vsel %vm357, %v343, 0
      %v380 = vsel %vm357, %v344, 0
      %382 = vmatprep.subr.bf16.mxu0 0
      %383 = vmatpush1.bf16.msra.mxu0 0
      %384 = vmatprep.subr.bf16.mxu0 0
      %385 = vmatpush1.bf16.msra.mxu0 0
      %386 = vmatprep.subr.bf16.mxu0 0
      %387 = vmatpush1.bf16.msra.mxu0 0
      %388 = vmatprep.subr.bf16.mxu0 0
      %389 = vmatpush1.bf16.msra.mxu0 0
      %390 = vmatprep.subr.bf16.mxu0 0
      %391 = vmatpush1.bf16.msra.mxu0 0
      %392 = vmatprep.subr.bf16.mxu0 0
      %393 = vmatpush1.bf16.msra.mxu0 0
      %394 = vmatprep.subr.bf16.mxu0 0
      %395 = vmatpush1.bf16.msra.mxu0 %v354
      %396 = vmatprep.subr.bf16.mxu0 0
      %397 = vmatpush1.bf16.msra.mxu0 %v353
      %398 = vmatprep.subr.bf16.mxu0 0
      %399 = vmatpush2.bf16.msra.mxu0 0
      %400 = vmatprep.subr.bf16.mxu0 0
      %401 = vmatpush2.bf16.msra.mxu0 0
      %402 = vmatprep.subr.bf16.mxu0 0
      %403 = vmatpush2.bf16.msra.mxu0 0
      %404 = vmatprep.subr.bf16.mxu0 0
      %405 = vmatpush2.bf16.msra.mxu0 0
      %406 = vmatprep.subr.bf16.mxu0 0
      %407 = vmatpush2.bf16.msra.mxu0 0
      %408 = vmatprep.subr.bf16.mxu0 0
      %409 = vmatpush2.bf16.msra.mxu0 0
      %410 = vmatprep.subr.bf16.mxu0 0
      %411 = vmatpush2.bf16.msra.mxu0 0
      %412 = vmatprep.subr.bf16.mxu0 0
      %413 = vmatpush2.bf16.msra.mxu0 0
      %414 = vmatprep.mubr.bf16.mxu0 0
      %415 = vmatmul.mubr.bf16.gmra.mxu0 %v359
      %v416 = vpop.f32.mrf.mxu0
      %v417 = vadd.f32 %v304, %v416
      %v418 = vpop.f32.mrf.mxu0
      %v419 = vpop.f32.mrf.mxu0
      %v420 = vadd.f32 %v304, %v419
      %v421 = vpop.f32.mrf.mxu0
      %422 = vmatprep.mubr.bf16.mxu0 0
      %423 = vmatmul.mubr.bf16.gmra.mxu0 %v362
      %v424 = vpop.f32.mrf.mxu0
      %v425 = vadd.f32 %v304, %v424
      %v426 = vpop.f32.mrf.mxu0
      %v427 = vpop.f32.mrf.mxu0
      %v428 = vadd.f32 %v304, %v427
      %v429 = vpop.f32.mrf.mxu0
      %430 = vmatprep.mubr.bf16.mxu0 0
      %431 = vmatmul.mubr.bf16.gmra.mxu0 %v365
      %v432 = vpop.f32.mrf.mxu0
      %v433 = vadd.f32 %v304, %v432
      %v434 = vpop.f32.mrf.mxu0
      %v435 = vpop.f32.mrf.mxu0
      %v436 = vadd.f32 %v304, %v435
      %v437 = vpop.f32.mrf.mxu0
      %438 = vmatprep.mubr.bf16.mxu0 0
      %439 = vmatmul.mubr.bf16.gmra.mxu0 %v368
      %v440 = vpop.f32.mrf.mxu0
      %v441 = vadd.f32 %v304, %v440
      %v442 = vpop.f32.mrf.mxu0
      %v443 = vpop.f32.mrf.mxu0
      %v444 = vadd.f32 %v304, %v443
      %v445 = vpop.f32.mrf.mxu0
      %446 = vmatprep.mubr.bf16.mxu0 0
      %447 = vmatmul.mubr.bf16.gmra.mxu0 %v371
      %v448 = vpop.f32.mrf.mxu0
      %v449 = vadd.f32 %v304, %v448
      %v450 = vpop.f32.mrf.mxu0
      %v451 = vpop.f32.mrf.mxu0
      %v452 = vadd.f32 %v304, %v451
      %v453 = vpop.f32.mrf.mxu0
      %454 = vmatprep.mubr.bf16.mxu0 0
      %455 = vmatmul.mubr.bf16.gmra.mxu0 %v374
      %v456 = vpop.f32.mrf.mxu0
      %v457 = vadd.f32 %v304, %v456
      %v458 = vpop.f32.mrf.mxu0
      %v459 = vpop.f32.mrf.mxu0
      %v460 = vadd.f32 %v304, %v459
      %v461 = vpop.f32.mrf.mxu0
      %462 = vmatprep.mubr.bf16.mxu0 0
      %463 = vmatmul.mubr.bf16.gmra.mxu0 %v377
      %v464 = vpop.f32.mrf.mxu0
      %v465 = vadd.f32 %v304, %v464
      %v466 = vpop.f32.mrf.mxu0
      %v467 = vpop.f32.mrf.mxu0
      %v468 = vadd.f32 %v304, %v467
      %v469 = vpop.f32.mrf.mxu0
      %470 = vmatprep.mubr.bf16.mxu0 0
      %471 = vmatmul.mubr.bf16.gmra.mxu0 %v380
      %v472 = vpop.f32.mrf.mxu0
      %v473 = vadd.f32 %v304, %v472
      %v474 = vpop.f32.mrf.mxu0
      %v475 = vpop.f32.mrf.mxu0
      %v476 = vadd.f32 %v304, %v475
      %v477 = vpop.f32.mrf.mxu0
      %478 = vdwg.mxu0
      %vm479 = vcmask 130048
      %v480 = vsel %vm479, %v417, 0.0
      %v481 = vsel %vm479, %v420, 0.0
      %v482 = vadd.f32 %v480, %v481
      %v483 = vsel %vm479, %v425, 0.0
      %v484 = vadd.f32 %v482, %v483
      %v485 = vsel %vm479, %v428, 0.0
      %v486 = vadd.f32 %v484, %v485
      %v487 = vsel %vm479, %v433, 0.0
      %v488 = vadd.f32 %v486, %v487
      %v489 = vsel %vm479, %v436, 0.0
      %v490 = vadd.f32 %v488, %v489
      %v491 = vsel %vm479, %v441, 0.0
      %v492 = vadd.f32 %v490, %v491
      %v493 = vsel %vm479, %v444, 0.0
      %v494 = vadd.f32 %v492, %v493
      %v495 = vsel %vm479, %v449, 0.0
      %v496 = vadd.f32 %v494, %v495
      %v497 = vsel %vm479, %v452, 0.0
      %v498 = vadd.f32 %v496, %v497
      %v499 = vsel %vm479, %v457, 0.0
      %v500 = vadd.f32 %v498, %v499
      %v501 = vsel %vm479, %v460, 0.0
      %v502 = vadd.f32 %v500, %v501
      %v503 = vsel %vm479, %v465, 0.0
      %v504 = vadd.f32 %v502, %v503
      %v505 = vsel %vm479, %v468, 0.0
      %v506 = vadd.f32 %v504, %v505
      %v507 = vsel %vm479, %v473, 0.0
      %v508 = vadd.f32 %v506, %v507
      %v509 = vsel %vm479, %v476, 0.0
      %v510 = vadd.f32 %v508, %v509
      %v511 = vrot.slane %v510, 4
      %v512 = vadd.f32 %v510, %v511
      %v513 = vrot.slane %v512, 2
      %v514 = vadd.f32 %v512, %v513
      %v515 = vrot.slane %v514, 1
      %v516 = vadd.f32 %v514, %v515
      %v517 = vrcp.pop 128.0
      %v518 = vmul.f32 %v516, %v517
      %v519 = vsub.f32 %v417, %v518
      %v520 = vsub.f32 %v420, %v518
      %v521 = vsub.f32 %v425, %v518
      %v522 = vsub.f32 %v428, %v518
      %v523 = vsub.f32 %v433, %v518
      %v524 = vsub.f32 %v436, %v518
      %v525 = vsub.f32 %v441, %v518
      %v526 = vsub.f32 %v444, %v518
      %v527 = vsub.f32 %v449, %v518
      %v528 = vsub.f32 %v452, %v518
      %v529 = vsub.f32 %v457, %v518
      %v530 = vsub.f32 %v460, %v518
      %v531 = vsub.f32 %v465, %v518
      %v532 = vsub.f32 %v468, %v518
      %v533 = vsub.f32 %v473, %v518
      %v534 = vsub.f32 %v476, %v518
      %v535 = vmul.f32 %v519, %v519
      %v536 = vmul.f32 %v520, %v520
      %v537 = vmul.f32 %v521, %v521
      %v538 = vmul.f32 %v522, %v522
      %v539 = vmul.f32 %v523, %v523
      %v540 = vmul.f32 %v524, %v524
      %v541 = vmul.f32 %v525, %v525
      %v542 = vmul.f32 %v526, %v526
      %v543 = vmul.f32 %v527, %v527
      %v544 = vmul.f32 %v528, %v528
      %v545 = vmul.f32 %v529, %v529
      %v546 = vmul.f32 %v530, %v530
      %v547 = vmul.f32 %v531, %v531
      %v548 = vmul.f32 %v532, %v532
      %v549 = vmul.f32 %v533, %v533
      %v550 = vmul.f32 %v534, %v534
      %v551 = vsel %vm479, %v535, 0.0
      %v552 = vsel %vm479, %v536, 0.0
      %v553 = vadd.f32 %v551, %v552
      %v554 = vsel %vm479, %v537, 0.0
      %v555 = vadd.f32 %v553, %v554
      %v556 = vsel %vm479, %v538, 0.0
      %v557 = vadd.f32 %v555, %v556
      %v558 = vsel %vm479, %v539, 0.0
      %v559 = vadd.f32 %v557, %v558
      %v560 = vsel %vm479, %v540, 0.0
      %v561 = vadd.f32 %v559, %v560
      %v562 = vsel %vm479, %v541, 0.0
      %v563 = vadd.f32 %v561, %v562
      %v564 = vsel %vm479, %v542, 0.0
      %v565 = vadd.f32 %v563, %v564
      %v566 = vsel %vm479, %v543, 0.0
      %v567 = vadd.f32 %v565, %v566
      %v568 = vsel %vm479, %v544, 0.0
      %v569 = vadd.f32 %v567, %v568
      %v570 = vsel %vm479, %v545, 0.0
      %v571 = vadd.f32 %v569, %v570
      %v572 = vsel %vm479, %v546, 0.0
      %v573 = vadd.f32 %v571, %v572
      %v574 = vsel %vm479, %v547, 0.0
      %v575 = vadd.f32 %v573, %v574
      %v576 = vsel %vm479, %v548, 0.0
      %v577 = vadd.f32 %v575, %v576
      %v578 = vsel %vm479, %v549, 0.0
      %v579 = vadd.f32 %v577, %v578
      %v580 = vsel %vm479, %v550, 0.0
      %v581 = vadd.f32 %v579, %v580
      %v582 = vrot.slane %v581, 4
      %v583 = vadd.f32 %v581, %v582
      %v584 = vrot.slane %v583, 2
      %v585 = vadd.f32 %v583, %v584
      %v586 = vrot.slane %v585, 1
      %v587 = vadd.f32 %v585, %v586
      %v588 = vmul.f32 %v587, %v517
      %v589 = vadd.f32 %v588, 1e-05
      %v590 = vrsqrt.pop %v589
      %v591 = vmul.f32 %v519, %v590
      %v592 = vmul.f32 %v520, %v590
      %v593 = vmul.f32 %v521, %v590
      %v594 = vmul.f32 %v522, %v590
      %v595 = vmul.f32 %v523, %v590
      %v596 = vmul.f32 %v524, %v590
      %v597 = vmul.f32 %v525, %v590
      %v598 = vmul.f32 %v526, %v590
      %v599 = vmul.f32 %v527, %v590
      %v600 = vmul.f32 %v528, %v590
      %v601 = vmul.f32 %v529, %v590
      %v602 = vmul.f32 %v530, %v590
      %v603 = vmul.f32 %v531, %v590
      %v604 = vmul.f32 %v532, %v590
      %v605 = vmul.f32 %v533, %v590
      %v606 = vmul.f32 %v534, %v590
      %v607 = vld [vmem:[%s2 + $0x1] sm:$0x1]
      %v608 = vlaneseq
      %v609 = vshrl.u32 %v608, 7
      %v610 = vsub.s32 0, %v609
      %v611 = vrot.slane %v607, %v610
      %v612 = vmul.f32 %v591, %v611
      %v613 = vmul.f32 %v592, %v611
      %v614 = vmul.f32 %v593, %v611
      %v615 = vmul.f32 %v594, %v611
      %v616 = vmul.f32 %v595, %v611
      %v617 = vmul.f32 %v596, %v611
      %v618 = vmul.f32 %v597, %v611
      %v619 = vmul.f32 %v598, %v611
      %v620 = vmul.f32 %v599, %v611
      %v621 = vmul.f32 %v600, %v611
      %v622 = vmul.f32 %v601, %v611
      %v623 = vmul.f32 %v602, %v611
      %v624 = vmul.f32 %v603, %v611
      %v625 = vmul.f32 %v604, %v611
      %v626 = vmul.f32 %v605, %v611
      %v627 = vmul.f32 %v606, %v611
      %v628 = vld [vmem:[%s2 + $0x2] sm:$0x1]
      %v629 = vlaneseq
      %v630 = vshrl.u32 %v629, 7
      %v631 = vsub.s32 0, %v630
      %v632 = vrot.slane %v628, %v631
      %v633 = vadd.f32 %v612, %v632
      %v634 = vadd.f32 %v613, %v632
      %v635 = vadd.f32 %v614, %v632
      %v636 = vadd.f32 %v615, %v632
      %v637 = vadd.f32 %v616, %v632
      %v638 = vadd.f32 %v617, %v632
      %v639 = vadd.f32 %v618, %v632
      %v640 = vadd.f32 %v619, %v632
      %v641 = vadd.f32 %v620, %v632
      %v642 = vadd.f32 %v621, %v632
      %v643 = vadd.f32 %v622, %v632
      %v644 = vadd.f32 %v623, %v632
      %v645 = vadd.f32 %v624, %v632
      %v646 = vadd.f32 %v625, %v632
      %v647 = vadd.f32 %v626, %v632
      %v648 = vadd.f32 %v627, %v632
      %v649 = vmax.f32 %v633, 0.0
      %v650 = vmax.f32 %v634, 0.0
      %v651 = vmax.f32 %v635, 0.0
      %v652 = vmax.f32 %v636, 0.0
      %v653 = vmax.f32 %v637, 0.0
      %v654 = vmax.f32 %v638, 0.0
      %v655 = vmax.f32 %v639, 0.0
      %v656 = vmax.f32 %v640, 0.0
      %v657 = vmax.f32 %v641, 0.0
      %v658 = vmax.f32 %v642, 0.0
      %v659 = vmax.f32 %v643, 0.0
      %v660 = vmax.f32 %v644, 0.0
      %v661 = vmax.f32 %v645, 0.0
      %v662 = vmax.f32 %v646, 0.0
      %v663 = vmax.f32 %v647, 0.0
      %v664 = vmax.f32 %v648, 0.0
      %v665 = vpack.c.bf16 %v650, %v649
      %v666 = vpack.c.bf16 %v652, %v651
      %v667 = vpack.c.bf16 %v654, %v653
      %v668 = vpack.c.bf16 %v656, %v655
      %v669 = vpack.c.bf16 %v658, %v657
      %v670 = vpack.c.bf16 %v660, %v659
      %v671 = vpack.c.bf16 %v662, %v661
      %v672 = vpack.c.bf16 %v664, %v663
      %v673 = vld [vmem:[%s3] sm:$0xf]
      %v674 = vld [vmem:[%s3 + $0x4] sm:$0xf]
      %v675 = vld [vmem:[%s4] sm:$0x1]
      %v676 = vlaneseq
      %v677 = vshrl.u32 %v676, 7
      %v678 = vsub.s32 0, %v677
      %v679 = vrot.slane %v675, %v678
      %v682 = vunpack.c.l.b16 %v673
      %v683 = vunpack.c.l.b16 %v674
      %v684 = vpack.c.b16 %v683, %v682
      %v687 = vsel %vm479, %v665, 0
      %v690 = vsel %vm479, %v666, 0
      %v693 = vsel %vm479, %v667, 0
      %v696 = vsel %vm479, %v668, 0
      %v699 = vsel %vm479, %v669, 0
      %v702 = vsel %vm479, %v670, 0
      %v705 = vsel %vm479, %v671, 0
      %v708 = vsel %vm479, %v672, 0
      %710 = vmatprep.subr.bf16.mxu0 0
      %711 = vmatpush1.bf16.msra.mxu0 0
      %712 = vmatprep.subr.bf16.mxu0 0
      %713 = vmatpush1.bf16.msra.mxu0 0
      %714 = vmatprep.subr.bf16.mxu0 0
      %715 = vmatpush1.bf16.msra.mxu0 0
      %716 = vmatprep.subr.bf16.mxu0 0
      %717 = vmatpush1.bf16.msra.mxu0 0
      %718 = vmatprep.subr.bf16.mxu0 0
      %719 = vmatpush1.bf16.msra.mxu0 0
      %720 = vmatprep.subr.bf16.mxu0 0
      %721 = vmatpush1.bf16.msra.mxu0 0
      %722 = vmatprep.subr.bf16.mxu0 0
      %723 = vmatpush1.bf16.msra.mxu0 0
      %724 = vmatprep.subr.bf16.mxu0 0
      %725 = vmatpush1.bf16.msra.mxu0 %v684
      %726 = vmatprep.subr.bf16.mxu0 0
      %727 = vmatpush2.bf16.msra.mxu0 0
      %728 = vmatprep.subr.bf16.mxu0 0
      %729 = vmatpush2.bf16.msra.mxu0 0
      %730 = vmatprep.subr.bf16.mxu0 0
      %731 = vmatpush2.bf16.msra.mxu0 0
      %732 = vmatprep.subr.bf16.mxu0 0
      %733 = vmatpush2.bf16.msra.mxu0 0
      %734 = vmatprep.subr.bf16.mxu0 0
      %735 = vmatpush2.bf16.msra.mxu0 0
      %736 = vmatprep.subr.bf16.mxu0 0
      %737 = vmatpush2.bf16.msra.mxu0 0
      %738 = vmatprep.subr.bf16.mxu0 0
      %739 = vmatpush2.bf16.msra.mxu0 0
      %740 = vmatprep.subr.bf16.mxu0 0
      %741 = vmatpush2.bf16.msra.mxu0 0
      %742 = vmatprep.mubr.bf16.mxu0 0
      %743 = vmatmul.mubr.bf16.gmra.mxu0 %v687
      %v744 = vpop.f32.mrf.mxu0
      %v745 = vadd.f32 %v679, %v744
      %v746 = vpop.f32.mrf.mxu0
      %v747 = vpop.f32.mrf.mxu0
      %v748 = vadd.f32 %v679, %v747
      %v749 = vpop.f32.mrf.mxu0
      %750 = vmatprep.mubr.bf16.mxu0 0
      %751 = vmatmul.mubr.bf16.gmra.mxu0 %v690
      %v752 = vpop.f32.mrf.mxu0
      %v753 = vadd.f32 %v679, %v752
      %v754 = vpop.f32.mrf.mxu0
      %v755 = vpop.f32.mrf.mxu0
      %v756 = vadd.f32 %v679, %v755
      %v757 = vpop.f32.mrf.mxu0
      %758 = vmatprep.mubr.bf16.mxu0 0
      %759 = vmatmul.mubr.bf16.gmra.mxu0 %v693
      %v760 = vpop.f32.mrf.mxu0
      %v761 = vadd.f32 %v679, %v760
      %v762 = vpop.f32.mrf.mxu0
      %v763 = vpop.f32.mrf.mxu0
      %v764 = vadd.f32 %v679, %v763
      %v765 = vpop.f32.mrf.mxu0
      %766 = vmatprep.mubr.bf16.mxu0 0
      %767 = vmatmul.mubr.bf16.gmra.mxu0 %v696
      %v768 = vpop.f32.mrf.mxu0
      %v769 = vadd.f32 %v679, %v768
      %v770 = vpop.f32.mrf.mxu0
      %v771 = vpop.f32.mrf.mxu0
      %v772 = vadd.f32 %v679, %v771
      %v773 = vpop.f32.mrf.mxu0
      %774 = vmatprep.mubr.bf16.mxu0 0
      %775 = vmatmul.mubr.bf16.gmra.mxu0 %v699
      %v776 = vpop.f32.mrf.mxu0
      %v777 = vadd.f32 %v679, %v776
      %v778 = vpop.f32.mrf.mxu0
      %v779 = vpop.f32.mrf.mxu0
      %v780 = vadd.f32 %v679, %v779
      %v781 = vpop.f32.mrf.mxu0
      %782 = vmatprep.mubr.bf16.mxu0 0
      %783 = vmatmul.mubr.bf16.gmra.mxu0 %v702
      %v784 = vpop.f32.mrf.mxu0
      %v785 = vadd.f32 %v679, %v784
      %v786 = vpop.f32.mrf.mxu0
      %v787 = vpop.f32.mrf.mxu0
      %v788 = vadd.f32 %v679, %v787
      %v789 = vpop.f32.mrf.mxu0
      %790 = vmatprep.mubr.bf16.mxu0 0
      %791 = vmatmul.mubr.bf16.gmra.mxu0 %v705
      %v792 = vpop.f32.mrf.mxu0
      %v793 = vadd.f32 %v679, %v792
      %v794 = vpop.f32.mrf.mxu0
      %v795 = vpop.f32.mrf.mxu0
      %v796 = vadd.f32 %v679, %v795
      %v797 = vpop.f32.mrf.mxu0
      %798 = vmatprep.mubr.bf16.mxu0 0
      %799 = vmatmul.mubr.bf16.gmra.mxu0 %v708
      %v800 = vpop.f32.mrf.mxu0
      %v801 = vadd.f32 %v679, %v800
      %v802 = vpop.f32.mrf.mxu0
      %v803 = vpop.f32.mrf.mxu0
      %v804 = vadd.f32 %v679, %v803
      %v805 = vpop.f32.mrf.mxu0
      %806 = vdwg.mxu0
      %v807 = vsel %vm357, %v745, 0.0
      %v808 = vsel %vm357, %v748, 0.0
      %v809 = vadd.f32 %v807, %v808
      %v810 = vsel %vm357, %v753, 0.0
      %v811 = vadd.f32 %v809, %v810
      %v812 = vsel %vm357, %v756, 0.0
      %v813 = vadd.f32 %v811, %v812
      %v814 = vsel %vm357, %v761, 0.0
      %v815 = vadd.f32 %v813, %v814
      %v816 = vsel %vm357, %v764, 0.0
      %v817 = vadd.f32 %v815, %v816
      %v818 = vsel %vm357, %v769, 0.0
      %v819 = vadd.f32 %v817, %v818
      %v820 = vsel %vm357, %v772, 0.0
      %v821 = vadd.f32 %v819, %v820
      %v822 = vsel %vm357, %v777, 0.0
      %v823 = vadd.f32 %v821, %v822
      %v824 = vsel %vm357, %v780, 0.0
      %v825 = vadd.f32 %v823, %v824
      %v826 = vsel %vm357, %v785, 0.0
      %v827 = vadd.f32 %v825, %v826
      %v828 = vsel %vm357, %v788, 0.0
      %v829 = vadd.f32 %v827, %v828
      %v830 = vsel %vm357, %v793, 0.0
      %v831 = vadd.f32 %v829, %v830
      %v832 = vsel %vm357, %v796, 0.0
      %v833 = vadd.f32 %v831, %v832
      %v834 = vsel %vm357, %v801, 0.0
      %v835 = vadd.f32 %v833, %v834
      %v836 = vsel %vm357, %v804, 0.0
      %v837 = vadd.f32 %v835, %v836
      %v838 = vrot.slane %v837, 4
      %v839 = vadd.f32 %v837, %v838
      %v840 = vrot.slane %v839, 2
      %v841 = vadd.f32 %v839, %v840
      %v842 = vrot.slane %v841, 1
      %v843 = vadd.f32 %v841, %v842
      %v844 = vmul.f32 %v843, %v517
      %v845 = vsub.f32 %v745, %v844
      %v846 = vsub.f32 %v748, %v844
      %v847 = vsub.f32 %v753, %v844
      %v848 = vsub.f32 %v756, %v844
      %v849 = vsub.f32 %v761, %v844
      %v850 = vsub.f32 %v764, %v844
      %v851 = vsub.f32 %v769, %v844
      %v852 = vsub.f32 %v772, %v844
      %v853 = vsub.f32 %v777, %v844
      %v854 = vsub.f32 %v780, %v844
      %v855 = vsub.f32 %v785, %v844
      %v856 = vsub.f32 %v788, %v844
      %v857 = vsub.f32 %v793, %v844
      %v858 = vsub.f32 %v796, %v844
      %v859 = vsub.f32 %v801, %v844
      %v860 = vsub.f32 %v804, %v844
      %v861 = vmul.f32 %v845, %v845
      %v862 = vmul.f32 %v846, %v846
      %v863 = vmul.f32 %v847, %v847
      %v864 = vmul.f32 %v848, %v848
      %v865 = vmul.f32 %v849, %v849
      %v866 = vmul.f32 %v850, %v850
      %v867 = vmul.f32 %v851, %v851
      %v868 = vmul.f32 %v852, %v852
      %v869 = vmul.f32 %v853, %v853
      %v870 = vmul.f32 %v854, %v854
      %v871 = vmul.f32 %v855, %v855
      %v872 = vmul.f32 %v856, %v856
      %v873 = vmul.f32 %v857, %v857
      %v874 = vmul.f32 %v858, %v858
      %v875 = vmul.f32 %v859, %v859
      %v876 = vmul.f32 %v860, %v860
      %v877 = vsel %vm357, %v861, 0.0
      %v878 = vsel %vm357, %v862, 0.0
      %v879 = vadd.f32 %v877, %v878
      %v880 = vsel %vm357, %v863, 0.0
      %v881 = vadd.f32 %v879, %v880
      %v882 = vsel %vm357, %v864, 0.0
      %v883 = vadd.f32 %v881, %v882
      %v884 = vsel %vm357, %v865, 0.0
      %v885 = vadd.f32 %v883, %v884
      %v886 = vsel %vm357, %v866, 0.0
      %v887 = vadd.f32 %v885, %v886
      %v888 = vsel %vm357, %v867, 0.0
      %v889 = vadd.f32 %v887, %v888
      %v890 = vsel %vm357, %v868, 0.0
      %v891 = vadd.f32 %v889, %v890
      %v892 = vsel %vm357, %v869, 0.0
      %v893 = vadd.f32 %v891, %v892
      %v894 = vsel %vm357, %v870, 0.0
      %v895 = vadd.f32 %v893, %v894
      %v896 = vsel %vm357, %v871, 0.0
      %v897 = vadd.f32 %v895, %v896
      %v898 = vsel %vm357, %v872, 0.0
      %v899 = vadd.f32 %v897, %v898
      %v900 = vsel %vm357, %v873, 0.0
      %v901 = vadd.f32 %v899, %v900
      %v902 = vsel %vm357, %v874, 0.0
      %v903 = vadd.f32 %v901, %v902
      %v904 = vsel %vm357, %v875, 0.0
      %v905 = vadd.f32 %v903, %v904
      %v906 = vsel %vm357, %v876, 0.0
      %v907 = vadd.f32 %v905, %v906
      %v908 = vrot.slane %v907, 4
      %v909 = vadd.f32 %v907, %v908
      %v910 = vrot.slane %v909, 2
      %v911 = vadd.f32 %v909, %v910
      %v912 = vrot.slane %v911, 1
      %v913 = vadd.f32 %v911, %v912
      %v914 = vmul.f32 %v913, %v517
      %v915 = vadd.f32 %v914, 1e-05
      %v916 = vrsqrt.pop %v915
      %v917 = vmul.f32 %v845, %v916
      %v918 = vmul.f32 %v846, %v916
      %v919 = vmul.f32 %v847, %v916
      %v920 = vmul.f32 %v848, %v916
      %v921 = vmul.f32 %v849, %v916
      %v922 = vmul.f32 %v850, %v916
      %v923 = vmul.f32 %v851, %v916
      %v924 = vmul.f32 %v852, %v916
      %v925 = vmul.f32 %v853, %v916
      %v926 = vmul.f32 %v854, %v916
      %v927 = vmul.f32 %v855, %v916
      %v928 = vmul.f32 %v856, %v916
      %v929 = vmul.f32 %v857, %v916
      %v930 = vmul.f32 %v858, %v916
      %v931 = vmul.f32 %v859, %v916
      %v932 = vmul.f32 %v860, %v916
      %v933 = vld [vmem:[%s4 + $0x1] sm:$0x1]
      %v934 = vlaneseq
      %v935 = vshrl.u32 %v934, 7
      %v936 = vsub.s32 0, %v935
      %v937 = vrot.slane %v933, %v936
      %v938 = vmul.f32 %v917, %v937
      %v939 = vmul.f32 %v918, %v937
      %v940 = vmul.f32 %v919, %v937
      %v941 = vmul.f32 %v920, %v937
      %v942 = vmul.f32 %v921, %v937
      %v943 = vmul.f32 %v922, %v937
      %v944 = vmul.f32 %v923, %v937
      %v945 = vmul.f32 %v924, %v937
      %v946 = vmul.f32 %v925, %v937
      %v947 = vmul.f32 %v926, %v937
      %v948 = vmul.f32 %v927, %v937
      %v949 = vmul.f32 %v928, %v937
      %v950 = vmul.f32 %v929, %v937
      %v951 = vmul.f32 %v930, %v937
      %v952 = vmul.f32 %v931, %v937
      %v953 = vmul.f32 %v932, %v937
      %v954 = vld [vmem:[%s4 + $0x2] sm:$0x1]
      %v955 = vlaneseq
      %v956 = vshrl.u32 %v955, 7
      %v957 = vsub.s32 0, %v956
      %v958 = vrot.slane %v954, %v957
      %v959 = vadd.f32 %v938, %v958
      %v960 = vadd.f32 %v939, %v958
      %v961 = vadd.f32 %v940, %v958
      %v962 = vadd.f32 %v941, %v958
      %v963 = vadd.f32 %v942, %v958
      %v964 = vadd.f32 %v943, %v958
      %v965 = vadd.f32 %v944, %v958
      %v966 = vadd.f32 %v945, %v958
      %v967 = vadd.f32 %v946, %v958
      %v968 = vadd.f32 %v947, %v958
      %v969 = vadd.f32 %v948, %v958
      %v970 = vadd.f32 %v949, %v958
      %v971 = vadd.f32 %v950, %v958
      %v972 = vadd.f32 %v951, %v958
      %v973 = vadd.f32 %v952, %v958
      %v974 = vadd.f32 %v953, %v958
      %975 = vst [vmem:[#allocation2] sm:$0xff] 0.0
      %976 = vst [vmem:[#allocation2 + $0x8] sm:$0xff] 0.0
      %977 = vst.msk [vmem:[#allocation2 + $0x10] sm:$0xff] %vm357, 0.0
      %978 = vst [vmem:[#allocation2 + $0x18] sm:$0xff] 0.0
      %979 = vst [vmem:[#allocation2 + $0x20] sm:$0xff] 0.0
      %980 = vst.msk [vmem:[#allocation2 + $0x28] sm:$0xff] %vm357, 0.0
      %981 = vst [vmem:[#allocation2 + $0x30] sm:$0xff] 0.0
      %982 = vst [vmem:[#allocation2 + $0x38] sm:$0xff] 0.0
      %983 = vst.msk [vmem:[#allocation2 + $0x40] sm:$0xff] %vm357, 0.0
      %984 = vst [vmem:[#allocation2 + $0x48] sm:$0xff] 0.0
      %985 = vst [vmem:[#allocation2 + $0x50] sm:$0xff] 0.0
      %986 = vst.msk [vmem:[#allocation2 + $0x58] sm:$0xff] %vm357, 0.0
      %987 = vst [vmem:[#allocation2 + $0x60] sm:$0xff] 0.0
      %988 = vst [vmem:[#allocation2 + $0x68] sm:$0xff] 0.0
      %989 = vst.msk [vmem:[#allocation2 + $0x70] sm:$0xff] %vm357, 0.0
      %990 = vst [vmem:[#allocation2 + $0x78] sm:$0xff] 0.0
      %991 = vst [vmem:[#allocation2 + $0x80] sm:$0xff] 0.0
      %992 = vst.msk [vmem:[#allocation2 + $0x88] sm:$0xff] %vm357, 0.0
      %993 = vst [vmem:[#allocation2 + $0x90] sm:$0xff] 0.0
      %994 = vst [vmem:[#allocation2 + $0x98] sm:$0xff] 0.0
      %995 = vst.msk [vmem:[#allocation2 + $0xa0] sm:$0xff] %vm357, 0.0
      %996 = vst [vmem:[#allocation2 + $0xa8] sm:$0xff] 0.0
      %997 = vst [vmem:[#allocation2 + $0xb0] sm:$0xff] 0.0
      %998 = vst.msk [vmem:[#allocation2 + $0xb8] sm:$0xff] %vm357, 0.0
      %999 = vst [vmem:[#allocation2 + $0xc0] sm:$0xff] 0.0
      %1000 = vst [vmem:[#allocation2 + $0xc8] sm:$0xff] 0.0
      %1001 = vst.msk [vmem:[#allocation2 + $0xd0] sm:$0xff] %vm357, 0.0
      %1002 = vst [vmem:[#allocation2 + $0xd8] sm:$0xff] 0.0
      %1003 = vst [vmem:[#allocation2 + $0xe0] sm:$0xff] 0.0
      %1004 = vst.msk [vmem:[#allocation2 + $0xe8] sm:$0xff] %vm357, 0.0
      %1005 = vst [vmem:[#allocation2 + $0xf0] sm:$0xff] 0.0
      %1006 = vst [vmem:[#allocation2 + $0xf8] sm:$0xff] 0.0
      %1007 = vst.msk [vmem:[#allocation2 + $0x100] sm:$0xff] %vm357, 0.0
      %1008 = vst [vmem:[#allocation2 + $0x108] sm:$0xff] 0.0
      %1009 = vst [vmem:[#allocation2 + $0x110] sm:$0xff] 0.0
      %1010 = vst.msk [vmem:[#allocation2 + $0x118] sm:$0xff] %vm357, 0.0
      %1011 = vst [vmem:[#allocation2 + $0x120] sm:$0xff] 0.0
      %1012 = vst [vmem:[#allocation2 + $0x128] sm:$0xff] 0.0
      %1013 = vst.msk [vmem:[#allocation2 + $0x130] sm:$0xff] %vm357, 0.0
      %1014 = vst [vmem:[#allocation2 + $0x138] sm:$0xff] 0.0
      %1015 = vst [vmem:[#allocation2 + $0x140] sm:$0xff] 0.0
      %1016 = vst.msk [vmem:[#allocation2 + $0x148] sm:$0xff] %vm357, 0.0
      %1017 = vst [vmem:[#allocation2 + $0x150] sm:$0xff] 0.0
      %1018 = vst [vmem:[#allocation2 + $0x158] sm:$0xff] 0.0
      %1019 = vst.msk [vmem:[#allocation2 + $0x160] sm:$0xff] %vm357, 0.0
      %1020 = vst [vmem:[#allocation2 + $0x168] sm:$0xff] 0.0
      %1021 = vst [vmem:[#allocation2 + $0x170] sm:$0xff] 0.0
      %1022 = vst.msk [vmem:[#allocation2 + $0x178] sm:$0xff] %vm357, 0.0
      %v1037 = vrot.slane %v959, 7
      %v1038 = vrot.slane %v960, 7
      %v1039 = vrot.slane %v961, 7
      %v1040 = vrot.slane %v962, 7
      %v1041 = vrot.slane %v963, 7
      %v1042 = vrot.slane %v964, 7
      %v1043 = vrot.slane %v965, 7
      %v1044 = vrot.slane %v967, 7
      %v1045 = vrot.slane %v968, 7
      %v1046 = vrot.slane %v969, 7
      %v1047 = vrot.slane %v970, 7
      %v1048 = vrot.slane %v971, 7
      %v1049 = vrot.slane %v972, 7
      %v1050 = vrot.slane %v973, 7
      %s1065 = scalar_lea.vmem [#allocation2], 24
      %vm1066 = vcmask 261121
      %1067 = vst.msk [vmem:[%s1065] sm:$0xfe] %vm1066, %v1037
      %1068 = vst.msk [vmem:[%s1065 + $0x18] sm:$0xfe] %vm1066, %v1038
      %1069 = vst.msk [vmem:[%s1065 + $0x30] sm:$0xfe] %vm1066, %v1039
      %1070 = vst.msk [vmem:[%s1065 + $0x48] sm:$0xfe] %vm1066, %v1040
      %1071 = vst.msk [vmem:[%s1065 + $0x60] sm:$0xfe] %vm1066, %v1041
      %1072 = vst.msk [vmem:[%s1065 + $0x78] sm:$0xfe] %vm1066, %v1042
      %1073 = vst.msk [vmem:[%s1065 + $0x90] sm:$0xfe] %vm1066, %v1043
      %1074 = vst.msk [vmem:[%s1065 + $0xc0] sm:$0xfe] %vm1066, %v1044
      %1075 = vst.msk [vmem:[%s1065 + $0xd8] sm:$0xfe] %vm1066, %v1045
      %1076 = vst.msk [vmem:[%s1065 + $0xf0] sm:$0xfe] %vm1066, %v1046
      %1077 = vst.msk [vmem:[%s1065 + $0x108] sm:$0xfe] %vm1066, %v1047
      %1078 = vst.msk [vmem:[%s1065 + $0x120] sm:$0xfe] %vm1066, %v1048
      %1079 = vst.msk [vmem:[%s1065 + $0x138] sm:$0xfe] %vm1066, %v1049
      %1080 = vst.msk [vmem:[%s1065 + $0x150] sm:$0xfe] %vm1066, %v1050
      %1081 = vrot.lane.b32.xlu0 %v959, 32
      %v1082 = vpop.permute.xlu0 %1081
      %1083 = vrot.lane.b32.xlu0 %v960, 32
      %v1084 = vpop.permute.xlu0 %1083
      %1085 = vrot.lane.b32.xlu0 %v961, 32
      %v1086 = vpop.permute.xlu0 %1085
      %1087 = vrot.lane.b32.xlu0 %v962, 32
      %v1088 = vpop.permute.xlu0 %1087
      %1089 = vrot.lane.b32.xlu0 %v963, 32
      %v1090 = vpop.permute.xlu0 %1089
      %1091 = vrot.lane.b32.xlu0 %v964, 32
      %v1092 = vpop.permute.xlu0 %1091
      %1093 = vrot.lane.b32.xlu0 %v965, 32
      %v1094 = vpop.permute.xlu0 %1093
      %1095 = vrot.lane.b32.xlu0 %v967, 32
      %v1096 = vpop.permute.xlu0 %1095
      %1097 = vrot.lane.b32.xlu0 %v968, 32
      %v1098 = vpop.permute.xlu0 %1097
      %1099 = vrot.lane.b32.xlu0 %v969, 32
      %v1100 = vpop.permute.xlu0 %1099
      %1101 = vrot.lane.b32.xlu0 %v970, 32
      %v1102 = vpop.permute.xlu0 %1101
      %1103 = vrot.lane.b32.xlu0 %v971, 32
      %v1104 = vpop.permute.xlu0 %1103
      %1105 = vrot.lane.b32.xlu0 %v972, 32
      %v1106 = vpop.permute.xlu0 %1105
      %1107 = vrot.lane.b32.xlu0 %v973, 32
      %v1108 = vpop.permute.xlu0 %1107
      %vm1123 = vcmask 523520
      %1124 = vst.msk [vmem:[%s1065] sm:$0xff] %vm1123, %v1082
      %1125 = vst.msk [vmem:[%s1065 + $0x18] sm:$0xff] %vm1123, %v1084
      %1126 = vst.msk [vmem:[%s1065 + $0x30] sm:$0xff] %vm1123, %v1086
      %1127 = vst.msk [vmem:[%s1065 + $0x48] sm:$0xff] %vm1123, %v1088
      %1128 = vst.msk [vmem:[%s1065 + $0x60] sm:$0xff] %vm1123, %v1090
      %1129 = vst.msk [vmem:[%s1065 + $0x78] sm:$0xff] %vm1123, %v1092
      %1130 = vst.msk [vmem:[%s1065 + $0x90] sm:$0xff] %vm1123, %v1094
      %1131 = vst.msk [vmem:[%s1065 + $0xc0] sm:$0xff] %vm1123, %v1096
      %1132 = vst.msk [vmem:[%s1065 + $0xd8] sm:$0xff] %vm1123, %v1098
      %1133 = vst.msk [vmem:[%s1065 + $0xf0] sm:$0xff] %vm1123, %v1100
      %1134 = vst.msk [vmem:[%s1065 + $0x108] sm:$0xff] %vm1123, %v1102
      %1135 = vst.msk [vmem:[%s1065 + $0x120] sm:$0xff] %vm1123, %v1104
      %1136 = vst.msk [vmem:[%s1065 + $0x138] sm:$0xff] %vm1123, %v1106
      %1137 = vst.msk [vmem:[%s1065 + $0x150] sm:$0xff] %vm1123, %v1108
      %v1138 = vrot.slane %v959, 1
      %v1139 = vrot.slane %v960, 1
      %v1140 = vrot.slane %v961, 1
      %v1141 = vrot.slane %v962, 1
      %v1142 = vrot.slane %v963, 1
      %v1143 = vrot.slane %v964, 1
      %v1144 = vrot.slane %v965, 1
      %v1145 = vrot.slane %v967, 1
      %v1146 = vrot.slane %v968, 1
      %v1147 = vrot.slane %v969, 1
      %v1148 = vrot.slane %v970, 1
      %v1149 = vrot.slane %v971, 1
      %v1150 = vrot.slane %v972, 1
      %v1151 = vrot.slane %v973, 1
      %1152 = vrot.lane.b32.xlu0 %v1138, 64
      %v1153 = vpop.permute.xlu0 %1152
      %1154 = vrot.lane.b32.xlu0 %v1139, 64
      %v1155 = vpop.permute.xlu0 %1154
      %1156 = vrot.lane.b32.xlu0 %v1140, 64
      %v1157 = vpop.permute.xlu0 %1156
      %1158 = vrot.lane.b32.xlu0 %v1141, 64
      %v1159 = vpop.permute.xlu0 %1158
      %1160 = vrot.lane.b32.xlu0 %v1142, 64
      %v1161 = vpop.permute.xlu0 %1160
      %1162 = vrot.lane.b32.xlu0 %v1143, 64
      %v1163 = vpop.permute.xlu0 %1162
      %1164 = vrot.lane.b32.xlu0 %v1144, 64
      %v1165 = vpop.permute.xlu0 %1164
      %1166 = vrot.lane.b32.xlu0 %v1145, 64
      %v1167 = vpop.permute.xlu0 %1166
      %1168 = vrot.lane.b32.xlu0 %v1146, 64
      %v1169 = vpop.permute.xlu0 %1168
      %1170 = vrot.lane.b32.xlu0 %v1147, 64
      %v1171 = vpop.permute.xlu0 %1170
      %1172 = vrot.lane.b32.xlu0 %v1148, 64
      %v1173 = vpop.permute.xlu0 %1172
      %1174 = vrot.lane.b32.xlu0 %v1149, 64
      %v1175 = vpop.permute.xlu0 %1174
      %1176 = vrot.lane.b32.xlu0 %v1150, 64
      %v1177 = vpop.permute.xlu0 %1176
      %1178 = vrot.lane.b32.xlu0 %v1151, 64
      %v1179 = vpop.permute.xlu0 %1178
      %vm1194 = vcmask 784896
      %1195 = vst.msk [vmem:[%s1065] sm:$0x7f] %vm1194, %v1153
      %1196 = vst.msk [vmem:[%s1065 + $0x18] sm:$0x7f] %vm1194, %v1155
      %1197 = vst.msk [vmem:[%s1065 + $0x30] sm:$0x7f] %vm1194, %v1157
      %1198 = vst.msk [vmem:[%s1065 + $0x48] sm:$0x7f] %vm1194, %v1159
      %1199 = vst.msk [vmem:[%s1065 + $0x60] sm:$0x7f] %vm1194, %v1161
      %1200 = vst.msk [vmem:[%s1065 + $0x78] sm:$0x7f] %vm1194, %v1163
      %1201 = vst.msk [vmem:[%s1065 + $0x90] sm:$0x7f] %vm1194, %v1165
      %1202 = vst.msk [vmem:[%s1065 + $0xc0] sm:$0x7f] %vm1194, %v1167
      %1203 = vst.msk [vmem:[%s1065 + $0xd8] sm:$0x7f] %vm1194, %v1169
      %1204 = vst.msk [vmem:[%s1065 + $0xf0] sm:$0x7f] %vm1194, %v1171
      %1205 = vst.msk [vmem:[%s1065 + $0x108] sm:$0x7f] %vm1194, %v1173
      %1206 = vst.msk [vmem:[%s1065 + $0x120] sm:$0x7f] %vm1194, %v1175
      %1207 = vst.msk [vmem:[%s1065 + $0x138] sm:$0x7f] %vm1194, %v1177
      %1208 = vst.msk [vmem:[%s1065 + $0x150] sm:$0x7f] %vm1194, %v1179
      %v1211 = vrot.slane %v966, 7
      %v1212 = vrot.slane %v974, 7
      %1213 = vrot.lane.b32.xlu0 %v1037, 96
      %v1214 = vpop.permute.xlu0 %1213
      %1215 = vrot.lane.b32.xlu0 %v1038, 96
      %v1216 = vpop.permute.xlu0 %1215
      %1217 = vrot.lane.b32.xlu0 %v1039, 96
      %v1218 = vpop.permute.xlu0 %1217
      %1219 = vrot.lane.b32.xlu0 %v1040, 96
      %v1220 = vpop.permute.xlu0 %1219
      %1221 = vrot.lane.b32.xlu0 %v1041, 96
      %v1222 = vpop.permute.xlu0 %1221
      %1223 = vrot.lane.b32.xlu0 %v1042, 96
      %v1224 = vpop.permute.xlu0 %1223
      %1225 = vrot.lane.b32.xlu0 %v1043, 96
      %v1226 = vpop.permute.xlu0 %1225
      %1227 = vrot.lane.b32.xlu0 %v1211, 96
      %v1228 = vpop.permute.xlu0 %1227
      %1229 = vrot.lane.b32.xlu0 %v1044, 96
      %v1230 = vpop.permute.xlu0 %1229
      %1231 = vrot.lane.b32.xlu0 %v1045, 96
      %v1232 = vpop.permute.xlu0 %1231
      %1233 = vrot.lane.b32.xlu0 %v1046, 96
      %v1234 = vpop.permute.xlu0 %1233
      %1235 = vrot.lane.b32.xlu0 %v1047, 96
      %v1236 = vpop.permute.xlu0 %1235
      %1237 = vrot.lane.b32.xlu0 %v1048, 96
      %v1238 = vpop.permute.xlu0 %1237
      %1239 = vrot.lane.b32.xlu0 %v1049, 96
      %v1240 = vpop.permute.xlu0 %1239
      %1241 = vrot.lane.b32.xlu0 %v1050, 96
      %v1242 = vpop.permute.xlu0 %1241
      %1243 = vrot.lane.b32.xlu0 %v1212, 96
      %v1244 = vpop.permute.xlu0 %1243
      %vm1261 = vcmask 1048321
      %1262 = vst.msk [vmem:[#allocation2] sm:$0xfe] %vm1261, %v1214
      %1263 = vst.msk [vmem:[#allocation2 + $0x18] sm:$0xfe] %vm1261, %v1216
      %1264 = vst.msk [vmem:[#allocation2 + $0x30] sm:$0xfe] %vm1261, %v1218
      %1265 = vst.msk [vmem:[#allocation2 + $0x48] sm:$0xfe] %vm1261, %v1220
      %1266 = vst.msk [vmem:[#allocation2 + $0x60] sm:$0xfe] %vm1261, %v1222
      %1267 = vst.msk [vmem:[#allocation2 + $0x78] sm:$0xfe] %vm1261, %v1224
      %1268 = vst.msk [vmem:[#allocation2 + $0x90] sm:$0xfe] %vm1261, %v1226
      %1269 = vst.msk [vmem:[#allocation2 + $0xa8] sm:$0xfe] %vm1261, %v1228
      %1270 = vst.msk [vmem:[#allocation2 + $0xc0] sm:$0xfe] %vm1261, %v1230
      %1271 = vst.msk [vmem:[#allocation2 + $0xd8] sm:$0xfe] %vm1261, %v1232
      %1272 = vst.msk [vmem:[#allocation2 + $0xf0] sm:$0xfe] %vm1261, %v1234
      %1273 = vst.msk [vmem:[#allocation2 + $0x108] sm:$0xfe] %vm1261, %v1236
      %1274 = vst.msk [vmem:[#allocation2 + $0x120] sm:$0xfe] %vm1261, %v1238
      %1275 = vst.msk [vmem:[#allocation2 + $0x138] sm:$0xfe] %vm1261, %v1240
      %1276 = vst.msk [vmem:[#allocation2 + $0x150] sm:$0xfe] %vm1261, %v1242
      %1277 = vst.msk [vmem:[#allocation2 + $0x168] sm:$0xfe] %vm1261, %v1244
      %1278 = vst.msk [vmem:[#allocation2 + $0x8] sm:$0xff] %vm357, %v959
      %1279 = vst.msk [vmem:[#allocation2 + $0x20] sm:$0xff] %vm357, %v960
      %1280 = vst.msk [vmem:[#allocation2 + $0x38] sm:$0xff] %vm357, %v961
      %1281 = vst.msk [vmem:[#allocation2 + $0x50] sm:$0xff] %vm357, %v962
      %1282 = vst.msk [vmem:[#allocation2 + $0x68] sm:$0xff] %vm357, %v963
      %1283 = vst.msk [vmem:[#allocation2 + $0x80] sm:$0xff] %vm357, %v964
      %1284 = vst.msk [vmem:[#allocation2 + $0x98] sm:$0xff] %vm357, %v965
      %1285 = vst.msk [vmem:[#allocation2 + $0xb0] sm:$0xff] %vm357, %v966
      %1286 = vst.msk [vmem:[#allocation2 + $0xc8] sm:$0xff] %vm357, %v967
      %1287 = vst.msk [vmem:[#allocation2 + $0xe0] sm:$0xff] %vm357, %v968
      %1288 = vst.msk [vmem:[#allocation2 + $0xf8] sm:$0xff] %vm357, %v969
      %1289 = vst.msk [vmem:[#allocation2 + $0x110] sm:$0xff] %vm357, %v970
      %1290 = vst.msk [vmem:[#allocation2 + $0x128] sm:$0xff] %vm357, %v971
      %1291 = vst.msk [vmem:[#allocation2 + $0x140] sm:$0xff] %vm357, %v972
      %1292 = vst.msk [vmem:[#allocation2 + $0x158] sm:$0xff] %vm357, %v973
      %1293 = vst.msk [vmem:[#allocation2 + $0x170] sm:$0xff] %vm357, %v974
      %v1294 = vrot.slane %v966, 1
      %v1295 = vrot.slane %v974, 1
      %1296 = vrot.lane.b32.xlu0 %v1138, 32
      %v1297 = vpop.permute.xlu0 %1296
      %1298 = vrot.lane.b32.xlu0 %v1139, 32
      %v1299 = vpop.permute.xlu0 %1298
      %1300 = vrot.lane.b32.xlu0 %v1140, 32
      %v1301 = vpop.permute.xlu0 %1300
      %1302 = vrot.lane.b32.xlu0 %v1141, 32
      %v1303 = vpop.permute.xlu0 %1302
      %1304 = vrot.lane.b32.xlu0 %v1142, 32
      %v1305 = vpop.permute.xlu0 %1304
      %1306 = vrot.lane.b32.xlu0 %v1143, 32
      %v1307 = vpop.permute.xlu0 %1306
      %1308 = vrot.lane.b32.xlu0 %v1144, 32
      %v1309 = vpop.permute.xlu0 %1308
      %1310 = vrot.lane.b32.xlu0 %v1294, 32
      %v1311 = vpop.permute.xlu0 %1310
      %1312 = vrot.lane.b32.xlu0 %v1145, 32
      %v1313 = vpop.permute.xlu0 %1312
      %1314 = vrot.lane.b32.xlu0 %v1146, 32
      %v1315 = vpop.permute.xlu0 %1314
      %1316 = vrot.lane.b32.xlu0 %v1147, 32
      %v1317 = vpop.permute.xlu0 %1316
      %1318 = vrot.lane.b32.xlu0 %v1148, 32
      %v1319 = vpop.permute.xlu0 %1318
      %1320 = vrot.lane.b32.xlu0 %v1149, 32
      %v1321 = vpop.permute.xlu0 %1320
      %1322 = vrot.lane.b32.xlu0 %v1150, 32
      %v1323 = vpop.permute.xlu0 %1322
      %1324 = vrot.lane.b32.xlu0 %v1151, 32
      %v1325 = vpop.permute.xlu0 %1324
      %1326 = vrot.lane.b32.xlu0 %v1295, 32
      %v1327 = vpop.permute.xlu0 %1326
      %vm1344 = vcmask 522496
      %1345 = vst.msk [vmem:[#allocation2 + $0x8] sm:$0x7f] %vm1344, %v1297
      %1346 = vst.msk [vmem:[#allocation2 + $0x20] sm:$0x7f] %vm1344, %v1299
      %1347 = vst.msk [vmem:[#allocation2 + $0x38] sm:$0x7f] %vm1344, %v1301
      %1348 = vst.msk [vmem:[#allocation2 + $0x50] sm:$0x7f] %vm1344, %v1303
      %1349 = vst.msk [vmem:[#allocation2 + $0x68] sm:$0x7f] %vm1344, %v1305
      %1350 = vst.msk [vmem:[#allocation2 + $0x80] sm:$0x7f] %vm1344, %v1307
      %1351 = vst.msk [vmem:[#allocation2 + $0x98] sm:$0x7f] %vm1344, %v1309
      %1352 = vst.msk [vmem:[#allocation2 + $0xb0] sm:$0x7f] %vm1344, %v1311
      %1353 = vst.msk [vmem:[#allocation2 + $0xc8] sm:$0x7f] %vm1344, %v1313
      %1354 = vst.msk [vmem:[#allocation2 + $0xe0] sm:$0x7f] %vm1344, %v1315
      %1355 = vst.msk [vmem:[#allocation2 + $0xf8] sm:$0x7f] %vm1344, %v1317
      %1356 = vst.msk [vmem:[#allocation2 + $0x110] sm:$0x7f] %vm1344, %v1319
      %1357 = vst.msk [vmem:[#allocation2 + $0x128] sm:$0x7f] %vm1344, %v1321
      %1358 = vst.msk [vmem:[#allocation2 + $0x140] sm:$0x7f] %vm1344, %v1323
      %1359 = vst.msk [vmem:[#allocation2 + $0x158] sm:$0x7f] %vm1344, %v1325
      %1360 = vst.msk [vmem:[#allocation2 + $0x170] sm:$0x7f] %vm1344, %v1327
      %1361 = vrot.lane.b32.xlu0 %v1038, 64
      %v1362 = vpop.permute.xlu0 %1361
      %1363 = vrot.lane.b32.xlu0 %v1039, 64
      %v1364 = vpop.permute.xlu0 %1363
      %1365 = vrot.lane.b32.xlu0 %v1040, 64
      %v1366 = vpop.permute.xlu0 %1365
      %1367 = vrot.lane.b32.xlu0 %v1041, 64
      %v1368 = vpop.permute.xlu0 %1367
      %1369 = vrot.lane.b32.xlu0 %v1042, 64
      %v1370 = vpop.permute.xlu0 %1369
      %1371 = vrot.lane.b32.xlu0 %v1043, 64
      %v1372 = vpop.permute.xlu0 %1371
      %1373 = vrot.lane.b32.xlu0 %v1211, 64
      %v1374 = vpop.permute.xlu0 %1373
      %1375 = vrot.lane.b32.xlu0 %v1045, 64
      %v1376 = vpop.permute.xlu0 %1375
      %1377 = vrot.lane.b32.xlu0 %v1046, 64
      %v1378 = vpop.permute.xlu0 %1377
      %1379 = vrot.lane.b32.xlu0 %v1047, 64
      %v1380 = vpop.permute.xlu0 %1379
      %1381 = vrot.lane.b32.xlu0 %v1048, 64
      %v1382 = vpop.permute.xlu0 %1381
      %1383 = vrot.lane.b32.xlu0 %v1049, 64
      %v1384 = vpop.permute.xlu0 %1383
      %1385 = vrot.lane.b32.xlu0 %v1050, 64
      %v1386 = vpop.permute.xlu0 %1385
      %1387 = vrot.lane.b32.xlu0 %v1212, 64
      %v1388 = vpop.permute.xlu0 %1387
      %vm1403 = vcmask 785921
      %1404 = vst.msk [vmem:[#allocation2 + $0x8] sm:$0xfe] %vm1403, %v1362
      %1405 = vst.msk [vmem:[#allocation2 + $0x20] sm:$0xfe] %vm1403, %v1364
      %1406 = vst.msk [vmem:[#allocation2 + $0x38] sm:$0xfe] %vm1403, %v1366
      %1407 = vst.msk [vmem:[#allocation2 + $0x50] sm:$0xfe] %vm1403, %v1368
      %1408 = vst.msk [vmem:[#allocation2 + $0x68] sm:$0xfe] %vm1403, %v1370
      %1409 = vst.msk [vmem:[#allocation2 + $0x80] sm:$0xfe] %vm1403, %v1372
      %1410 = vst.msk [vmem:[#allocation2 + $0x98] sm:$0xfe] %vm1403, %v1374
      %1411 = vst.msk [vmem:[#allocation2 + $0xc8] sm:$0xfe] %vm1403, %v1376
      %1412 = vst.msk [vmem:[#allocation2 + $0xe0] sm:$0xfe] %vm1403, %v1378
      %1413 = vst.msk [vmem:[#allocation2 + $0xf8] sm:$0xfe] %vm1403, %v1380
      %1414 = vst.msk [vmem:[#allocation2 + $0x110] sm:$0xfe] %vm1403, %v1382
      %1415 = vst.msk [vmem:[#allocation2 + $0x128] sm:$0xfe] %vm1403, %v1384
      %1416 = vst.msk [vmem:[#allocation2 + $0x140] sm:$0xfe] %vm1403, %v1386
      %1417 = vst.msk [vmem:[#allocation2 + $0x158] sm:$0xfe] %vm1403, %v1388
      %1418 = vrot.lane.b32.xlu0 %v960, 96
      %v1419 = vpop.permute.xlu0 %1418
      %1420 = vrot.lane.b32.xlu0 %v961, 96
      %v1421 = vpop.permute.xlu0 %1420
      %1422 = vrot.lane.b32.xlu0 %v962, 96
      %v1423 = vpop.permute.xlu0 %1422
      %1424 = vrot.lane.b32.xlu0 %v963, 96
      %v1425 = vpop.permute.xlu0 %1424
      %1426 = vrot.lane.b32.xlu0 %v964, 96
      %v1427 = vpop.permute.xlu0 %1426
      %1428 = vrot.lane.b32.xlu0 %v965, 96
      %v1429 = vpop.permute.xlu0 %1428
      %1430 = vrot.lane.b32.xlu0 %v966, 96
      %v1431 = vpop.permute.xlu0 %1430
      %1432 = vrot.lane.b32.xlu0 %v968, 96
      %v1433 = vpop.permute.xlu0 %1432
      %1434 = vrot.lane.b32.xlu0 %v969, 96
      %v1435 = vpop.permute.xlu0 %1434
      %1436 = vrot.lane.b32.xlu0 %v970, 96
      %v1437 = vpop.permute.xlu0 %1436
      %1438 = vrot.lane.b32.xlu0 %v971, 96
      %v1439 = vpop.permute.xlu0 %1438
      %1440 = vrot.lane.b32.xlu0 %v972, 96
      %v1441 = vpop.permute.xlu0 %1440
      %1442 = vrot.lane.b32.xlu0 %v973, 96
      %v1443 = vpop.permute.xlu0 %1442
      %1444 = vrot.lane.b32.xlu0 %v974, 96
      %v1445 = vpop.permute.xlu0 %1444
      %vm1460 = vcmask 1048320
      %1461 = vst.msk [vmem:[#allocation2 + $0x8] sm:$0xff] %vm1460, %v1419
      %1462 = vst.msk [vmem:[#allocation2 + $0x20] sm:$0xff] %vm1460, %v1421
      %1463 = vst.msk [vmem:[#allocation2 + $0x38] sm:$0xff] %vm1460, %v1423
      %1464 = vst.msk [vmem:[#allocation2 + $0x50] sm:$0xff] %vm1460, %v1425
      %1465 = vst.msk [vmem:[#allocation2 + $0x68] sm:$0xff] %vm1460, %v1427
      %1466 = vst.msk [vmem:[#allocation2 + $0x80] sm:$0xff] %vm1460, %v1429
      %1467 = vst.msk [vmem:[#allocation2 + $0x98] sm:$0xff] %vm1460, %v1431
      %1468 = vst.msk [vmem:[#allocation2 + $0xc8] sm:$0xff] %vm1460, %v1433
      %1469 = vst.msk [vmem:[#allocation2 + $0xe0] sm:$0xff] %vm1460, %v1435
      %1470 = vst.msk [vmem:[#allocation2 + $0xf8] sm:$0xff] %vm1460, %v1437
      %1471 = vst.msk [vmem:[#allocation2 + $0x110] sm:$0xff] %vm1460, %v1439
      %1472 = vst.msk [vmem:[#allocation2 + $0x128] sm:$0xff] %vm1460, %v1441
      %1473 = vst.msk [vmem:[#allocation2 + $0x140] sm:$0xff] %vm1460, %v1443
      %1474 = vst.msk [vmem:[#allocation2 + $0x158] sm:$0xff] %vm1460, %v1445
      %vm1489 = vcmask 260096
      %1490 = vst.msk [vmem:[#allocation2 + $0x10] sm:$0x7f] %vm1489, %v1139
      %1491 = vst.msk [vmem:[#allocation2 + $0x28] sm:$0x7f] %vm1489, %v1140
      %1492 = vst.msk [vmem:[#allocation2 + $0x40] sm:$0x7f] %vm1489, %v1141
      %1493 = vst.msk [vmem:[#allocation2 + $0x58] sm:$0x7f] %vm1489, %v1142
      %1494 = vst.msk [vmem:[#allocation2 + $0x70] sm:$0x7f] %vm1489, %v1143
      %1495 = vst.msk [vmem:[#allocation2 + $0x88] sm:$0x7f] %vm1489, %v1144
      %1496 = vst.msk [vmem:[#allocation2 + $0xa0] sm:$0x7f] %vm1489, %v1294
      %1497 = vst.msk [vmem:[#allocation2 + $0xd0] sm:$0x7f] %vm1489, %v1146
      %1498 = vst.msk [vmem:[#allocation2 + $0xe8] sm:$0x7f] %vm1489, %v1147
      %1499 = vst.msk [vmem:[#allocation2 + $0x100] sm:$0x7f] %vm1489, %v1148
      %1500 = vst.msk [vmem:[#allocation2 + $0x118] sm:$0x7f] %vm1489, %v1149
      %1501 = vst.msk [vmem:[#allocation2 + $0x130] sm:$0x7f] %vm1489, %v1150
      %1502 = vst.msk [vmem:[#allocation2 + $0x148] sm:$0x7f] %vm1489, %v1151
      %1503 = vst.msk [vmem:[#allocation2 + $0x160] sm:$0x7f] %vm1489, %v1295
      %v1504 = vld [vmem:[#allocation2] sm:$0xff]
      %v1505 = vld [vmem:[#allocation2 + $0x8] sm:$0xff]
      %v1506 = vld [vmem:[#allocation2 + $0x10] sm:$0xff]
      %v1507 = vld [vmem:[#allocation2 + $0x18] sm:$0xff]
      %v1508 = vld [vmem:[#allocation2 + $0x20] sm:$0xff]
      %v1509 = vld [vmem:[#allocation2 + $0x28] sm:$0xff]
      %v1510 = vld [vmem:[#allocation2 + $0x30] sm:$0xff]
      %v1511 = vld [vmem:[#allocation2 + $0x38] sm:$0xff]
      %v1512 = vld [vmem:[#allocation2 + $0x40] sm:$0xff]
      %v1513 = vld [vmem:[#allocation2 + $0x48] sm:$0xff]
      %v1514 = vld [vmem:[#allocation2 + $0x50] sm:$0xff]
      %v1515 = vld [vmem:[#allocation2 + $0x58] sm:$0xff]
      %v1516 = vld [vmem:[#allocation2 + $0x60] sm:$0xff]
      %v1517 = vld [vmem:[#allocation2 + $0x68] sm:$0xff]
      %v1518 = vld [vmem:[#allocation2 + $0x70] sm:$0xff]
      %v1519 = vld [vmem:[#allocation2 + $0x78] sm:$0xff]
      %v1520 = vld [vmem:[#allocation2 + $0x80] sm:$0xff]
      %v1521 = vld [vmem:[#allocation2 + $0x88] sm:$0xff]
      %v1522 = vld [vmem:[#allocation2 + $0x90] sm:$0xff]
      %v1523 = vld [vmem:[#allocation2 + $0x98] sm:$0xff]
      %v1524 = vld [vmem:[#allocation2 + $0xa0] sm:$0xff]
      %v1525 = vld [vmem:[#allocation2 + $0xa8] sm:$0xff]
      %v1526 = vld [vmem:[#allocation2 + $0xb0] sm:$0xff]
      %v1527 = vld [vmem:[#allocation2 + $0xb8] sm:$0xff]
      %v1528 = vld [vmem:[#allocation2 + $0xc0] sm:$0xff]
      %v1529 = vld [vmem:[#allocation2 + $0xc8] sm:$0xff]
      %v1530 = vld [vmem:[#allocation2 + $0xd0] sm:$0xff]
      %v1531 = vld [vmem:[#allocation2 + $0xd8] sm:$0xff]
      %v1532 = vld [vmem:[#allocation2 + $0xe0] sm:$0xff]
      %v1533 = vld [vmem:[#allocation2 + $0xe8] sm:$0xff]
      %v1534 = vld [vmem:[#allocation2 + $0xf0] sm:$0xff]
      %v1535 = vld [vmem:[#allocation2 + $0xf8] sm:$0xff]
      %v1536 = vld [vmem:[#allocation2 + $0x100] sm:$0xff]
      %v1537 = vld [vmem:[#allocation2 + $0x108] sm:$0xff]
      %v1538 = vld [vmem:[#allocation2 + $0x110] sm:$0xff]
      %v1539 = vld [vmem:[#allocation2 + $0x118] sm:$0xff]
      %v1540 = vld [vmem:[#allocation2 + $0x120] sm:$0xff]
      %v1541 = vld [vmem:[#allocation2 + $0x128] sm:$0xff]
      %v1542 = vld [vmem:[#allocation2 + $0x130] sm:$0xff]
      %v1543 = vld [vmem:[#allocation2 + $0x138] sm:$0xff]
      %v1544 = vld [vmem:[#allocation2 + $0x140] sm:$0xff]
      %v1545 = vld [vmem:[#allocation2 + $0x148] sm:$0xff]
      %v1546 = vld [vmem:[#allocation2 + $0x150] sm:$0xff]
      %v1547 = vld [vmem:[#allocation2 + $0x158] sm:$0xff]
      %v1548 = vld [vmem:[#allocation2 + $0x160] sm:$0xff]
      %v1549 = vld [vmem:[#allocation2 + $0x168] sm:$0xff]
      %v1550 = vld [vmem:[#allocation2 + $0x170] sm:$0xff]
      %v1551 = vld [vmem:[#allocation2 + $0x178] sm:$0xff]
      %v1552 = vpack.c.bf16 %v1507, %v1504
      %v1553 = vpack.c.bf16 %v1508, %v1505
      %v1554 = vpack.c.bf16 %v1509, %v1506
      %v1555 = vpack.c.bf16 %v1513, %v1510
      %v1556 = vpack.c.bf16 %v1514, %v1511
      %v1557 = vpack.c.bf16 %v1515, %v1512
      %v1558 = vpack.c.bf16 %v1519, %v1516
      %v1559 = vpack.c.bf16 %v1520, %v1517
      %v1560 = vpack.c.bf16 %v1521, %v1518
      %v1561 = vpack.c.bf16 %v1525, %v1522
      %v1562 = vpack.c.bf16 %v1526, %v1523
      %v1563 = vpack.c.bf16 %v1527, %v1524
      %v1564 = vpack.c.bf16 %v1531, %v1528
      %v1565 = vpack.c.bf16 %v1532, %v1529
      %v1566 = vpack.c.bf16 %v1533, %v1530
      %v1567 = vpack.c.bf16 %v1537, %v1534
      %v1568 = vpack.c.bf16 %v1538, %v1535
      %v1569 = vpack.c.bf16 %v1539, %v1536
      %v1570 = vpack.c.bf16 %v1543, %v1540
      %v1571 = vpack.c.bf16 %v1544, %v1541
      %v1572 = vpack.c.bf16 %v1545, %v1542
      %v1573 = vpack.c.bf16 %v1549, %v1546
      %v1574 = vpack.c.bf16 %v1550, %v1547
      %v1575 = vpack.c.bf16 %v1551, %v1548
      %v1576 = vld [vmem:[%s5] sm:$0xf]
      %v1577 = vld [vmem:[%s5 + $0x4] sm:$0xf]
      %v1578 = vld [vmem:[%s5 + $0x8] sm:$0xf]
      %v1579 = vld [vmem:[%s5 + $0xc] sm:$0xf]
      %v1580 = vld [vmem:[%s5 + $0x10] sm:$0xf]
      %v1581 = vld [vmem:[%s5 + $0x14] sm:$0xf]
      %v1582 = vld [vmem:[%s5 + $0x18] sm:$0xf]
      %v1583 = vld [vmem:[%s5 + $0x1c] sm:$0xf]
      %v1584 = vld [vmem:[%s5 + $0x20] sm:$0xf]
      %v1585 = vld [vmem:[%s5 + $0x24] sm:$0xf]
      %v1586 = vld [vmem:[%s5 + $0x28] sm:$0xf]
      %v1587 = vld [vmem:[%s5 + $0x2c] sm:$0xf]
      %v1588 = vld [vmem:[%s5 + $0x30] sm:$0xf]
      %v1589 = vld [vmem:[%s5 + $0x34] sm:$0xf]
      %v1590 = vld [vmem:[%s5 + $0x38] sm:$0xf]
      %v1591 = vld [vmem:[%s5 + $0x3c] sm:$0xf]
      %v1592 = vld [vmem:[%s5 + $0x40] sm:$0xf]
      %v1593 = vld [vmem:[%s5 + $0x44] sm:$0xf]
      %v1594 = vld [vmem:[%s5 + $0x48] sm:$0xf]
      %v1595 = vld [vmem:[%s5 + $0x4c] sm:$0xf]
      %v1596 = vld [vmem:[%s5 + $0x50] sm:$0xf]
      %v1597 = vld [vmem:[%s5 + $0x54] sm:$0xf]
      %v1598 = vld [vmem:[%s5 + $0x58] sm:$0xf]
      %v1599 = vld [vmem:[%s5 + $0x5c] sm:$0xf]
      %v1600 = vld [vmem:[%s5 + $0x60] sm:$0xf]
      %v1601 = vld [vmem:[%s5 + $0x64] sm:$0xf]
      %v1602 = vld [vmem:[%s5 + $0x68] sm:$0xf]
      %v1603 = vld [vmem:[%s5 + $0x6c] sm:$0xf]
      %v1604 = vld [vmem:[%s5 + $0x70] sm:$0xf]
      %v1605 = vld [vmem:[%s5 + $0x74] sm:$0xf]
      %v1606 = vld [vmem:[%s5 + $0x78] sm:$0xf]
      %v1607 = vld [vmem:[%s5 + $0x7c] sm:$0xf]
      %v1608 = vld [vmem:[%s5 + $0x80] sm:$0xf]
      %v1609 = vld [vmem:[%s5 + $0x84] sm:$0xf]
      %v1610 = vld [vmem:[%s5 + $0x88] sm:$0xf]
      %v1611 = vld [vmem:[%s5 + $0x8c] sm:$0xf]
      %v1612 = vld [vmem:[%s6] sm:$0x1]
      %v1614 = vlaneseq
      %v1615 = vshrl.u32 %v1614, 7
      %v1616 = vsub.s32 0, %v1615
      %v1617 = vrot.slane %v1612, %v1616
      %v1655 = vunpack.c.l.b16 %v1576
      %v1656 = vunpack.c.l.b16 %v1577
      %v1657 = vunpack.c.l.b16 %v1578
      %v1658 = vunpack.c.l.b16 %v1579
      %v1659 = vunpack.c.l.b16 %v1580
      %v1660 = vunpack.c.l.b16 %v1581
      %v1661 = vunpack.c.l.b16 %v1582
      %v1662 = vunpack.c.l.b16 %v1583
      %v1663 = vunpack.c.l.b16 %v1584
      %v1664 = vunpack.c.l.b16 %v1585
      %v1665 = vunpack.c.l.b16 %v1586
      %v1666 = vunpack.c.l.b16 %v1587
      %v1667 = vunpack.c.l.b16 %v1588
      %v1668 = vunpack.c.l.b16 %v1589
      %v1669 = vunpack.c.l.b16 %v1590
      %v1670 = vunpack.c.l.b16 %v1591
      %v1671 = vunpack.c.l.b16 %v1592
      %v1672 = vunpack.c.l.b16 %v1593
      %v1673 = vunpack.c.l.b16 %v1594
      %v1674 = vunpack.c.l.b16 %v1595
      %v1675 = vunpack.c.l.b16 %v1596
      %v1676 = vunpack.c.l.b16 %v1597
      %v1677 = vunpack.c.l.b16 %v1598
      %v1678 = vunpack.c.l.b16 %v1599
      %v1679 = vunpack.c.l.b16 %v1600
      %v1680 = vunpack.c.l.b16 %v1601
      %v1681 = vunpack.c.l.b16 %v1602
      %v1682 = vunpack.c.l.b16 %v1603
      %v1683 = vunpack.c.l.b16 %v1604
      %v1684 = vunpack.c.l.b16 %v1605
      %v1685 = vunpack.c.l.b16 %v1606
      %v1686 = vunpack.c.l.b16 %v1607
      %v1687 = vunpack.c.l.b16 %v1608
      %v1688 = vunpack.c.l.b16 %v1609
      %v1689 = vunpack.c.l.b16 %v1610
      %v1690 = vunpack.c.l.b16 %v1611
      %v1691 = vpack.c.b16 %v1656, %v1655
      %v1692 = vpack.c.b16 %v1658, %v1657
      %v1693 = vpack.c.b16 %v1660, %v1659
      %v1694 = vpack.c.b16 %v1662, %v1661
      %v1695 = vpack.c.b16 %v1664, %v1663
      %v1696 = vpack.c.b16 %v1666, %v1665
      %v1697 = vpack.c.b16 %v1668, %v1667
      %v1698 = vpack.c.b16 %v1670, %v1669
      %v1699 = vpack.c.b16 %v1672, %v1671
      %v1700 = vpack.c.b16 %v1674, %v1673
      %v1701 = vpack.c.b16 %v1676, %v1675
      %v1702 = vpack.c.b16 %v1678, %v1677
      %v1703 = vpack.c.b16 %v1680, %v1679
      %v1704 = vpack.c.b16 %v1682, %v1681
      %v1705 = vpack.c.b16 %v1684, %v1683
      %v1706 = vpack.c.b16 %v1686, %v1685
      %v1707 = vpack.c.b16 %v1688, %v1687
      %v1708 = vpack.c.b16 %v1690, %v1689
      %v1728 = vsel %vm357, %v1554, 0
      %v1731 = vsel %vm357, %v1557, 0
      %v1734 = vsel %vm357, %v1560, 0
      %v1737 = vsel %vm357, %v1563, 0
      %v1740 = vsel %vm357, %v1566, 0
      %v1743 = vsel %vm357, %v1569, 0
      %v1746 = vsel %vm357, %v1572, 0
      %v1749 = vsel %vm357, %v1575, 0
      %1751 = vmatprep.subr.bf16.mxu0 0
      %1752 = vmatpush1.bf16.msra.mxu0 %v1698
      %1753 = vmatprep.subr.bf16.mxu0 0
      %1754 = vmatpush1.bf16.msra.mxu0 %v1697
      %1755 = vmatprep.subr.bf16.mxu0 0
      %1756 = vmatpush1.bf16.msra.mxu0 %v1696
      %1757 = vmatprep.subr.bf16.mxu0 0
      %1758 = vmatpush1.bf16.msra.mxu0 %v1695
      %1759 = vmatprep.subr.bf16.mxu0 0
      %1760 = vmatpush1.bf16.msra.mxu0 %v1694
      %1761 = vmatprep.subr.bf16.mxu0 0
      %1762 = vmatpush1.bf16.msra.mxu0 %v1693
      %1763 = vmatprep.subr.bf16.mxu0 0
      %1764 = vmatpush1.bf16.msra.mxu0 %v1692
      %1765 = vmatprep.subr.bf16.mxu0 0
      %1766 = vmatpush1.bf16.msra.mxu0 %v1691
      %1767 = vmatprep.subr.bf16.mxu0 0
      %1768 = vmatpush2.bf16.msra.mxu0 %v1706
      %1769 = vmatprep.subr.bf16.mxu0 0
      %1770 = vmatpush2.bf16.msra.mxu0 %v1705
      %1771 = vmatprep.subr.bf16.mxu0 0
      %1772 = vmatpush2.bf16.msra.mxu0 %v1704
      %1773 = vmatprep.subr.bf16.mxu0 0
      %1774 = vmatpush2.bf16.msra.mxu0 %v1703
      %1775 = vmatprep.subr.bf16.mxu0 0
      %1776 = vmatpush2.bf16.msra.mxu0 %v1702
      %1777 = vmatprep.subr.bf16.mxu0 0
      %1778 = vmatpush2.bf16.msra.mxu0 %v1701
      %1779 = vmatprep.subr.bf16.mxu0 0
      %1780 = vmatpush2.bf16.msra.mxu0 %v1700
      %1781 = vmatprep.subr.bf16.mxu0 0
      %1782 = vmatpush2.bf16.msra.mxu0 %v1699
      %1783 = vmatprep.mubr.bf16.mxu0 %v1553
      %1784 = vmatmul.mubr.bf16.gmra.mxu0 %v1552
      %v1785 = vpop.f32.mrf.mxu0
      %v1786 = vadd.f32 %v1617, %v1785
      %v1787 = vpop.f32.mrf.mxu0
      %v1788 = vpop.f32.mrf.mxu0
      %v1789 = vadd.f32 %v1617, %v1788
      %v1790 = vpop.f32.mrf.mxu0
      %1791 = vmatprep.mubr.bf16.mxu0 %v1556
      %1792 = vmatmul.mubr.bf16.gmra.mxu0 %v1555
      %v1793 = vpop.f32.mrf.mxu0
      %v1794 = vadd.f32 %v1617, %v1793
      %v1795 = vpop.f32.mrf.mxu0
      %v1796 = vpop.f32.mrf.mxu0
      %v1797 = vadd.f32 %v1617, %v1796
      %v1798 = vpop.f32.mrf.mxu0
      %1799 = vmatprep.mubr.bf16.mxu0 %v1559
      %1800 = vmatmul.mubr.bf16.gmra.mxu0 %v1558
      %v1801 = vpop.f32.mrf.mxu0
      %v1802 = vadd.f32 %v1617, %v1801
      %v1803 = vpop.f32.mrf.mxu0
      %v1804 = vpop.f32.mrf.mxu0
      %v1805 = vadd.f32 %v1617, %v1804
      %v1806 = vpop.f32.mrf.mxu0
      %1807 = vmatprep.mubr.bf16.mxu0 %v1562
      %1808 = vmatmul.mubr.bf16.gmra.mxu0 %v1561
      %v1809 = vpop.f32.mrf.mxu0
      %v1810 = vadd.f32 %v1617, %v1809
      %v1811 = vpop.f32.mrf.mxu0
      %v1812 = vpop.f32.mrf.mxu0
      %v1813 = vadd.f32 %v1617, %v1812
      %v1814 = vpop.f32.mrf.mxu0
      %1815 = vmatprep.mubr.bf16.mxu0 %v1565
      %1816 = vmatmul.mubr.bf16.gmra.mxu0 %v1564
      %v1817 = vpop.f32.mrf.mxu0
      %v1818 = vadd.f32 %v1617, %v1817
      %v1819 = vpop.f32.mrf.mxu0
      %v1820 = vpop.f32.mrf.mxu0
      %v1821 = vadd.f32 %v1617, %v1820
      %v1822 = vpop.f32.mrf.mxu0
      %1823 = vmatprep.mubr.bf16.mxu0 %v1568
      %1824 = vmatmul.mubr.bf16.gmra.mxu0 %v1567
      %v1825 = vpop.f32.mrf.mxu0
      %v1826 = vadd.f32 %v1617, %v1825
      %v1827 = vpop.f32.mrf.mxu0
      %v1828 = vpop.f32.mrf.mxu0
      %v1829 = vadd.f32 %v1617, %v1828
      %v1830 = vpop.f32.mrf.mxu0
      %1831 = vmatprep.mubr.bf16.mxu0 %v1571
      %1832 = vmatmul.mubr.bf16.gmra.mxu0 %v1570
      %v1833 = vpop.f32.mrf.mxu0
      %v1834 = vadd.f32 %v1617, %v1833
      %v1835 = vpop.f32.mrf.mxu0
      %v1836 = vpop.f32.mrf.mxu0
      %v1837 = vadd.f32 %v1617, %v1836
      %v1838 = vpop.f32.mrf.mxu0
      %1839 = vmatprep.mubr.bf16.mxu0 %v1574
      %1840 = vmatmul.mubr.bf16.gmra.mxu0 %v1573
      %v1841 = vpop.f32.mrf.mxu0
      %v1842 = vadd.f32 %v1617, %v1841
      %v1843 = vpop.f32.mrf.mxu0
      %v1844 = vpop.f32.mrf.mxu0
      %v1845 = vadd.f32 %v1617, %v1844
      %v1846 = vpop.f32.mrf.mxu0
      %1847 = vdwg.mxu0
      %1848 = vmatprep.subr.bf16.mxu0 0
      %1849 = vmatpush1.bf16.msra.mxu0 0
      %1850 = vmatprep.subr.bf16.mxu0 0
      %1851 = vmatpush1.bf16.msra.mxu0 0
      %1852 = vmatprep.subr.bf16.mxu0 0
      %1853 = vmatpush1.bf16.msra.mxu0 0
      %1854 = vmatprep.subr.bf16.mxu0 0
      %1855 = vmatpush1.bf16.msra.mxu0 0
      %1856 = vmatprep.subr.bf16.mxu0 0
      %1857 = vmatpush1.bf16.msra.mxu0 0
      %1858 = vmatprep.subr.bf16.mxu0 0
      %1859 = vmatpush1.bf16.msra.mxu0 0
      %1860 = vmatprep.subr.bf16.mxu0 0
      %1861 = vmatpush1.bf16.msra.mxu0 %v1708
      %1862 = vmatprep.subr.bf16.mxu0 0
      %1863 = vmatpush1.bf16.msra.mxu0 %v1707
      %1864 = vmatprep.subr.bf16.mxu0 0
      %1865 = vmatpush2.bf16.msra.mxu0 0
      %1866 = vmatprep.subr.bf16.mxu0 0
      %1867 = vmatpush2.bf16.msra.mxu0 0
      %1868 = vmatprep.subr.bf16.mxu0 0
      %1869 = vmatpush2.bf16.msra.mxu0 0
      %1870 = vmatprep.subr.bf16.mxu0 0
      %1871 = vmatpush2.bf16.msra.mxu0 0
      %1872 = vmatprep.subr.bf16.mxu0 0
      %1873 = vmatpush2.bf16.msra.mxu0 0
      %1874 = vmatprep.subr.bf16.mxu0 0
      %1875 = vmatpush2.bf16.msra.mxu0 0
      %1876 = vmatprep.subr.bf16.mxu0 0
      %1877 = vmatpush2.bf16.msra.mxu0 0
      %1878 = vmatprep.subr.bf16.mxu0 0
      %1879 = vmatpush2.bf16.msra.mxu0 0
      %1880 = vmatprep.mubr.bf16.mxu0 0
      %1881 = vmatmul.mubr.bf16.gmra.mxu0 %v1728
      %v1882 = vpop.f32.mrf.mxu0
      %v1883 = vadd.f32 %v1786, %v1882
      %v1884 = vpop.f32.mrf.mxu0
      %v1885 = vpop.f32.mrf.mxu0
      %v1886 = vadd.f32 %v1789, %v1885
      %v1887 = vpop.f32.mrf.mxu0
      %1888 = vmatprep.mubr.bf16.mxu0 0
      %1889 = vmatmul.mubr.bf16.gmra.mxu0 %v1731
      %v1890 = vpop.f32.mrf.mxu0
      %v1891 = vadd.f32 %v1794, %v1890
      %v1892 = vpop.f32.mrf.mxu0
      %v1893 = vpop.f32.mrf.mxu0
      %v1894 = vadd.f32 %v1797, %v1893
      %v1895 = vpop.f32.mrf.mxu0
      %1896 = vmatprep.mubr.bf16.mxu0 0
      %1897 = vmatmul.mubr.bf16.gmra.mxu0 %v1734
      %v1898 = vpop.f32.mrf.mxu0
      %v1899 = vadd.f32 %v1802, %v1898
      %v1900 = vpop.f32.mrf.mxu0
      %v1901 = vpop.f32.mrf.mxu0
      %v1902 = vadd.f32 %v1805, %v1901
      %v1903 = vpop.f32.mrf.mxu0
      %1904 = vmatprep.mubr.bf16.mxu0 0
      %1905 = vmatmul.mubr.bf16.gmra.mxu0 %v1737
      %v1906 = vpop.f32.mrf.mxu0
      %v1907 = vadd.f32 %v1810, %v1906
      %v1908 = vpop.f32.mrf.mxu0
      %v1909 = vpop.f32.mrf.mxu0
      %v1910 = vadd.f32 %v1813, %v1909
      %v1911 = vpop.f32.mrf.mxu0
      %1912 = vmatprep.mubr.bf16.mxu0 0
      %1913 = vmatmul.mubr.bf16.gmra.mxu0 %v1740
      %v1914 = vpop.f32.mrf.mxu0
      %v1915 = vadd.f32 %v1818, %v1914
      %v1916 = vpop.f32.mrf.mxu0
      %v1917 = vpop.f32.mrf.mxu0
      %v1918 = vadd.f32 %v1821, %v1917
      %v1919 = vpop.f32.mrf.mxu0
      %1920 = vmatprep.mubr.bf16.mxu0 0
      %1921 = vmatmul.mubr.bf16.gmra.mxu0 %v1743
      %v1922 = vpop.f32.mrf.mxu0
      %v1923 = vadd.f32 %v1826, %v1922
      %v1924 = vpop.f32.mrf.mxu0
      %v1925 = vpop.f32.mrf.mxu0
      %v1926 = vadd.f32 %v1829, %v1925
      %v1927 = vpop.f32.mrf.mxu0
      %1928 = vmatprep.mubr.bf16.mxu0 0
      %1929 = vmatmul.mubr.bf16.gmra.mxu0 %v1746
      %v1930 = vpop.f32.mrf.mxu0
      %v1931 = vadd.f32 %v1834, %v1930
      %v1932 = vpop.f32.mrf.mxu0
      %v1933 = vpop.f32.mrf.mxu0
      %v1934 = vadd.f32 %v1837, %v1933
      %v1935 = vpop.f32.mrf.mxu0
      %1936 = vmatprep.mubr.bf16.mxu0 0
      %1937 = vmatmul.mubr.bf16.gmra.mxu0 %v1749
      %v1938 = vpop.f32.mrf.mxu0
      %v1939 = vadd.f32 %v1842, %v1938
      %v1940 = vpop.f32.mrf.mxu0
      %v1941 = vpop.f32.mrf.mxu0
      %v1942 = vadd.f32 %v1845, %v1941
      %v1943 = vpop.f32.mrf.mxu0
      %1944 = vdwg.mxu0
      %1945 = vxpose.xlu0.b32.start [1/16] %v1883, 128
      %1946 = vxpose.xlu0.b32.cont [2/16] %v1886, 128
      %1947 = vxpose.xlu0.b32.cont [3/16] %v1891, 128
      %1948 = vxpose.xlu0.b32.cont [4/16] %v1894, 128
      %1949 = vxpose.xlu0.b32.cont [5/16] %v1899, 128
      %1950 = vxpose.xlu0.b32.cont [6/16] %v1902, 128
      %1951 = vxpose.xlu0.b32.cont [7/16] %v1907, 128
      %1952 = vxpose.xlu0.b32.cont [8/16] %v1910, 128
      %1953 = vxpose.xlu0.b32.cont [9/16] %v1915, 128
      %1954 = vxpose.xlu0.b32.cont [10/16] %v1918, 128
      %1955 = vxpose.xlu0.b32.cont [11/16] %v1923, 128
      %1956 = vxpose.xlu0.b32.cont [12/16] %v1926, 128
      %1957 = vxpose.xlu0.b32.cont [13/16] %v1931, 128
      %1958 = vxpose.xlu0.b32.cont [14/16] %v1934, 128
      %1959 = vxpose.xlu0.b32.cont [15/16] %v1939, 128
      %1960 = vxpose.xlu0.b32.end [16/16] %v1942, 128
      %v1961 = vpop.trf.xlu0
      %v1962 = vpop.trf.xlu0
      %v1963 = vpop.trf.xlu0
      %v1964 = vpop.trf.xlu0
      %v1965 = vpop.trf.xlu0
      %v1966 = vpop.trf.xlu0
      %v1967 = vpop.trf.xlu0
      %v1968 = vpop.trf.xlu0
      %v1969 = vpop.trf.xlu0
      %v1970 = vpop.trf.xlu0
      %v1971 = vpop.trf.xlu0
      %v1972 = vpop.trf.xlu0
      %v1973 = vpop.trf.xlu0
      %v1974 = vpop.trf.xlu0
      %v1975 = vpop.trf.xlu0
      %v1976 = vpop.trf.xlu0
      %1977 = vst [vmem:[%s278] sm:$0xff] %v1961
      %1978 = vst [vmem:[%s278 + $0x8] sm:$0xff] %v1962
      %1979 = vst [vmem:[%s278 + $0x10] sm:$0xff] %v1963
      %1980 = vst [vmem:[%s278 + $0x18] sm:$0xff] %v1964
      %p1981 = scmp.lt.s32.totalorder %s18, 2
      %s1982 = scalar_select %p1981, %s18, 2
      %s1983 = smul.addr %s1982, 4
      %s1984 = smul.addr %s1983, 8
      %s1985 = scalar_lea.vmem %s7, %s1984
      // Predicated region
      $region49: #{forward.2} parent=47 // pred_check
        %p1986 = pneg %p188
      $region50: #{forward.2} parent=47 // pred_check_branch
        %1988 = sbr.rel (%p1986) target = $region52
      $region51: #{forward.2} parent=47 // pred_region
        _
      $region52: #{forward.2} parent=47 // pred_fallthru
        _
    $region48: #{forward.2} parent=5 // pred_fallthru
      _
    %p1989 = scmp.le.s32.totalorder 2, %s13
    // Predicated region
    $region53: #{forward.2} parent=5 // pred_check
      %p1990 = pneg %p1989
    $region54: #{forward.2} parent=5 // pred_check_branch
      %1992 = sbr.rel (%p1990) target = $region56
    $region55: #{forward.2} parent=5 // pred_region
      %s1993 = ssub.s32 %s13, 2
      // Predicated region
      $region57: #{forward.2} parent=55 // pred_check
        %p1994 = pneg %p194
      $region58: #{forward.2} parent=55 // pred_check_branch
        %1996 = sbr.rel (%p1994) target = $region60
      $region59: #{forward.2} parent=55 // pred_region
        %p1997 = scmp.lt.s32.totalorder %s19, 2
        %s1998 = scalar_select %p1997, %s19, 2
        %s1999 = smul.addr %s1998, 4
        %s2000 = smul.addr %s1999, 8
        %s2001 = scalar_lea.vmem %s7, %s2000
      $region60: #{forward.2} parent=55 // pred_fallthru
        _
    $region56: #{forward.2} parent=5 // pred_fallthru
      _
  $region6: #{forward.2} parent=0 // loop_footer
    %s17 = sadd.s32 1, %s13
  $region7: #{forward.2} parent=0 // loop_footer_branch
    %12 = sbr.rel target = $region3
  $region8: #{forward.2} parent=0 // loop_exit
    _

</llo_original>
